<compile_context>
chip_gen: v7x
topology: tpu7x:2x2x1
jax: 0.10.0
libtpu: 0.0.40
codegen_flags: <defaults>
</compile_context>

<pallas_src>
import functools

import jax
import jax.numpy as jnp
from jax.experimental import pallas as pl
from jax.experimental.pallas import tpu as pltpu

_HI = jax.lax.Precision.HIGHEST


def _mixprop_kernel(a_ref, w_ref, bias_ref, x_ref, o_ref, hall_ref,
                    *, gdep, alpha, cn):
    # a_ref   : (CN, CN)        (1-alpha)-prescaled block-diag adjacency (1-a)*(I_C (x) A)
    # w_ref   : (C_out*N, K*CN) concatenated kron-expanded 1x1-conv weights
    # bias_ref: (C_out*N, Tb)   pre-broadcast bias tile (lane-dense)
    # x_ref   : (CN, Tb)        input with batch folded into the lane axis
    # o_ref   : (C_out*N, Tb)
    # hall_ref: (K*CN, Tb)      VMEM scratch holding [x; h1; ...; h_gdep]
    x = x_ref[...]
    hall_ref[pl.ds(0, cn), :] = x
    x_alpha = alpha * x                       # hoisted off the serial chain
    h = x
    for k in range(1, gdep + 1):
        # Propagation: one block-diagonal MXU matmul covers all channels.
        h = x_alpha + jnp.dot(a_ref[...], h,
                              preferred_element_type=jnp.float32, precision=_HI)
        hall_ref[pl.ds(k * cn, cn), :] = h
    # Merged MLP: single (C_out*N, K*CN) x (K*CN, Tb) matmul (192-deep
    # contraction, one MXU pass on v6e/v7x), then lane-dense bias add + store.
    o_ref[...] = (jnp.dot(w_ref[...], hall_ref[...],
                          preferred_element_type=jnp.float32, precision=_HI)
                  + bias_ref[...]).astype(o_ref.dtype)


def mixprop_prepare(adj, w, b, *, gdep, alpha):
    """One-time preprocessing of static parameters (hoist out of the per-call
    path when adjacency / weights are fixed, e.g. at inference time)."""
    f32 = jnp.float32
    N = adj.shape[0]
    K = gdep + 1
    C_out = w.shape[0]
    C = w.shape[1] // K

    # Normalized adjacency (module semantics): a = (adj + I) / rowsum.
    adj_i = adj.astype(f32) + jnp.eye(N, dtype=f32)
    a = adj_i / adj_i.sum(axis=1, keepdims=True)
    # Fold (1 - alpha) into the block-diagonal propagation matrix.
    a_eff = (1.0 - alpha) * jnp.kron(jnp.eye(C, dtype=f32), a)       # (CN, CN)

    # Conv2d weight (C_out, K*C, 1, 1); torch.cat order -> in-channel = k*C + c.
    # kron(W_k, I_N) matches the (c*N + v) row layout of the propagation;
    # concatenating all K blocks makes the MLP a single deep contraction.
    w2 = w.reshape(C_out, K * C).astype(f32)
    eye_n = jnp.eye(N, dtype=f32)
    w_all = jnp.concatenate(
        [jnp.kron(w2[:, k * C:(k + 1) * C], eye_n) for k in range(K)],
        axis=1)                                                       # (C_out*N, K*CN)

    b_rep = jnp.repeat(b.astype(f32), N)                              # (C_out*N,)
    return a_eff, w_all, b_rep


def mixprop_apply(x, a_eff, w_all, b_rep, *, gdep, alpha, num_lane_blocks=1):
    B, C, N, T = x.shape
    K = gdep + 1
    CN = C * N
    CoN = w_all.shape[0]
    C_out = CoN // N
    BT = B * T
    f32 = jnp.float32

    G = num_lane_blocks                       # set 2 on v7x to use both TCs
    assert BT % G == 0, "num_lane_blocks must divide B*T"
    Tb = BT // G
    assert G == 1 or Tb % 128 == 0, "lane blocks must stay lane-dense"

    # Fold batch into the lane axis: (B, C, N, T) -> (CN, B*T).  One-time tiny
    # XLA transpose; buys a 256-wide RHS and a single grid step.
    x2 = jnp.transpose(x.astype(f32).reshape(B, CN, T), (1, 0, 2)).reshape(CN, BT)
    bias_tile = jnp.broadcast_to(b_rep[:, None], (CoN, Tb))

    out2 = pl.pallas_call(
        functools.partial(_mixprop_kernel, gdep=gdep, alpha=alpha, cn=CN),
        out_shape=jax.ShapeDtypeStruct((CoN, BT), f32),
        grid=(G,),
        in_specs=[
            pl.BlockSpec((CN, CN), lambda g: (0, 0)),        # a_eff (constant block)
            pl.BlockSpec((CoN, K * CN), lambda g: (0, 0)),   # w_all (constant block)
            pl.BlockSpec((CoN, Tb), lambda g: (0, 0)),       # bias  (constant block)
            pl.BlockSpec((CN, Tb), lambda g: (0, g)),        # x lane block
        ],
        out_specs=pl.BlockSpec((CoN, Tb), lambda g: (0, g)),
        scratch_shapes=[pltpu.VMEM((K * CN, Tb), f32)],
        compiler_params=pltpu.CompilerParams(
            dimension_semantics=("parallel",)),
    )(a_eff, w_all, bias_tile, x2)

    # Undo the batch fold: (C_out*N, B*T) -> (B, C_out, N, T).
    return jnp.transpose(out2.reshape(CoN, B, T), (1, 0, 2)).reshape(B, C_out, N, T)


def mixprop_forward(x, adj, w, b, *, gdep, alpha, num_lane_blocks=1):
    a_eff, w_all, b_rep = mixprop_prepare(adj, w, b, gdep=gdep, alpha=alpha)
    return mixprop_apply(x, a_eff, w_all, b_rep, gdep=gdep, alpha=alpha,
                         num_lane_blocks=num_lane_blocks)


def mixprop_reference(x, adj, w, b, *, gdep, alpha):
    # Pure-JAX reference of the same semantics, for verification.
    n = adj.shape[0]
    adj_i = adj + jnp.eye(n, dtype=adj.dtype)
    d = adj_i.sum(1)
    a = adj_i / d[:, None]
    h = x
    outs = [h]
    for _ in range(gdep):
        prop = jnp.einsum('vw,bcwt->bcvt', a, h, precision=_HI)
        h = alpha * x + (1 - alpha) * prop
        outs.append(h)
    ho = jnp.concatenate(outs, axis=1)
    w2 = w.reshape(w.shape[0], -1)
    return jnp.einsum('oi,bint->bont', w2, ho, precision=_HI) + b[None, :, None, None]


if __name__ == "__main__":
    B, c_in, c_out = 2, 4, 8
    N, T = 16, 128                        # graph nodes, time steps
    gdep, alpha, dropout = 2, 0.05, 0.3   # dropout unused in the module's forward

    key = jax.random.PRNGKey(0)
    kx, ka, kw, kb = jax.random.split(key, 4)
    x = jax.random.normal(kx, (B, c_in, N, T), jnp.float32)
    adj = jax.random.uniform(ka, (N, N), jnp.float32)        # non-negative adjacency
    # Conv2d((gdep+1)*c_in, c_out, kernel=1) parameters, deterministic init.
    w = 0.1 * jax.random.normal(kw, (c_out, (gdep + 1) * c_in, 1, 1), jnp.float32)
    b = 0.1 * jax.random.normal(kb, (c_out,), jnp.float32)

    out = mixprop_forward(x, adj, w, b, gdep=gdep, alpha=alpha)
    out = jax.block_until_ready(out)

    ref = mixprop_reference(x, adj, w, b, gdep=gdep, alpha=alpha)
    assert out.shape == (B, c_out, N, T)
    assert jnp.allclose(out, ref, atol=1e-3, rtol=1e-3)
    print("KERNEL_OK")
</pallas_src>

<mosaic_0001>
module attributes {stable_mosaic.version = 11 : i64} {
  func.func @_mixprop_kernel(%arg0: i32, %arg1: memref<64x64xf32, #tpu.memory_space<vmem>>, %arg2: memref<128x192xf32, #tpu.memory_space<vmem>>, %arg3: memref<128x256xf32, #tpu.memory_space<vmem>>, %arg4: memref<64x256xf32, #tpu.memory_space<vmem>>, %arg5: memref<128x256xf32, #tpu.memory_space<vmem>>, %arg6: memref<192x256xf32, #tpu.memory_space<vmem>>) attributes {dimension_semantics = [#tpu.dimension_semantics<parallel>], iteration_bounds = array<i64: 1>, scalar_prefetch = 0 : i64, scratch_operands = 1 : i64, tpu.core_type = #tpu.core_type<tc>, window_params = [{pipeline_mode = #tpu.pipeline_mode<synchronous>, transform_indices = @transform_0, window_bounds = array<i64: 64, 64>}, {pipeline_mode = #tpu.pipeline_mode<synchronous>, transform_indices = @transform_1, window_bounds = array<i64: 128, 192>}, {pipeline_mode = #tpu.pipeline_mode<synchronous>, transform_indices = @transform_2, window_bounds = array<i64: 128, 256>}, {transform_indices = @transform_3, window_bounds = array<i64: 64, 256>}, {transform_indices = @transform_4, window_bounds = array<i64: 128, 256>}]} {
    %c0 = arith.constant 0 : index
    %c0_0 = arith.constant 0 : index
    %0 = vector.load %arg4[%c0, %c0_0] : memref<64x256xf32, #tpu.memory_space<vmem>>, vector<64x256xf32>
    %c0_1 = arith.constant 0 : index
    %c0_2 = arith.constant 0 : index
    %1 = vector.load %arg6[%c0_1, %c0_2] : memref<192x256xf32, #tpu.memory_space<vmem>>, vector<64x256xf32>
    tpu.vector_store %arg6[%c0_1, %c0_2], %0 {strides = array<i32>} : memref<192x256xf32, #tpu.memory_space<vmem>>, vector<64x256xf32>,
    %cst = arith.constant 5.000000e-02 : f32
    %2 = vector.broadcast %cst : f32 to vector<64x256xf32>
    %3 = arith.mulf %2, %0 : vector<64x256xf32>
    %c0_3 = arith.constant 0 : index
    %c0_4 = arith.constant 0 : index
    %4 = vector.load %arg1[%c0_3, %c0_4] : memref<64x64xf32, #tpu.memory_space<vmem>>, vector<64x64xf32>
    %cst_5 = arith.constant dense<0.000000e+00> : vector<64x256xf32>
    %5 = tpu.matmul %4, %0, %cst_5 {dimension_numbers = #tpu.dot_dimension_numbers<[1], [0], [0], [1], [0, 0, 1, 1], [], []>, precision = #tpu.contract_precision<fp32>} : vector<64x64xf32>, vector<64x256xf32>, vector<64x256xf32> -> vector<64x256xf32>
    %6 = arith.addf %3, %5 : vector<64x256xf32>
    %c64 = arith.constant 64 : index
    %c0_6 = arith.constant 0 : index
    %7 = vector.load %arg6[%c64, %c0_6] : memref<192x256xf32, #tpu.memory_space<vmem>>, vector<64x256xf32>
    tpu.vector_store %arg6[%c64, %c0_6], %6 {strides = array<i32>} : memref<192x256xf32, #tpu.memory_space<vmem>>, vector<64x256xf32>,
    %c0_7 = arith.constant 0 : index
    %c0_8 = arith.constant 0 : index
    %8 = vector.load %arg1[%c0_7, %c0_8] : memref<64x64xf32, #tpu.memory_space<vmem>>, vector<64x64xf32>
    %cst_9 = arith.constant dense<0.000000e+00> : vector<64x256xf32>
    %9 = tpu.matmul %8, %6, %cst_9 {dimension_numbers = #tpu.dot_dimension_numbers<[1], [0], [0], [1], [0, 0, 1, 1], [], []>, precision = #tpu.contract_precision<fp32>} : vector<64x64xf32>, vector<64x256xf32>, vector<64x256xf32> -> vector<64x256xf32>
    %10 = arith.addf %3, %9 : vector<64x256xf32>
    %c128 = arith.constant 128 : index
    %c0_10 = arith.constant 0 : index
    %11 = vector.load %arg6[%c128, %c0_10] : memref<192x256xf32, #tpu.memory_space<vmem>>, vector<64x256xf32>
    tpu.vector_store %arg6[%c128, %c0_10], %10 {strides = array<i32>} : memref<192x256xf32, #tpu.memory_space<vmem>>, vector<64x256xf32>,
    %c0_11 = arith.constant 0 : index
    %c0_12 = arith.constant 0 : index
    %12 = vector.load %arg2[%c0_11, %c0_12] : memref<128x192xf32, #tpu.memory_space<vmem>>, vector<128x192xf32>
    %c0_13 = arith.constant 0 : index
    %c0_14 = arith.constant 0 : index
    %13 = vector.load %arg6[%c0_13, %c0_14] : memref<192x256xf32, #tpu.memory_space<vmem>>, vector<192x256xf32>
    %cst_15 = arith.constant dense<0.000000e+00> : vector<128x256xf32>
    %14 = tpu.matmul %12, %13, %cst_15 {dimension_numbers = #tpu.dot_dimension_numbers<[1], [0], [0], [1], [0, 0, 1, 1], [], []>, precision = #tpu.contract_precision<fp32>} : vector<128x192xf32>, vector<192x256xf32>, vector<128x256xf32> -> vector<128x256xf32>
    %c0_16 = arith.constant 0 : index
    %c0_17 = arith.constant 0 : index
    %15 = vector.load %arg3[%c0_16, %c0_17] : memref<128x256xf32, #tpu.memory_space<vmem>>, vector<128x256xf32>
    %16 = arith.addf %14, %15 : vector<128x256xf32>
    %c0_18 = arith.constant 0 : index
    %c0_19 = arith.constant 0 : index
    %17 = vector.load %arg5[%c0_18, %c0_19] : memref<128x256xf32, #tpu.memory_space<vmem>>, vector<128x256xf32>
    tpu.vector_store %arg5[%c0_18, %c0_19], %16 {strides = array<i32>} : memref<128x256xf32, #tpu.memory_space<vmem>>, vector<128x256xf32>,
    return
  }
  func.func @transform_0(%arg0: i32) -> (i32, i32) {
    %c0_i32 = arith.constant 0 : i32
    %c0_i32_0 = arith.constant 0 : i32
    %c0_i32_1 = arith.constant 0 : i32
    return %c0_i32, %c0_i32_0 : i32, i32
  }
  func.func @transform_1(%arg0: i32) -> (i32, i32) {
    %c0_i32 = arith.constant 0 : i32
    %c0_i32_0 = arith.constant 0 : i32
    %c0_i32_1 = arith.constant 0 : i32
    return %c0_i32, %c0_i32_0 : i32, i32
  }
  func.func @transform_2(%arg0: i32) -> (i32, i32) {
    %c0_i32 = arith.constant 0 : i32
    %c0_i32_0 = arith.constant 0 : i32
    %c0_i32_1 = arith.constant 0 : i32
    return %c0_i32, %c0_i32_0 : i32, i32
  }
  func.func @transform_3(%arg0: i32) -> (i32, i32) {
    %c0_i32 = arith.constant 0 : i32
    %c0_i32_0 = arith.constant 0 : i32
    return %c0_i32, %arg0 : i32, i32
  }
  func.func @transform_4(%arg0: i32) -> (i32, i32) {
    %c0_i32 = arith.constant 0 : i32
    %c0_i32_0 = arith.constant 0 : i32
    return %c0_i32, %arg0 : i32, i32
  }
}

</mosaic_0001>

<llo_original>
// kernel: tpu_custom_call.1
$region0: #{tpu_custom_call.1}
  #allocation0 [shape = 'u32[]', space=smem, size = 0x4, offset = 0x4, fixed_abs, tag = 'smem constant byte address 0x4 - core index']
  #allocation1 [shape = 'u32[144,128]{1,0:T(1,128)}', space=vmem, size = 0x12000, scoped, tag = 'internal scratch']
  #allocation2 [shape = 'f32[192,256]{1,0:T(8,128)}', space=vmem, size = 0x30000, scoped, tag = 'scratch operand']
  %s0 = inlined_call_operand.vmem [shape: f32[64,64], index: 0, kind: input, shape index: {}]
  %s1 = inlined_call_operand.vmem [shape: f32[128,192], index: 1, kind: input, shape index: {}]
  %s2 = inlined_call_operand.vmem [shape: f32[128,256], index: 2, kind: input, shape index: {}]
  %s3 = inlined_call_operand.vmem [shape: f32[64,256], index: 3, kind: input, shape index: {}]
  %s4 = inlined_call_operand.hbm [shape: f32[128,256], index: 4, kind: output, shape index: {}]
  %s5 = sld [smem:[#allocation0]]
  $region26: #{tpu_custom_call.1} parent=0
    _
  %s7 = ssub.s32 1, %s5
  %s8 = scalar_select 0, %s7, %s5
  $region1: #{tpu_custom_call.1} parent=0
    #allocation3 [shape = 'u8[131072]{0}', space=vmem, size = 0x20000, scoped, tag = 'output window, operand 0, single buffered']
    #allocation4 [shape = 's32[1]{0}', space=sflag, size = 0x4, scoped, tag = 'scoped memory for tpu_custom_call.1']
    %9 = vsyncpa [#allocation4], 0
    // Predicated region
    $region2: #{tpu_custom_call.1} parent=1 // pred_check
      _
    $region3: #{tpu_custom_call.1} parent=1 // pred_check_branch
      %11 = sbr.rel (0) target = $region5
    $region4: #{tpu_custom_call.1} parent=1 // pred_region
      _
    $region5: #{tpu_custom_call.1} parent=1 // pred_fallthru
      _
    // Predicated region
    $region6: #{tpu_custom_call.1} parent=1 // pred_check
      _
    $region7: #{tpu_custom_call.1} parent=1 // pred_check_branch
      %13 = sbr.rel (0) target = $region9
    $region8: #{tpu_custom_call.1} parent=1 // pred_region
      _
    $region9: #{tpu_custom_call.1} parent=1 // pred_fallthru
      _
    // Predicated region
    $region10: #{tpu_custom_call.1} parent=1 // pred_check
      _
    $region11: #{tpu_custom_call.1} parent=1 // pred_check_branch
      %15 = sbr.rel (0) target = $region13
    $region12: #{tpu_custom_call.1} parent=1 // pred_region
      _
    $region13: #{tpu_custom_call.1} parent=1 // pred_fallthru
      _
    // Predicated region
    $region14: #{tpu_custom_call.1} parent=1 // pred_check
      _
    $region15: #{tpu_custom_call.1} parent=1 // pred_check_branch
      %17 = sbr.rel (0) target = $region17
    $region16: #{tpu_custom_call.1} parent=1 // pred_region
      _
    $region17: #{tpu_custom_call.1} parent=1 // pred_fallthru
      _
    %v18 = vld [vmem:[%s3] sm:$0xff]
    %v19 = vld [vmem:[%s3 + $0x8] sm:$0xff]
    %v20 = vld [vmem:[%s3 + $0x10] sm:$0xff]
    %v21 = vld [vmem:[%s3 + $0x18] sm:$0xff]
    %v22 = vld [vmem:[%s3 + $0x20] sm:$0xff]
    %v23 = vld [vmem:[%s3 + $0x28] sm:$0xff]
    %v24 = vld [vmem:[%s3 + $0x30] sm:$0xff]
    %v25 = vld [vmem:[%s3 + $0x38] sm:$0xff]
    %v26 = vld [vmem:[%s3 + $0x40] sm:$0xff]
    %v27 = vld [vmem:[%s3 + $0x48] sm:$0xff]
    %v28 = vld [vmem:[%s3 + $0x50] sm:$0xff]
    %v29 = vld [vmem:[%s3 + $0x58] sm:$0xff]
    %v30 = vld [vmem:[%s3 + $0x60] sm:$0xff]
    %v31 = vld [vmem:[%s3 + $0x68] sm:$0xff]
    %v32 = vld [vmem:[%s3 + $0x70] sm:$0xff]
    %v33 = vld [vmem:[%s3 + $0x78] sm:$0xff]
    %34 = vst [vmem:[#allocation2] sm:$0xff] %v18
    %35 = vst [vmem:[#allocation2 + $0x8] sm:$0xff] %v19
    %36 = vst [vmem:[#allocation2 + $0x10] sm:$0xff] %v20
    %37 = vst [vmem:[#allocation2 + $0x18] sm:$0xff] %v21
    %38 = vst [vmem:[#allocation2 + $0x20] sm:$0xff] %v22
    %39 = vst [vmem:[#allocation2 + $0x28] sm:$0xff] %v23
    %40 = vst [vmem:[#allocation2 + $0x30] sm:$0xff] %v24
    %41 = vst [vmem:[#allocation2 + $0x38] sm:$0xff] %v25
    %42 = vst [vmem:[#allocation2 + $0x40] sm:$0xff] %v26
    %43 = vst [vmem:[#allocation2 + $0x48] sm:$0xff] %v27
    %44 = vst [vmem:[#allocation2 + $0x50] sm:$0xff] %v28
    %45 = vst [vmem:[#allocation2 + $0x58] sm:$0xff] %v29
    %46 = vst [vmem:[#allocation2 + $0x60] sm:$0xff] %v30
    %47 = vst [vmem:[#allocation2 + $0x68] sm:$0xff] %v31
    %48 = vst [vmem:[#allocation2 + $0x70] sm:$0xff] %v32
    %49 = vst [vmem:[#allocation2 + $0x78] sm:$0xff] %v33
    %v50 = vmul.f32 %v18, 0.05
    %v51 = vmul.f32 %v19, 0.05
    %v52 = vmul.f32 %v20, 0.05
    %v53 = vmul.f32 %v21, 0.05
    %v54 = vmul.f32 %v22, 0.05
    %v55 = vmul.f32 %v23, 0.05
    %v56 = vmul.f32 %v24, 0.05
    %v57 = vmul.f32 %v25, 0.05
    %v58 = vmul.f32 %v26, 0.05
    %v59 = vmul.f32 %v27, 0.05
    %v60 = vmul.f32 %v28, 0.05
    %v61 = vmul.f32 %v29, 0.05
    %v62 = vmul.f32 %v30, 0.05
    %v63 = vmul.f32 %v31, 0.05
    %v64 = vmul.f32 %v32, 0.05
    %v65 = vmul.f32 %v33, 0.05
    %v66 = vld [vmem:[%s0] sm:$0xff]
    %v67 = vld [vmem:[%s0 + $0x8] sm:$0xff]
    %v68 = vld [vmem:[%s0 + $0x10] sm:$0xff]
    %v69 = vld [vmem:[%s0 + $0x18] sm:$0xff]
    %v70 = vld [vmem:[%s0 + $0x20] sm:$0xff]
    %v71 = vld [vmem:[%s0 + $0x28] sm:$0xff]
    %v72 = vld [vmem:[%s0 + $0x30] sm:$0xff]
    %v73 = vld [vmem:[%s0 + $0x38] sm:$0xff]
    %vm74 = vcmask 523264
    %v76 = vsel %vm74, %v66, 0
    %v79 = vsel %vm74, %v67, 0
    %v82 = vsel %vm74, %v68, 0
    %v85 = vsel %vm74, %v69, 0
    %v88 = vsel %vm74, %v70, 0
    %v91 = vsel %vm74, %v71, 0
    %v94 = vsel %vm74, %v72, 0
    %v97 = vsel %vm74, %v73, 0
    %v99 = vand.u32 %v19, 4294901760
    %100 = vmatprep.subr.mxu0 %v99
    %v101 = vand.u32 %v18, 4294901760
    %102 = vmatpush1.msra.mxu0 %v101
    %v103 = vand.u32 %v21, 4294901760
    %104 = vmatprep.subr.mxu0 %v103
    %v105 = vand.u32 %v20, 4294901760
    %106 = vmatpush1.msra.mxu0 %v105
    %v107 = vand.u32 %v23, 4294901760
    %108 = vmatprep.subr.mxu0 %v107
    %v109 = vand.u32 %v22, 4294901760
    %110 = vmatpush1.msra.mxu0 %v109
    %v111 = vand.u32 %v25, 4294901760
    %112 = vmatprep.subr.mxu0 %v111
    %v113 = vand.u32 %v24, 4294901760
    %114 = vmatpush1.msra.mxu0 %v113
    %v115 = vand.u32 %v27, 4294901760
    %116 = vmatprep.subr.mxu0 %v115
    %v117 = vand.u32 %v26, 4294901760
    %118 = vmatpush1.msra.mxu0 %v117
    %v119 = vand.u32 %v29, 4294901760
    %120 = vmatprep.subr.mxu0 %v119
    %v121 = vand.u32 %v28, 4294901760
    %122 = vmatpush1.msra.mxu0 %v121
    %v123 = vand.u32 %v31, 4294901760
    %124 = vmatprep.subr.mxu0 %v123
    %v125 = vand.u32 %v30, 4294901760
    %126 = vmatpush1.msra.mxu0 %v125
    %v127 = vand.u32 %v33, 4294901760
    %128 = vmatprep.subr.mxu0 %v127
    %v129 = vand.u32 %v32, 4294901760
    %130 = vmatpush1.msra.mxu0 %v129
    %131 = vmatprep.subr.mxu0 0.0
    %132 = vmatpush1.msra.mxu0 0.0
    %133 = vmatprep.subr.mxu0 0.0
    %134 = vmatpush1.msra.mxu0 0.0
    %135 = vmatprep.subr.mxu0 0.0
    %136 = vmatpush1.msra.mxu0 0.0
    %137 = vmatprep.subr.mxu0 0.0
    %138 = vmatpush1.msra.mxu0 0.0
    %139 = vmatprep.subr.mxu0 0.0
    %140 = vmatpush1.msra.mxu0 0.0
    %141 = vmatprep.subr.mxu0 0.0
    %142 = vmatpush1.msra.mxu0 0.0
    %143 = vmatprep.subr.mxu0 0.0
    %144 = vmatpush1.msra.mxu0 0.0
    %145 = vmatprep.subr.mxu0 0.0
    %146 = vmatpush1.msra.mxu0 0.0
    %147 = vmatprep.subr.mxu0 0.0
    %148 = vmatpush1.msra.mxu0 0.0
    %149 = vmatprep.subr.mxu0 0.0
    %150 = vmatpush1.msra.mxu0 0.0
    %151 = vmatprep.subr.mxu0 0.0
    %152 = vmatpush1.msra.mxu0 0.0
    %153 = vmatprep.subr.mxu0 0.0
    %154 = vmatpush1.msra.mxu0 0.0
    %155 = vmatprep.subr.mxu0 0.0
    %156 = vmatpush1.msra.mxu0 0.0
    %157 = vmatprep.subr.mxu0 0.0
    %158 = vmatpush1.msra.mxu0 0.0
    %159 = vmatprep.subr.mxu0 0.0
    %160 = vmatpush1.msra.mxu0 0.0
    %161 = vmatprep.subr.mxu0 0.0
    %162 = vmatpush1.msra.mxu0 0.0
    %163 = vmatprep.subr.mxu0 0.0
    %164 = vmatpush1.msra.mxu0 0.0
    %165 = vmatprep.subr.mxu0 0.0
    %166 = vmatpush1.msra.mxu0 0.0
    %167 = vmatprep.subr.mxu0 0.0
    %168 = vmatpush1.msra.mxu0 0.0
    %169 = vmatprep.subr.mxu0 0.0
    %170 = vmatpush1.msra.mxu0 0.0
    %171 = vmatprep.subr.mxu0 0.0
    %172 = vmatpush1.msra.mxu0 0.0
    %173 = vmatprep.subr.mxu0 0.0
    %174 = vmatpush1.msra.mxu0 0.0
    %175 = vmatprep.subr.mxu0 0.0
    %176 = vmatpush1.msra.mxu0 0.0
    %177 = vmatprep.subr.mxu0 0.0
    %178 = vmatpush1.msra.mxu0 0.0
    %179 = vmatprep.mubr.f32.mxu0 0.0
    %v180 = vand.u32 %v76, 4294901760
    %v181 = vsub.f32 %v76, %v180
    %v182 = vand.u32 %v181, 4294901760
    %v183 = vsub.f32 %v181, %v182
    %v184 = vand.u32 %v183, 4294901760
    %185 = vmatmul.mubr.f32.gmra.mrb[0].mxu0 %v184
    %v186 = vpop.f32.mrb[0].mxu0
    %v187 = vadd.f32 0.0, %v186
    %v188 = vpop.f32.mrb[0].mxu0
    %v189 = vadd.f32 0.0, %v188
    %190 = vmatprep.mubr.f32.mxu0 0.0
    %v191 = vand.u32 %v79, 4294901760
    %v192 = vsub.f32 %v79, %v191
    %v193 = vand.u32 %v192, 4294901760
    %v194 = vsub.f32 %v192, %v193
    %v195 = vand.u32 %v194, 4294901760
    %196 = vmatmul.mubr.f32.gmra.mrb[0].mxu0 %v195
    %v197 = vpop.f32.mrb[0].mxu0
    %v198 = vadd.f32 0.0, %v197
    %v199 = vpop.f32.mrb[0].mxu0
    %v200 = vadd.f32 0.0, %v199
    %201 = vmatprep.mubr.f32.mxu0 0.0
    %v202 = vand.u32 %v82, 4294901760
    %v203 = vsub.f32 %v82, %v202
    %v204 = vand.u32 %v203, 4294901760
    %v205 = vsub.f32 %v203, %v204
    %v206 = vand.u32 %v205, 4294901760
    %207 = vmatmul.mubr.f32.gmra.mrb[0].mxu0 %v206
    %v208 = vpop.f32.mrb[0].mxu0
    %v209 = vadd.f32 0.0, %v208
    %v210 = vpop.f32.mrb[0].mxu0
    %v211 = vadd.f32 0.0, %v210
    %212 = vmatprep.mubr.f32.mxu0 0.0
    %v213 = vand.u32 %v85, 4294901760
    %v214 = vsub.f32 %v85, %v213
    %v215 = vand.u32 %v214, 4294901760
    %v216 = vsub.f32 %v214, %v215
    %v217 = vand.u32 %v216, 4294901760
    %218 = vmatmul.mubr.f32.gmra.mrb[0].mxu0 %v217
    %v219 = vpop.f32.mrb[0].mxu0
    %v220 = vadd.f32 0.0, %v219
    %v221 = vpop.f32.mrb[0].mxu0
    %v222 = vadd.f32 0.0, %v221
    %223 = vmatprep.mubr.f32.mxu0 0.0
    %v224 = vand.u32 %v88, 4294901760
    %v225 = vsub.f32 %v88, %v224
    %v226 = vand.u32 %v225, 4294901760
    %v227 = vsub.f32 %v225, %v226
    %v228 = vand.u32 %v227, 4294901760
    %229 = vmatmul.mubr.f32.gmra.mrb[0].mxu0 %v228
    %v230 = vpop.f32.mrb[0].mxu0
    %v231 = vadd.f32 0.0, %v230
    %v232 = vpop.f32.mrb[0].mxu0
    %v233 = vadd.f32 0.0, %v232
    %234 = vmatprep.mubr.f32.mxu0 0.0
    %v235 = vand.u32 %v91, 4294901760
    %v236 = vsub.f32 %v91, %v235
    %v237 = vand.u32 %v236, 4294901760
    %v238 = vsub.f32 %v236, %v237
    %v239 = vand.u32 %v238, 4294901760
    %240 = vmatmul.mubr.f32.gmra.mrb[0].mxu0 %v239
    %v241 = vpop.f32.mrb[0].mxu0
    %v242 = vadd.f32 0.0, %v241
    %v243 = vpop.f32.mrb[0].mxu0
    %v244 = vadd.f32 0.0, %v243
    %245 = vmatprep.mubr.f32.mxu0 0.0
    %v246 = vand.u32 %v94, 4294901760
    %v247 = vsub.f32 %v94, %v246
    %v248 = vand.u32 %v247, 4294901760
    %v249 = vsub.f32 %v247, %v248
    %v250 = vand.u32 %v249, 4294901760
    %251 = vmatmul.mubr.f32.gmra.mrb[0].mxu0 %v250
    %v252 = vpop.f32.mrb[0].mxu0
    %v253 = vadd.f32 0.0, %v252
    %v254 = vpop.f32.mrb[0].mxu0
    %v255 = vadd.f32 0.0, %v254
    %256 = vmatprep.mubr.f32.mxu0 0.0
    %v257 = vand.u32 %v97, 4294901760
    %v258 = vsub.f32 %v97, %v257
    %v259 = vand.u32 %v258, 4294901760
    %v260 = vsub.f32 %v258, %v259
    %v261 = vand.u32 %v260, 4294901760
    %262 = vmatmul.mubr.f32.gmra.mrb[0].mxu0 %v261
    %v263 = vpop.f32.mrb[0].mxu0
    %v264 = vadd.f32 0.0, %v263
    %v265 = vpop.f32.mrb[0].mxu0
    %v266 = vadd.f32 0.0, %v265
    %267 = vdwg.mxu0
    %v268 = vand.u32 %v19, 4294901760
    %v269 = vsub.f32 %v19, %v268
    %v270 = vand.u32 %v269, 4294901760
    %v271 = vsub.f32 %v269, %v270
    %v272 = vand.u32 %v271, 4294901760
    %273 = vmatprep.subr.mxu0 %v272
    %v274 = vand.u32 %v18, 4294901760
    %v275 = vsub.f32 %v18, %v274
    %v276 = vand.u32 %v275, 4294901760
    %v277 = vsub.f32 %v275, %v276
    %v278 = vand.u32 %v277, 4294901760
    %279 = vmatpush1.msra.mxu0 %v278
    %v280 = vand.u32 %v21, 4294901760
    %v281 = vsub.f32 %v21, %v280
    %v282 = vand.u32 %v281, 4294901760
    %v283 = vsub.f32 %v281, %v282
    %v284 = vand.u32 %v283, 4294901760
    %285 = vmatprep.subr.mxu0 %v284
    %v286 = vand.u32 %v20, 4294901760
    %v287 = vsub.f32 %v20, %v286
    %v288 = vand.u32 %v287, 4294901760
    %v289 = vsub.f32 %v287, %v288
    %v290 = vand.u32 %v289, 4294901760
    %291 = vmatpush1.msra.mxu0 %v290
    %v292 = vand.u32 %v23, 4294901760
    %v293 = vsub.f32 %v23, %v292
    %v294 = vand.u32 %v293, 4294901760
    %v295 = vsub.f32 %v293, %v294
    %v296 = vand.u32 %v295, 4294901760
    %297 = vmatprep.subr.mxu0 %v296
    %v298 = vand.u32 %v22, 4294901760
    %v299 = vsub.f32 %v22, %v298
    %v300 = vand.u32 %v299, 4294901760
    %v301 = vsub.f32 %v299, %v300
    %v302 = vand.u32 %v301, 4294901760
    %303 = vmatpush1.msra.mxu0 %v302
    %v304 = vand.u32 %v25, 4294901760
    %v305 = vsub.f32 %v25, %v304
    %v306 = vand.u32 %v305, 4294901760
    %v307 = vsub.f32 %v305, %v306
    %v308 = vand.u32 %v307, 4294901760
    %309 = vmatprep.subr.mxu0 %v308
    %v310 = vand.u32 %v24, 4294901760
    %v311 = vsub.f32 %v24, %v310
    %v312 = vand.u32 %v311, 4294901760
    %v313 = vsub.f32 %v311, %v312
    %v314 = vand.u32 %v313, 4294901760
    %315 = vmatpush1.msra.mxu0 %v314
    %v316 = vand.u32 %v27, 4294901760
    %v317 = vsub.f32 %v27, %v316
    %v318 = vand.u32 %v317, 4294901760
    %v319 = vsub.f32 %v317, %v318
    %v320 = vand.u32 %v319, 4294901760
    %321 = vmatprep.subr.mxu0 %v320
    %v322 = vand.u32 %v26, 4294901760
    %v323 = vsub.f32 %v26, %v322
    %v324 = vand.u32 %v323, 4294901760
    %v325 = vsub.f32 %v323, %v324
    %v326 = vand.u32 %v325, 4294901760
    %327 = vmatpush1.msra.mxu0 %v326
    %v328 = vand.u32 %v29, 4294901760
    %v329 = vsub.f32 %v29, %v328
    %v330 = vand.u32 %v329, 4294901760
    %v331 = vsub.f32 %v329, %v330
    %v332 = vand.u32 %v331, 4294901760
    %333 = vmatprep.subr.mxu0 %v332
    %v334 = vand.u32 %v28, 4294901760
    %v335 = vsub.f32 %v28, %v334
    %v336 = vand.u32 %v335, 4294901760
    %v337 = vsub.f32 %v335, %v336
    %v338 = vand.u32 %v337, 4294901760
    %339 = vmatpush1.msra.mxu0 %v338
    %v340 = vand.u32 %v31, 4294901760
    %v341 = vsub.f32 %v31, %v340
    %v342 = vand.u32 %v341, 4294901760
    %v343 = vsub.f32 %v341, %v342
    %v344 = vand.u32 %v343, 4294901760
    %345 = vmatprep.subr.mxu0 %v344
    %v346 = vand.u32 %v30, 4294901760
    %v347 = vsub.f32 %v30, %v346
    %v348 = vand.u32 %v347, 4294901760
    %v349 = vsub.f32 %v347, %v348
    %v350 = vand.u32 %v349, 4294901760
    %351 = vmatpush1.msra.mxu0 %v350
    %v352 = vand.u32 %v33, 4294901760
    %v353 = vsub.f32 %v33, %v352
    %v354 = vand.u32 %v353, 4294901760
    %v355 = vsub.f32 %v353, %v354
    %v356 = vand.u32 %v355, 4294901760
    %357 = vmatprep.subr.mxu0 %v356
    %v358 = vand.u32 %v32, 4294901760
    %v359 = vsub.f32 %v32, %v358
    %v360 = vand.u32 %v359, 4294901760
    %v361 = vsub.f32 %v359, %v360
    %v362 = vand.u32 %v361, 4294901760
    %363 = vmatpush1.msra.mxu0 %v362
    %364 = vmatprep.subr.mxu0 0.0
    %365 = vmatpush1.msra.mxu0 0.0
    %366 = vmatprep.subr.mxu0 0.0
    %367 = vmatpush1.msra.mxu0 0.0
    %368 = vmatprep.subr.mxu0 0.0
    %369 = vmatpush1.msra.mxu0 0.0
    %370 = vmatprep.subr.mxu0 0.0
    %371 = vmatpush1.msra.mxu0 0.0
    %372 = vmatprep.subr.mxu0 0.0
    %373 = vmatpush1.msra.mxu0 0.0
    %374 = vmatprep.subr.mxu0 0.0
    %375 = vmatpush1.msra.mxu0 0.0
    %376 = vmatprep.subr.mxu0 0.0
    %377 = vmatpush1.msra.mxu0 0.0
    %378 = vmatprep.subr.mxu0 0.0
    %379 = vmatpush1.msra.mxu0 0.0
    %380 = vmatprep.subr.mxu0 0.0
    %381 = vmatpush1.msra.mxu0 0.0
    %382 = vmatprep.subr.mxu0 0.0
    %383 = vmatpush1.msra.mxu0 0.0
    %384 = vmatprep.subr.mxu0 0.0
    %385 = vmatpush1.msra.mxu0 0.0
    %386 = vmatprep.subr.mxu0 0.0
    %387 = vmatpush1.msra.mxu0 0.0
    %388 = vmatprep.subr.mxu0 0.0
    %389 = vmatpush1.msra.mxu0 0.0
    %390 = vmatprep.subr.mxu0 0.0
    %391 = vmatpush1.msra.mxu0 0.0
    %392 = vmatprep.subr.mxu0 0.0
    %393 = vmatpush1.msra.mxu0 0.0
    %394 = vmatprep.subr.mxu0 0.0
    %395 = vmatpush1.msra.mxu0 0.0
    %396 = vmatprep.subr.mxu0 0.0
    %397 = vmatpush1.msra.mxu0 0.0
    %398 = vmatprep.subr.mxu0 0.0
    %399 = vmatpush1.msra.mxu0 0.0
    %400 = vmatprep.subr.mxu0 0.0
    %401 = vmatpush1.msra.mxu0 0.0
    %402 = vmatprep.subr.mxu0 0.0
    %403 = vmatpush1.msra.mxu0 0.0
    %404 = vmatprep.subr.mxu0 0.0
    %405 = vmatpush1.msra.mxu0 0.0
    %406 = vmatprep.subr.mxu0 0.0
    %407 = vmatpush1.msra.mxu0 0.0
    %408 = vmatprep.subr.mxu0 0.0
    %409 = vmatpush1.msra.mxu0 0.0
    %410 = vmatprep.subr.mxu0 0.0
    %411 = vmatpush1.msra.mxu0 0.0
    %412 = vmatprep.mubr.f32.mxu0 0.0
    %v413 = vand.u32 %v76, 4294901760
    %414 = vmatmul.mubr.f32.gmra.mrb[0].mxu0 %v413
    %v415 = vpop.f32.mrb[0].mxu0
    %v416 = vadd.f32 %v187, %v415
    %v417 = vpop.f32.mrb[0].mxu0
    %v418 = vadd.f32 %v189, %v417
    %419 = vmatprep.mubr.f32.mxu0 0.0
    %v420 = vand.u32 %v79, 4294901760
    %421 = vmatmul.mubr.f32.gmra.mrb[0].mxu0 %v420
    %v422 = vpop.f32.mrb[0].mxu0
    %v423 = vadd.f32 %v198, %v422
    %v424 = vpop.f32.mrb[0].mxu0
    %v425 = vadd.f32 %v200, %v424
    %426 = vmatprep.mubr.f32.mxu0 0.0
    %v427 = vand.u32 %v82, 4294901760
    %428 = vmatmul.mubr.f32.gmra.mrb[0].mxu0 %v427
    %v429 = vpop.f32.mrb[0].mxu0
    %v430 = vadd.f32 %v209, %v429
    %v431 = vpop.f32.mrb[0].mxu0
    %v432 = vadd.f32 %v211, %v431
    %433 = vmatprep.mubr.f32.mxu0 0.0
    %v434 = vand.u32 %v85, 4294901760
    %435 = vmatmul.mubr.f32.gmra.mrb[0].mxu0 %v434
    %v436 = vpop.f32.mrb[0].mxu0
    %v437 = vadd.f32 %v220, %v436
    %v438 = vpop.f32.mrb[0].mxu0
    %v439 = vadd.f32 %v222, %v438
    %440 = vmatprep.mubr.f32.mxu0 0.0
    %v441 = vand.u32 %v88, 4294901760
    %442 = vmatmul.mubr.f32.gmra.mrb[0].mxu0 %v441
    %v443 = vpop.f32.mrb[0].mxu0
    %v444 = vadd.f32 %v231, %v443
    %v445 = vpop.f32.mrb[0].mxu0
    %v446 = vadd.f32 %v233, %v445
    %447 = vmatprep.mubr.f32.mxu0 0.0
    %v448 = vand.u32 %v91, 4294901760
    %449 = vmatmul.mubr.f32.gmra.mrb[0].mxu0 %v448
    %v450 = vpop.f32.mrb[0].mxu0
    %v451 = vadd.f32 %v242, %v450
    %v452 = vpop.f32.mrb[0].mxu0
    %v453 = vadd.f32 %v244, %v452
    %454 = vmatprep.mubr.f32.mxu0 0.0
    %v455 = vand.u32 %v94, 4294901760
    %456 = vmatmul.mubr.f32.gmra.mrb[0].mxu0 %v455
    %v457 = vpop.f32.mrb[0].mxu0
    %v458 = vadd.f32 %v253, %v457
    %v459 = vpop.f32.mrb[0].mxu0
    %v460 = vadd.f32 %v255, %v459
    %461 = vmatprep.mubr.f32.mxu0 0.0
    %v462 = vand.u32 %v97, 4294901760
    %463 = vmatmul.mubr.f32.gmra.mrb[0].mxu0 %v462
    %v464 = vpop.f32.mrb[0].mxu0
    %v465 = vadd.f32 %v264, %v464
    %v466 = vpop.f32.mrb[0].mxu0
    %v467 = vadd.f32 %v266, %v466
    %468 = vdwg.mxu0
    %v469 = vand.u32 %v19, 4294901760
    %v470 = vsub.f32 %v19, %v469
    %471 = vmatprep.subr.mxu0 %v470
    %v472 = vand.u32 %v18, 4294901760
    %v473 = vsub.f32 %v18, %v472
    %474 = vmatpush1.msra.mxu0 %v473
    %v475 = vand.u32 %v21, 4294901760
    %v476 = vsub.f32 %v21, %v475
    %477 = vmatprep.subr.mxu0 %v476
    %v478 = vand.u32 %v20, 4294901760
    %v479 = vsub.f32 %v20, %v478
    %480 = vmatpush1.msra.mxu0 %v479
    %v481 = vand.u32 %v23, 4294901760
    %v482 = vsub.f32 %v23, %v481
    %483 = vmatprep.subr.mxu0 %v482
    %v484 = vand.u32 %v22, 4294901760
    %v485 = vsub.f32 %v22, %v484
    %486 = vmatpush1.msra.mxu0 %v485
    %v487 = vand.u32 %v25, 4294901760
    %v488 = vsub.f32 %v25, %v487
    %489 = vmatprep.subr.mxu0 %v488
    %v490 = vand.u32 %v24, 4294901760
    %v491 = vsub.f32 %v24, %v490
    %492 = vmatpush1.msra.mxu0 %v491
    %v493 = vand.u32 %v27, 4294901760
    %v494 = vsub.f32 %v27, %v493
    %495 = vmatprep.subr.mxu0 %v494
    %v496 = vand.u32 %v26, 4294901760
    %v497 = vsub.f32 %v26, %v496
    %498 = vmatpush1.msra.mxu0 %v497
    %v499 = vand.u32 %v29, 4294901760
    %v500 = vsub.f32 %v29, %v499
    %501 = vmatprep.subr.mxu0 %v500
    %v502 = vand.u32 %v28, 4294901760
    %v503 = vsub.f32 %v28, %v502
    %504 = vmatpush1.msra.mxu0 %v503
    %v505 = vand.u32 %v31, 4294901760
    %v506 = vsub.f32 %v31, %v505
    %507 = vmatprep.subr.mxu0 %v506
    %v508 = vand.u32 %v30, 4294901760
    %v509 = vsub.f32 %v30, %v508
    %510 = vmatpush1.msra.mxu0 %v509
    %v511 = vand.u32 %v33, 4294901760
    %v512 = vsub.f32 %v33, %v511
    %513 = vmatprep.subr.mxu0 %v512
    %v514 = vand.u32 %v32, 4294901760
    %v515 = vsub.f32 %v32, %v514
    %516 = vmatpush1.msra.mxu0 %v515
    %517 = vmatprep.subr.mxu0 0.0
    %518 = vmatpush1.msra.mxu0 0.0
    %519 = vmatprep.subr.mxu0 0.0
    %520 = vmatpush1.msra.mxu0 0.0
    %521 = vmatprep.subr.mxu0 0.0
    %522 = vmatpush1.msra.mxu0 0.0
    %523 = vmatprep.subr.mxu0 0.0
    %524 = vmatpush1.msra.mxu0 0.0
    %525 = vmatprep.subr.mxu0 0.0
    %526 = vmatpush1.msra.mxu0 0.0
    %527 = vmatprep.subr.mxu0 0.0
    %528 = vmatpush1.msra.mxu0 0.0
    %529 = vmatprep.subr.mxu0 0.0
    %530 = vmatpush1.msra.mxu0 0.0
    %531 = vmatprep.subr.mxu0 0.0
    %532 = vmatpush1.msra.mxu0 0.0
    %533 = vmatprep.subr.mxu0 0.0
    %534 = vmatpush1.msra.mxu0 0.0
    %535 = vmatprep.subr.mxu0 0.0
    %536 = vmatpush1.msra.mxu0 0.0
    %537 = vmatprep.subr.mxu0 0.0
    %538 = vmatpush1.msra.mxu0 0.0
    %539 = vmatprep.subr.mxu0 0.0
    %540 = vmatpush1.msra.mxu0 0.0
    %541 = vmatprep.subr.mxu0 0.0
    %542 = vmatpush1.msra.mxu0 0.0
    %543 = vmatprep.subr.mxu0 0.0
    %544 = vmatpush1.msra.mxu0 0.0
    %545 = vmatprep.subr.mxu0 0.0
    %546 = vmatpush1.msra.mxu0 0.0
    %547 = vmatprep.subr.mxu0 0.0
    %548 = vmatpush1.msra.mxu0 0.0
    %549 = vmatprep.subr.mxu0 0.0
    %550 = vmatpush1.msra.mxu0 0.0
    %551 = vmatprep.subr.mxu0 0.0
    %552 = vmatpush1.msra.mxu0 0.0
    %553 = vmatprep.subr.mxu0 0.0
    %554 = vmatpush1.msra.mxu0 0.0
    %555 = vmatprep.subr.mxu0 0.0
    %556 = vmatpush1.msra.mxu0 0.0
    %557 = vmatprep.subr.mxu0 0.0
    %558 = vmatpush1.msra.mxu0 0.0
    %559 = vmatprep.subr.mxu0 0.0
    %560 = vmatpush1.msra.mxu0 0.0
    %561 = vmatprep.subr.mxu0 0.0
    %562 = vmatpush1.msra.mxu0 0.0
    %563 = vmatprep.subr.mxu0 0.0
    %564 = vmatpush1.msra.mxu0 0.0
    %565 = vmatprep.mubr.f32.mxu0 0.0
    %v566 = vand.u32 %v76, 4294901760
    %v567 = vsub.f32 %v76, %v566
    %568 = vmatmul.mubr.f32.gmra.mrb[0].mxu0 %v567
    %v569 = vpop.f32.mrb[0].mxu0
    %v570 = vadd.f32 %v416, %v569
    %v571 = vpop.f32.mrb[0].mxu0
    %v572 = vadd.f32 %v418, %v571
    %573 = vmatprep.mubr.f32.mxu0 0.0
    %v574 = vand.u32 %v79, 4294901760
    %v575 = vsub.f32 %v79, %v574
    %576 = vmatmul.mubr.f32.gmra.mrb[0].mxu0 %v575
    %v577 = vpop.f32.mrb[0].mxu0
    %v578 = vadd.f32 %v423, %v577
    %v579 = vpop.f32.mrb[0].mxu0
    %v580 = vadd.f32 %v425, %v579
    %581 = vmatprep.mubr.f32.mxu0 0.0
    %v582 = vand.u32 %v82, 4294901760
    %v583 = vsub.f32 %v82, %v582
    %584 = vmatmul.mubr.f32.gmra.mrb[0].mxu0 %v583
    %v585 = vpop.f32.mrb[0].mxu0
    %v586 = vadd.f32 %v430, %v585
    %v587 = vpop.f32.mrb[0].mxu0
    %v588 = vadd.f32 %v432, %v587
    %589 = vmatprep.mubr.f32.mxu0 0.0
    %v590 = vand.u32 %v85, 4294901760
    %v591 = vsub.f32 %v85, %v590
    %592 = vmatmul.mubr.f32.gmra.mrb[0].mxu0 %v591
    %v593 = vpop.f32.mrb[0].mxu0
    %v594 = vadd.f32 %v437, %v593
    %v595 = vpop.f32.mrb[0].mxu0
    %v596 = vadd.f32 %v439, %v595
    %597 = vmatprep.mubr.f32.mxu0 0.0
    %v598 = vand.u32 %v88, 4294901760
    %v599 = vsub.f32 %v88, %v598
    %600 = vmatmul.mubr.f32.gmra.mrb[0].mxu0 %v599
    %v601 = vpop.f32.mrb[0].mxu0
    %v602 = vadd.f32 %v444, %v601
    %v603 = vpop.f32.mrb[0].mxu0
    %v604 = vadd.f32 %v446, %v603
    %605 = vmatprep.mubr.f32.mxu0 0.0
    %v606 = vand.u32 %v91, 4294901760
    %v607 = vsub.f32 %v91, %v606
    %608 = vmatmul.mubr.f32.gmra.mrb[0].mxu0 %v607
    %v609 = vpop.f32.mrb[0].mxu0
    %v610 = vadd.f32 %v451, %v609
    %v611 = vpop.f32.mrb[0].mxu0
    %v612 = vadd.f32 %v453, %v611
    %613 = vmatprep.mubr.f32.mxu0 0.0
    %v614 = vand.u32 %v94, 4294901760
    %v615 = vsub.f32 %v94, %v614
    %616 = vmatmul.mubr.f32.gmra.mrb[0].mxu0 %v615
    %v617 = vpop.f32.mrb[0].mxu0
    %v618 = vadd.f32 %v458, %v617
    %v619 = vpop.f32.mrb[0].mxu0
    %v620 = vadd.f32 %v460, %v619
    %621 = vmatprep.mubr.f32.mxu0 0.0
    %v622 = vand.u32 %v97, 4294901760
    %v623 = vsub.f32 %v97, %v622
    %624 = vmatmul.mubr.f32.gmra.mrb[0].mxu0 %v623
    %v625 = vpop.f32.mrb[0].mxu0
    %v626 = vadd.f32 %v465, %v625
    %v627 = vpop.f32.mrb[0].mxu0
    %v628 = vadd.f32 %v467, %v627
    %629 = vdwg.mxu0
    %v630 = vand.u32 %v19, 4294901760
    %631 = vmatprep.subr.mxu0 %v630
    %v632 = vand.u32 %v18, 4294901760
    %633 = vmatpush1.msra.mxu0 %v632
    %v634 = vand.u32 %v21, 4294901760
    %635 = vmatprep.subr.mxu0 %v634
    %v636 = vand.u32 %v20, 4294901760
    %637 = vmatpush1.msra.mxu0 %v636
    %v638 = vand.u32 %v23, 4294901760
    %639 = vmatprep.subr.mxu0 %v638
    %v640 = vand.u32 %v22, 4294901760
    %641 = vmatpush1.msra.mxu0 %v640
    %v642 = vand.u32 %v25, 4294901760
    %643 = vmatprep.subr.mxu0 %v642
    %v644 = vand.u32 %v24, 4294901760
    %645 = vmatpush1.msra.mxu0 %v644
    %v646 = vand.u32 %v27, 4294901760
    %647 = vmatprep.subr.mxu0 %v646
    %v648 = vand.u32 %v26, 4294901760
    %649 = vmatpush1.msra.mxu0 %v648
    %v650 = vand.u32 %v29, 4294901760
    %651 = vmatprep.subr.mxu0 %v650
    %v652 = vand.u32 %v28, 4294901760
    %653 = vmatpush1.msra.mxu0 %v652
    %v654 = vand.u32 %v31, 4294901760
    %655 = vmatprep.subr.mxu0 %v654
    %v656 = vand.u32 %v30, 4294901760
    %657 = vmatpush1.msra.mxu0 %v656
    %v658 = vand.u32 %v33, 4294901760
    %659 = vmatprep.subr.mxu0 %v658
    %v660 = vand.u32 %v32, 4294901760
    %661 = vmatpush1.msra.mxu0 %v660
    %662 = vmatprep.subr.mxu0 0.0
    %663 = vmatpush1.msra.mxu0 0.0
    %664 = vmatprep.subr.mxu0 0.0
    %665 = vmatpush1.msra.mxu0 0.0
    %666 = vmatprep.subr.mxu0 0.0
    %667 = vmatpush1.msra.mxu0 0.0
    %668 = vmatprep.subr.mxu0 0.0
    %669 = vmatpush1.msra.mxu0 0.0
    %670 = vmatprep.subr.mxu0 0.0
    %671 = vmatpush1.msra.mxu0 0.0
    %672 = vmatprep.subr.mxu0 0.0
    %673 = vmatpush1.msra.mxu0 0.0
    %674 = vmatprep.subr.mxu0 0.0
    %675 = vmatpush1.msra.mxu0 0.0
    %676 = vmatprep.subr.mxu0 0.0
    %677 = vmatpush1.msra.mxu0 0.0
    %678 = vmatprep.subr.mxu0 0.0
    %679 = vmatpush1.msra.mxu0 0.0
    %680 = vmatprep.subr.mxu0 0.0
    %681 = vmatpush1.msra.mxu0 0.0
    %682 = vmatprep.subr.mxu0 0.0
    %683 = vmatpush1.msra.mxu0 0.0
    %684 = vmatprep.subr.mxu0 0.0
    %685 = vmatpush1.msra.mxu0 0.0
    %686 = vmatprep.subr.mxu0 0.0
    %687 = vmatpush1.msra.mxu0 0.0
    %688 = vmatprep.subr.mxu0 0.0
    %689 = vmatpush1.msra.mxu0 0.0
    %690 = vmatprep.subr.mxu0 0.0
    %691 = vmatpush1.msra.mxu0 0.0
    %692 = vmatprep.subr.mxu0 0.0
    %693 = vmatpush1.msra.mxu0 0.0
    %694 = vmatprep.subr.mxu0 0.0
    %695 = vmatpush1.msra.mxu0 0.0
    %696 = vmatprep.subr.mxu0 0.0
    %697 = vmatpush1.msra.mxu0 0.0
    %698 = vmatprep.subr.mxu0 0.0
    %699 = vmatpush1.msra.mxu0 0.0
    %700 = vmatprep.subr.mxu0 0.0
    %701 = vmatpush1.msra.mxu0 0.0
    %702 = vmatprep.subr.mxu0 0.0
    %703 = vmatpush1.msra.mxu0 0.0
    %704 = vmatprep.subr.mxu0 0.0
    %705 = vmatpush1.msra.mxu0 0.0
    %706 = vmatprep.subr.mxu0 0.0
    %707 = vmatpush1.msra.mxu0 0.0
    %708 = vmatprep.subr.mxu0 0.0
    %709 = vmatpush1.msra.mxu0 0.0
    %710 = vmatprep.mubr.f32.mxu0 0.0
    %v711 = vand.u32 %v76, 4294901760
    %v712 = vsub.f32 %v76, %v711
    %v713 = vand.u32 %v712, 4294901760
    %714 = vmatmul.mubr.f32.gmra.mrb[0].mxu0 %v713
    %v715 = vpop.f32.mrb[0].mxu0
    %v716 = vadd.f32 %v570, %v715
    %v717 = vpop.f32.mrb[0].mxu0
    %v718 = vadd.f32 %v572, %v717
    %719 = vmatprep.mubr.f32.mxu0 0.0
    %v720 = vand.u32 %v79, 4294901760
    %v721 = vsub.f32 %v79, %v720
    %v722 = vand.u32 %v721, 4294901760
    %723 = vmatmul.mubr.f32.gmra.mrb[0].mxu0 %v722
    %v724 = vpop.f32.mrb[0].mxu0
    %v725 = vadd.f32 %v578, %v724
    %v726 = vpop.f32.mrb[0].mxu0
    %v727 = vadd.f32 %v580, %v726
    %728 = vmatprep.mubr.f32.mxu0 0.0
    %v729 = vand.u32 %v82, 4294901760
    %v730 = vsub.f32 %v82, %v729
    %v731 = vand.u32 %v730, 4294901760
    %732 = vmatmul.mubr.f32.gmra.mrb[0].mxu0 %v731
    %v733 = vpop.f32.mrb[0].mxu0
    %v734 = vadd.f32 %v586, %v733
    %v735 = vpop.f32.mrb[0].mxu0
    %v736 = vadd.f32 %v588, %v735
    %737 = vmatprep.mubr.f32.mxu0 0.0
    %v738 = vand.u32 %v85, 4294901760
    %v739 = vsub.f32 %v85, %v738
    %v740 = vand.u32 %v739, 4294901760
    %741 = vmatmul.mubr.f32.gmra.mrb[0].mxu0 %v740
    %v742 = vpop.f32.mrb[0].mxu0
    %v743 = vadd.f32 %v594, %v742
    %v744 = vpop.f32.mrb[0].mxu0
    %v745 = vadd.f32 %v596, %v744
    %746 = vmatprep.mubr.f32.mxu0 0.0
    %v747 = vand.u32 %v88, 4294901760
    %v748 = vsub.f32 %v88, %v747
    %v749 = vand.u32 %v748, 4294901760
    %750 = vmatmul.mubr.f32.gmra.mrb[0].mxu0 %v749
    %v751 = vpop.f32.mrb[0].mxu0
    %v752 = vadd.f32 %v602, %v751
    %v753 = vpop.f32.mrb[0].mxu0
    %v754 = vadd.f32 %v604, %v753
    %755 = vmatprep.mubr.f32.mxu0 0.0
    %v756 = vand.u32 %v91, 4294901760
    %v757 = vsub.f32 %v91, %v756
    %v758 = vand.u32 %v757, 4294901760
    %759 = vmatmul.mubr.f32.gmra.mrb[0].mxu0 %v758
    %v760 = vpop.f32.mrb[0].mxu0
    %v761 = vadd.f32 %v610, %v760
    %v762 = vpop.f32.mrb[0].mxu0
    %v763 = vadd.f32 %v612, %v762
    %764 = vmatprep.mubr.f32.mxu0 0.0
    %v765 = vand.u32 %v94, 4294901760
    %v766 = vsub.f32 %v94, %v765
    %v767 = vand.u32 %v766, 4294901760
    %768 = vmatmul.mubr.f32.gmra.mrb[0].mxu0 %v767
    %v769 = vpop.f32.mrb[0].mxu0
    %v770 = vadd.f32 %v618, %v769
    %v771 = vpop.f32.mrb[0].mxu0
    %v772 = vadd.f32 %v620, %v771
    %773 = vmatprep.mubr.f32.mxu0 0.0
    %v774 = vand.u32 %v97, 4294901760
    %v775 = vsub.f32 %v97, %v774
    %v776 = vand.u32 %v775, 4294901760
    %777 = vmatmul.mubr.f32.gmra.mrb[0].mxu0 %v776
    %v778 = vpop.f32.mrb[0].mxu0
    %v779 = vadd.f32 %v626, %v778
    %v780 = vpop.f32.mrb[0].mxu0
    %v781 = vadd.f32 %v628, %v780
    %782 = vdwg.mxu0
    %v783 = vand.u32 %v19, 4294901760
    %v784 = vsub.f32 %v19, %v783
    %v785 = vand.u32 %v784, 4294901760
    %786 = vmatprep.subr.mxu0 %v785
    %v787 = vand.u32 %v18, 4294901760
    %v788 = vsub.f32 %v18, %v787
    %v789 = vand.u32 %v788, 4294901760
    %790 = vmatpush1.msra.mxu0 %v789
    %v791 = vand.u32 %v21, 4294901760
    %v792 = vsub.f32 %v21, %v791
    %v793 = vand.u32 %v792, 4294901760
    %794 = vmatprep.subr.mxu0 %v793
    %v795 = vand.u32 %v20, 4294901760
    %v796 = vsub.f32 %v20, %v795
    %v797 = vand.u32 %v796, 4294901760
    %798 = vmatpush1.msra.mxu0 %v797
    %v799 = vand.u32 %v23, 4294901760
    %v800 = vsub.f32 %v23, %v799
    %v801 = vand.u32 %v800, 4294901760
    %802 = vmatprep.subr.mxu0 %v801
    %v803 = vand.u32 %v22, 4294901760
    %v804 = vsub.f32 %v22, %v803
    %v805 = vand.u32 %v804, 4294901760
    %806 = vmatpush1.msra.mxu0 %v805
    %v807 = vand.u32 %v25, 4294901760
    %v808 = vsub.f32 %v25, %v807
    %v809 = vand.u32 %v808, 4294901760
    %810 = vmatprep.subr.mxu0 %v809
    %v811 = vand.u32 %v24, 4294901760
    %v812 = vsub.f32 %v24, %v811
    %v813 = vand.u32 %v812, 4294901760
    %814 = vmatpush1.msra.mxu0 %v813
    %v815 = vand.u32 %v27, 4294901760
    %v816 = vsub.f32 %v27, %v815
    %v817 = vand.u32 %v816, 4294901760
    %818 = vmatprep.subr.mxu0 %v817
    %v819 = vand.u32 %v26, 4294901760
    %v820 = vsub.f32 %v26, %v819
    %v821 = vand.u32 %v820, 4294901760
    %822 = vmatpush1.msra.mxu0 %v821
    %v823 = vand.u32 %v29, 4294901760
    %v824 = vsub.f32 %v29, %v823
    %v825 = vand.u32 %v824, 4294901760
    %826 = vmatprep.subr.mxu0 %v825
    %v827 = vand.u32 %v28, 4294901760
    %v828 = vsub.f32 %v28, %v827
    %v829 = vand.u32 %v828, 4294901760
    %830 = vmatpush1.msra.mxu0 %v829
    %v831 = vand.u32 %v31, 4294901760
    %v832 = vsub.f32 %v31, %v831
    %v833 = vand.u32 %v832, 4294901760
    %834 = vmatprep.subr.mxu0 %v833
    %v835 = vand.u32 %v30, 4294901760
    %v836 = vsub.f32 %v30, %v835
    %v837 = vand.u32 %v836, 4294901760
    %838 = vmatpush1.msra.mxu0 %v837
    %v839 = vand.u32 %v33, 4294901760
    %v840 = vsub.f32 %v33, %v839
    %v841 = vand.u32 %v840, 4294901760
    %842 = vmatprep.subr.mxu0 %v841
    %v843 = vand.u32 %v32, 4294901760
    %v844 = vsub.f32 %v32, %v843
    %v845 = vand.u32 %v844, 4294901760
    %846 = vmatpush1.msra.mxu0 %v845
    %847 = vmatprep.subr.mxu0 0.0
    %848 = vmatpush1.msra.mxu0 0.0
    %849 = vmatprep.subr.mxu0 0.0
    %850 = vmatpush1.msra.mxu0 0.0
    %851 = vmatprep.subr.mxu0 0.0
    %852 = vmatpush1.msra.mxu0 0.0
    %853 = vmatprep.subr.mxu0 0.0
    %854 = vmatpush1.msra.mxu0 0.0
    %855 = vmatprep.subr.mxu0 0.0
    %856 = vmatpush1.msra.mxu0 0.0
    %857 = vmatprep.subr.mxu0 0.0
    %858 = vmatpush1.msra.mxu0 0.0
    %859 = vmatprep.subr.mxu0 0.0
    %860 = vmatpush1.msra.mxu0 0.0
    %861 = vmatprep.subr.mxu0 0.0
    %862 = vmatpush1.msra.mxu0 0.0
    %863 = vmatprep.subr.mxu0 0.0
    %864 = vmatpush1.msra.mxu0 0.0
    %865 = vmatprep.subr.mxu0 0.0
    %866 = vmatpush1.msra.mxu0 0.0
    %867 = vmatprep.subr.mxu0 0.0
    %868 = vmatpush1.msra.mxu0 0.0
    %869 = vmatprep.subr.mxu0 0.0
    %870 = vmatpush1.msra.mxu0 0.0
    %871 = vmatprep.subr.mxu0 0.0
    %872 = vmatpush1.msra.mxu0 0.0
    %873 = vmatprep.subr.mxu0 0.0
    %874 = vmatpush1.msra.mxu0 0.0
    %875 = vmatprep.subr.mxu0 0.0
    %876 = vmatpush1.msra.mxu0 0.0
    %877 = vmatprep.subr.mxu0 0.0
    %878 = vmatpush1.msra.mxu0 0.0
    %879 = vmatprep.subr.mxu0 0.0
    %880 = vmatpush1.msra.mxu0 0.0
    %881 = vmatprep.subr.mxu0 0.0
    %882 = vmatpush1.msra.mxu0 0.0
    %883 = vmatprep.subr.mxu0 0.0
    %884 = vmatpush1.msra.mxu0 0.0
    %885 = vmatprep.subr.mxu0 0.0
    %886 = vmatpush1.msra.mxu0 0.0
    %887 = vmatprep.subr.mxu0 0.0
    %888 = vmatpush1.msra.mxu0 0.0
    %889 = vmatprep.subr.mxu0 0.0
    %890 = vmatpush1.msra.mxu0 0.0
    %891 = vmatprep.subr.mxu0 0.0
    %892 = vmatpush1.msra.mxu0 0.0
    %893 = vmatprep.subr.mxu0 0.0
    %894 = vmatpush1.msra.mxu0 0.0
    %895 = vmatprep.mubr.f32.mxu0 0.0
    %v896 = vand.u32 %v76, 4294901760
    %897 = vmatmul.mubr.f32.gmra.mrb[0].mxu0 %v896
    %v898 = vpop.f32.mrb[0].mxu0
    %v899 = vadd.f32 %v716, %v898
    %v900 = vpop.f32.mrb[0].mxu0
    %v901 = vadd.f32 %v718, %v900
    %902 = vmatprep.mubr.f32.mxu0 0.0
    %v903 = vand.u32 %v79, 4294901760
    %904 = vmatmul.mubr.f32.gmra.mrb[0].mxu0 %v903
    %v905 = vpop.f32.mrb[0].mxu0
    %v906 = vadd.f32 %v725, %v905
    %v907 = vpop.f32.mrb[0].mxu0
    %v908 = vadd.f32 %v727, %v907
    %909 = vmatprep.mubr.f32.mxu0 0.0
    %v910 = vand.u32 %v82, 4294901760
    %911 = vmatmul.mubr.f32.gmra.mrb[0].mxu0 %v910
    %v912 = vpop.f32.mrb[0].mxu0
    %v913 = vadd.f32 %v734, %v912
    %v914 = vpop.f32.mrb[0].mxu0
    %v915 = vadd.f32 %v736, %v914
    %916 = vmatprep.mubr.f32.mxu0 0.0
    %v917 = vand.u32 %v85, 4294901760
    %918 = vmatmul.mubr.f32.gmra.mrb[0].mxu0 %v917
    %v919 = vpop.f32.mrb[0].mxu0
    %v920 = vadd.f32 %v743, %v919
    %v921 = vpop.f32.mrb[0].mxu0
    %v922 = vadd.f32 %v745, %v921
    %923 = vmatprep.mubr.f32.mxu0 0.0
    %v924 = vand.u32 %v88, 4294901760
    %925 = vmatmul.mubr.f32.gmra.mrb[0].mxu0 %v924
    %v926 = vpop.f32.mrb[0].mxu0
    %v927 = vadd.f32 %v752, %v926
    %v928 = vpop.f32.mrb[0].mxu0
    %v929 = vadd.f32 %v754, %v928
    %930 = vmatprep.mubr.f32.mxu0 0.0
    %v931 = vand.u32 %v91, 4294901760
    %932 = vmatmul.mubr.f32.gmra.mrb[0].mxu0 %v931
    %v933 = vpop.f32.mrb[0].mxu0
    %v934 = vadd.f32 %v761, %v933
    %v935 = vpop.f32.mrb[0].mxu0
    %v936 = vadd.f32 %v763, %v935
    %937 = vmatprep.mubr.f32.mxu0 0.0
    %v938 = vand.u32 %v94, 4294901760
    %939 = vmatmul.mubr.f32.gmra.mrb[0].mxu0 %v938
    %v940 = vpop.f32.mrb[0].mxu0
    %v941 = vadd.f32 %v770, %v940
    %v942 = vpop.f32.mrb[0].mxu0
    %v943 = vadd.f32 %v772, %v942
    %944 = vmatprep.mubr.f32.mxu0 0.0
    %v945 = vand.u32 %v97, 4294901760
    %946 = vmatmul.mubr.f32.gmra.mrb[0].mxu0 %v945
    %v947 = vpop.f32.mrb[0].mxu0
    %v948 = vadd.f32 %v779, %v947
    %v949 = vpop.f32.mrb[0].mxu0
    %v950 = vadd.f32 %v781, %v949
    %951 = vdwg.mxu0
    %v952 = vand.u32 %v19, 4294901760
    %953 = vmatprep.subr.mxu0 %v952
    %v954 = vand.u32 %v18, 4294901760
    %955 = vmatpush1.msra.mxu0 %v954
    %v956 = vand.u32 %v21, 4294901760
    %957 = vmatprep.subr.mxu0 %v956
    %v958 = vand.u32 %v20, 4294901760
    %959 = vmatpush1.msra.mxu0 %v958
    %v960 = vand.u32 %v23, 4294901760
    %961 = vmatprep.subr.mxu0 %v960
    %v962 = vand.u32 %v22, 4294901760
    %963 = vmatpush1.msra.mxu0 %v962
    %v964 = vand.u32 %v25, 4294901760
    %965 = vmatprep.subr.mxu0 %v964
    %v966 = vand.u32 %v24, 4294901760
    %967 = vmatpush1.msra.mxu0 %v966
    %v968 = vand.u32 %v27, 4294901760
    %969 = vmatprep.subr.mxu0 %v968
    %v970 = vand.u32 %v26, 4294901760
    %971 = vmatpush1.msra.mxu0 %v970
    %v972 = vand.u32 %v29, 4294901760
    %973 = vmatprep.subr.mxu0 %v972
    %v974 = vand.u32 %v28, 4294901760
    %975 = vmatpush1.msra.mxu0 %v974
    %v976 = vand.u32 %v31, 4294901760
    %977 = vmatprep.subr.mxu0 %v976
    %v978 = vand.u32 %v30, 4294901760
    %979 = vmatpush1.msra.mxu0 %v978
    %v980 = vand.u32 %v33, 4294901760
    %981 = vmatprep.subr.mxu0 %v980
    %v982 = vand.u32 %v32, 4294901760
    %983 = vmatpush1.msra.mxu0 %v982
    %984 = vmatprep.subr.mxu0 0.0
    %985 = vmatpush1.msra.mxu0 0.0
    %986 = vmatprep.subr.mxu0 0.0
    %987 = vmatpush1.msra.mxu0 0.0
    %988 = vmatprep.subr.mxu0 0.0
    %989 = vmatpush1.msra.mxu0 0.0
    %990 = vmatprep.subr.mxu0 0.0
    %991 = vmatpush1.msra.mxu0 0.0
    %992 = vmatprep.subr.mxu0 0.0
    %993 = vmatpush1.msra.mxu0 0.0
    %994 = vmatprep.subr.mxu0 0.0
    %995 = vmatpush1.msra.mxu0 0.0
    %996 = vmatprep.subr.mxu0 0.0
    %997 = vmatpush1.msra.mxu0 0.0
    %998 = vmatprep.subr.mxu0 0.0
    %999 = vmatpush1.msra.mxu0 0.0
    %1000 = vmatprep.subr.mxu0 0.0
    %1001 = vmatpush1.msra.mxu0 0.0
    %1002 = vmatprep.subr.mxu0 0.0
    %1003 = vmatpush1.msra.mxu0 0.0
    %1004 = vmatprep.subr.mxu0 0.0
    %1005 = vmatpush1.msra.mxu0 0.0
    %1006 = vmatprep.subr.mxu0 0.0
    %1007 = vmatpush1.msra.mxu0 0.0
    %1008 = vmatprep.subr.mxu0 0.0
    %1009 = vmatpush1.msra.mxu0 0.0
    %1010 = vmatprep.subr.mxu0 0.0
    %1011 = vmatpush1.msra.mxu0 0.0
    %1012 = vmatprep.subr.mxu0 0.0
    %1013 = vmatpush1.msra.mxu0 0.0
    %1014 = vmatprep.subr.mxu0 0.0
    %1015 = vmatpush1.msra.mxu0 0.0
    %1016 = vmatprep.subr.mxu0 0.0
    %1017 = vmatpush1.msra.mxu0 0.0
    %1018 = vmatprep.subr.mxu0 0.0
    %1019 = vmatpush1.msra.mxu0 0.0
    %1020 = vmatprep.subr.mxu0 0.0
    %1021 = vmatpush1.msra.mxu0 0.0
    %1022 = vmatprep.subr.mxu0 0.0
    %1023 = vmatpush1.msra.mxu0 0.0
    %1024 = vmatprep.subr.mxu0 0.0
    %1025 = vmatpush1.msra.mxu0 0.0
    %1026 = vmatprep.subr.mxu0 0.0
    %1027 = vmatpush1.msra.mxu0 0.0
    %1028 = vmatprep.subr.mxu0 0.0
    %1029 = vmatpush1.msra.mxu0 0.0
    %1030 = vmatprep.subr.mxu0 0.0
    %1031 = vmatpush1.msra.mxu0 0.0
    %1032 = vmatprep.mubr.f32.mxu0 0.0
    %v1033 = vand.u32 %v76, 4294901760
    %1034 = vmatmul.mubr.f32.gmra.mrb[0].mxu0 %v1033
    %v1035 = vpop.f32.mrb[0].mxu0
    %v1036 = vadd.f32 %v899, %v1035
    %v1037 = vpop.f32.mrb[0].mxu0
    %v1038 = vadd.f32 %v901, %v1037
    %1039 = vmatprep.mubr.f32.mxu0 0.0
    %v1040 = vand.u32 %v79, 4294901760
    %1041 = vmatmul.mubr.f32.gmra.mrb[0].mxu0 %v1040
    %v1042 = vpop.f32.mrb[0].mxu0
    %v1043 = vadd.f32 %v906, %v1042
    %v1044 = vpop.f32.mrb[0].mxu0
    %v1045 = vadd.f32 %v908, %v1044
    %1046 = vmatprep.mubr.f32.mxu0 0.0
    %v1047 = vand.u32 %v82, 4294901760
    %1048 = vmatmul.mubr.f32.gmra.mrb[0].mxu0 %v1047
    %v1049 = vpop.f32.mrb[0].mxu0
    %v1050 = vadd.f32 %v913, %v1049
    %v1051 = vpop.f32.mrb[0].mxu0
    %v1052 = vadd.f32 %v915, %v1051
    %1053 = vmatprep.mubr.f32.mxu0 0.0
    %v1054 = vand.u32 %v85, 4294901760
    %1055 = vmatmul.mubr.f32.gmra.mrb[0].mxu0 %v1054
    %v1056 = vpop.f32.mrb[0].mxu0
    %v1057 = vadd.f32 %v920, %v1056
    %v1058 = vpop.f32.mrb[0].mxu0
    %v1059 = vadd.f32 %v922, %v1058
    %1060 = vmatprep.mubr.f32.mxu0 0.0
    %v1061 = vand.u32 %v88, 4294901760
    %1062 = vmatmul.mubr.f32.gmra.mrb[0].mxu0 %v1061
    %v1063 = vpop.f32.mrb[0].mxu0
    %v1064 = vadd.f32 %v927, %v1063
    %v1065 = vpop.f32.mrb[0].mxu0
    %v1066 = vadd.f32 %v929, %v1065
    %1067 = vmatprep.mubr.f32.mxu0 0.0
    %v1068 = vand.u32 %v91, 4294901760
    %1069 = vmatmul.mubr.f32.gmra.mrb[0].mxu0 %v1068
    %v1070 = vpop.f32.mrb[0].mxu0
    %v1071 = vadd.f32 %v934, %v1070
    %v1072 = vpop.f32.mrb[0].mxu0
    %v1073 = vadd.f32 %v936, %v1072
    %1074 = vmatprep.mubr.f32.mxu0 0.0
    %v1075 = vand.u32 %v94, 4294901760
    %1076 = vmatmul.mubr.f32.gmra.mrb[0].mxu0 %v1075
    %v1077 = vpop.f32.mrb[0].mxu0
    %v1078 = vadd.f32 %v941, %v1077
    %v1079 = vpop.f32.mrb[0].mxu0
    %v1080 = vadd.f32 %v943, %v1079
    %1081 = vmatprep.mubr.f32.mxu0 0.0
    %v1082 = vand.u32 %v97, 4294901760
    %1083 = vmatmul.mubr.f32.gmra.mrb[0].mxu0 %v1082
    %v1084 = vpop.f32.mrb[0].mxu0
    %v1085 = vadd.f32 %v948, %v1084
    %v1086 = vpop.f32.mrb[0].mxu0
    %v1087 = vadd.f32 %v950, %v1086
    %1088 = vdwg.mxu0
    %v1089 = vadd.f32 %v50, %v1036
    %v1090 = vadd.f32 %v51, %v1038
    %v1091 = vadd.f32 %v52, %v1043
    %v1092 = vadd.f32 %v53, %v1045
    %v1093 = vadd.f32 %v54, %v1050
    %v1094 = vadd.f32 %v55, %v1052
    %v1095 = vadd.f32 %v56, %v1057
    %v1096 = vadd.f32 %v57, %v1059
    %v1097 = vadd.f32 %v58, %v1064
    %v1098 = vadd.f32 %v59, %v1066
    %v1099 = vadd.f32 %v60, %v1071
    %v1100 = vadd.f32 %v61, %v1073
    %v1101 = vadd.f32 %v62, %v1078
    %v1102 = vadd.f32 %v63, %v1080
    %v1103 = vadd.f32 %v64, %v1085
    %v1104 = vadd.f32 %v65, %v1087
    %1105 = vst [vmem:[#allocation2 + $0x80] sm:$0xff] %v1089
    %1106 = vst [vmem:[#allocation2 + $0x88] sm:$0xff] %v1090
    %1107 = vst [vmem:[#allocation2 + $0x90] sm:$0xff] %v1091
    %1108 = vst [vmem:[#allocation2 + $0x98] sm:$0xff] %v1092
    %1109 = vst [vmem:[#allocation2 + $0xa0] sm:$0xff] %v1093
    %1110 = vst [vmem:[#allocation2 + $0xa8] sm:$0xff] %v1094
    %1111 = vst [vmem:[#allocation2 + $0xb0] sm:$0xff] %v1095
    %1112 = vst [vmem:[#allocation2 + $0xb8] sm:$0xff] %v1096
    %1113 = vst [vmem:[#allocation2 + $0xc0] sm:$0xff] %v1097
    %1114 = vst [vmem:[#allocation2 + $0xc8] sm:$0xff] %v1098
    %1115 = vst [vmem:[#allocation2 + $0xd0] sm:$0xff] %v1099
    %1116 = vst [vmem:[#allocation2 + $0xd8] sm:$0xff] %v1100
    %1117 = vst [vmem:[#allocation2 + $0xe0] sm:$0xff] %v1101
    %1118 = vst [vmem:[#allocation2 + $0xe8] sm:$0xff] %v1102
    %1119 = vst [vmem:[#allocation2 + $0xf0] sm:$0xff] %v1103
    %1120 = vst [vmem:[#allocation2 + $0xf8] sm:$0xff] %v1104
    %v1121 = vld [vmem:[%s0] sm:$0xff]
    %v1122 = vld [vmem:[%s0 + $0x8] sm:$0xff]
    %v1123 = vld [vmem:[%s0 + $0x10] sm:$0xff]
    %v1124 = vld [vmem:[%s0 + $0x18] sm:$0xff]
    %v1125 = vld [vmem:[%s0 + $0x20] sm:$0xff]
    %v1126 = vld [vmem:[%s0 + $0x28] sm:$0xff]
    %v1127 = vld [vmem:[%s0 + $0x30] sm:$0xff]
    %v1128 = vld [vmem:[%s0 + $0x38] sm:$0xff]
    %v1130 = vsel %vm74, %v1121, 0
    %v1133 = vsel %vm74, %v1122, 0
    %v1136 = vsel %vm74, %v1123, 0
    %v1139 = vsel %vm74, %v1124, 0
    %v1142 = vsel %vm74, %v1125, 0
    %v1145 = vsel %vm74, %v1126, 0
    %v1148 = vsel %vm74, %v1127, 0
    %v1151 = vsel %vm74, %v1128, 0
    %v1153 = vand.u32 %v1090, 4294901760
    %1154 = vmatprep.subr.mxu0 %v1153
    %v1155 = vand.u32 %v1089, 4294901760
    %1156 = vmatpush1.msra.mxu0 %v1155
    %v1157 = vand.u32 %v1092, 4294901760
    %1158 = vmatprep.subr.mxu0 %v1157
    %v1159 = vand.u32 %v1091, 4294901760
    %1160 = vmatpush1.msra.mxu0 %v1159
    %v1161 = vand.u32 %v1094, 4294901760
    %1162 = vmatprep.subr.mxu0 %v1161
    %v1163 = vand.u32 %v1093, 4294901760
    %1164 = vmatpush1.msra.mxu0 %v1163
    %v1165 = vand.u32 %v1096, 4294901760
    %1166 = vmatprep.subr.mxu0 %v1165
    %v1167 = vand.u32 %v1095, 4294901760
    %1168 = vmatpush1.msra.mxu0 %v1167
    %v1169 = vand.u32 %v1098, 4294901760
    %1170 = vmatprep.subr.mxu0 %v1169
    %v1171 = vand.u32 %v1097, 4294901760
    %1172 = vmatpush1.msra.mxu0 %v1171
    %v1173 = vand.u32 %v1100, 4294901760
    %1174 = vmatprep.subr.mxu0 %v1173
    %v1175 = vand.u32 %v1099, 4294901760
    %1176 = vmatpush1.msra.mxu0 %v1175
    %v1177 = vand.u32 %v1102, 4294901760
    %1178 = vmatprep.subr.mxu0 %v1177
    %v1179 = vand.u32 %v1101, 4294901760
    %1180 = vmatpush1.msra.mxu0 %v1179
    %v1181 = vand.u32 %v1104, 4294901760
    %1182 = vmatprep.subr.mxu0 %v1181
    %v1183 = vand.u32 %v1103, 4294901760
    %1184 = vmatpush1.msra.mxu0 %v1183
    %1185 = vmatprep.subr.mxu0 0.0
    %1186 = vmatpush1.msra.mxu0 0.0
    %1187 = vmatprep.subr.mxu0 0.0
    %1188 = vmatpush1.msra.mxu0 0.0
    %1189 = vmatprep.subr.mxu0 0.0
    %1190 = vmatpush1.msra.mxu0 0.0
    %1191 = vmatprep.subr.mxu0 0.0
    %1192 = vmatpush1.msra.mxu0 0.0
    %1193 = vmatprep.subr.mxu0 0.0
    %1194 = vmatpush1.msra.mxu0 0.0
    %1195 = vmatprep.subr.mxu0 0.0
    %1196 = vmatpush1.msra.mxu0 0.0
    %1197 = vmatprep.subr.mxu0 0.0
    %1198 = vmatpush1.msra.mxu0 0.0
    %1199 = vmatprep.subr.mxu0 0.0
    %1200 = vmatpush1.msra.mxu0 0.0
    %1201 = vmatprep.subr.mxu0 0.0
    %1202 = vmatpush1.msra.mxu0 0.0
    %1203 = vmatprep.subr.mxu0 0.0
    %1204 = vmatpush1.msra.mxu0 0.0
    %1205 = vmatprep.subr.mxu0 0.0
    %1206 = vmatpush1.msra.mxu0 0.0
    %1207 = vmatprep.subr.mxu0 0.0
    %1208 = vmatpush1.msra.mxu0 0.0
    %1209 = vmatprep.subr.mxu0 0.0
    %1210 = vmatpush1.msra.mxu0 0.0
    %1211 = vmatprep.subr.mxu0 0.0
    %1212 = vmatpush1.msra.mxu0 0.0
    %1213 = vmatprep.subr.mxu0 0.0
    %1214 = vmatpush1.msra.mxu0 0.0
    %1215 = vmatprep.subr.mxu0 0.0
    %1216 = vmatpush1.msra.mxu0 0.0
    %1217 = vmatprep.subr.mxu0 0.0
    %1218 = vmatpush1.msra.mxu0 0.0
    %1219 = vmatprep.subr.mxu0 0.0
    %1220 = vmatpush1.msra.mxu0 0.0
    %1221 = vmatprep.subr.mxu0 0.0
    %1222 = vmatpush1.msra.mxu0 0.0
    %1223 = vmatprep.subr.mxu0 0.0
    %1224 = vmatpush1.msra.mxu0 0.0
    %1225 = vmatprep.subr.mxu0 0.0
    %1226 = vmatpush1.msra.mxu0 0.0
    %1227 = vmatprep.subr.mxu0 0.0
    %1228 = vmatpush1.msra.mxu0 0.0
    %1229 = vmatprep.subr.mxu0 0.0
    %1230 = vmatpush1.msra.mxu0 0.0
    %1231 = vmatprep.subr.mxu0 0.0
    %1232 = vmatpush1.msra.mxu0 0.0
    %1233 = vmatprep.mubr.f32.mxu0 0.0
    %v1234 = vand.u32 %v1130, 4294901760
    %v1235 = vsub.f32 %v1130, %v1234
    %v1236 = vand.u32 %v1235, 4294901760
    %v1237 = vsub.f32 %v1235, %v1236
    %v1238 = vand.u32 %v1237, 4294901760
    %1239 = vmatmul.mubr.f32.gmra.mrb[0].mxu0 %v1238
    %v1240 = vpop.f32.mrb[0].mxu0
    %v1241 = vadd.f32 0.0, %v1240
    %v1242 = vpop.f32.mrb[0].mxu0
    %v1243 = vadd.f32 0.0, %v1242
    %1244 = vmatprep.mubr.f32.mxu0 0.0
    %v1245 = vand.u32 %v1133, 4294901760
    %v1246 = vsub.f32 %v1133, %v1245
    %v1247 = vand.u32 %v1246, 4294901760
    %v1248 = vsub.f32 %v1246, %v1247
    %v1249 = vand.u32 %v1248, 4294901760
    %1250 = vmatmul.mubr.f32.gmra.mrb[0].mxu0 %v1249
    %v1251 = vpop.f32.mrb[0].mxu0
    %v1252 = vadd.f32 0.0, %v1251
    %v1253 = vpop.f32.mrb[0].mxu0
    %v1254 = vadd.f32 0.0, %v1253
    %1255 = vmatprep.mubr.f32.mxu0 0.0
    %v1256 = vand.u32 %v1136, 4294901760
    %v1257 = vsub.f32 %v1136, %v1256
    %v1258 = vand.u32 %v1257, 4294901760
    %v1259 = vsub.f32 %v1257, %v1258
    %v1260 = vand.u32 %v1259, 4294901760
    %1261 = vmatmul.mubr.f32.gmra.mrb[0].mxu0 %v1260
    %v1262 = vpop.f32.mrb[0].mxu0
    %v1263 = vadd.f32 0.0, %v1262
    %v1264 = vpop.f32.mrb[0].mxu0
    %v1265 = vadd.f32 0.0, %v1264
    %1266 = vmatprep.mubr.f32.mxu0 0.0
    %v1267 = vand.u32 %v1139, 4294901760
    %v1268 = vsub.f32 %v1139, %v1267
    %v1269 = vand.u32 %v1268, 4294901760
    %v1270 = vsub.f32 %v1268, %v1269
    %v1271 = vand.u32 %v1270, 4294901760
    %1272 = vmatmul.mubr.f32.gmra.mrb[0].mxu0 %v1271
    %v1273 = vpop.f32.mrb[0].mxu0
    %v1274 = vadd.f32 0.0, %v1273
    %v1275 = vpop.f32.mrb[0].mxu0
    %v1276 = vadd.f32 0.0, %v1275
    %1277 = vmatprep.mubr.f32.mxu0 0.0
    %v1278 = vand.u32 %v1142, 4294901760
    %v1279 = vsub.f32 %v1142, %v1278
    %v1280 = vand.u32 %v1279, 4294901760
    %v1281 = vsub.f32 %v1279, %v1280
    %v1282 = vand.u32 %v1281, 4294901760
    %1283 = vmatmul.mubr.f32.gmra.mrb[0].mxu0 %v1282
    %v1284 = vpop.f32.mrb[0].mxu0
    %v1285 = vadd.f32 0.0, %v1284
    %v1286 = vpop.f32.mrb[0].mxu0
    %v1287 = vadd.f32 0.0, %v1286
    %1288 = vmatprep.mubr.f32.mxu0 0.0
    %v1289 = vand.u32 %v1145, 4294901760
    %v1290 = vsub.f32 %v1145, %v1289
    %v1291 = vand.u32 %v1290, 4294901760
    %v1292 = vsub.f32 %v1290, %v1291
    %v1293 = vand.u32 %v1292, 4294901760
    %1294 = vmatmul.mubr.f32.gmra.mrb[0].mxu0 %v1293
    %v1295 = vpop.f32.mrb[0].mxu0
    %v1296 = vadd.f32 0.0, %v1295
    %v1297 = vpop.f32.mrb[0].mxu0
    %v1298 = vadd.f32 0.0, %v1297
    %1299 = vmatprep.mubr.f32.mxu0 0.0
    %v1300 = vand.u32 %v1148, 4294901760
    %v1301 = vsub.f32 %v1148, %v1300
    %v1302 = vand.u32 %v1301, 4294901760
    %v1303 = vsub.f32 %v1301, %v1302
    %v1304 = vand.u32 %v1303, 4294901760
    %1305 = vmatmul.mubr.f32.gmra.mrb[0].mxu0 %v1304
    %v1306 = vpop.f32.mrb[0].mxu0
    %v1307 = vadd.f32 0.0, %v1306
    %v1308 = vpop.f32.mrb[0].mxu0
    %v1309 = vadd.f32 0.0, %v1308
    %1310 = vmatprep.mubr.f32.mxu0 0.0
    %v1311 = vand.u32 %v1151, 4294901760
    %v1312 = vsub.f32 %v1151, %v1311
    %v1313 = vand.u32 %v1312, 4294901760
    %v1314 = vsub.f32 %v1312, %v1313
    %v1315 = vand.u32 %v1314, 4294901760
    %1316 = vmatmul.mubr.f32.gmra.mrb[0].mxu0 %v1315
    %v1317 = vpop.f32.mrb[0].mxu0
    %v1318 = vadd.f32 0.0, %v1317
    %v1319 = vpop.f32.mrb[0].mxu0
    %v1320 = vadd.f32 0.0, %v1319
    %1321 = vdwg.mxu0
    %v1322 = vand.u32 %v1090, 4294901760
    %v1323 = vsub.f32 %v1090, %v1322
    %v1324 = vand.u32 %v1323, 4294901760
    %v1325 = vsub.f32 %v1323, %v1324
    %v1326 = vand.u32 %v1325, 4294901760
    %1327 = vmatprep.subr.mxu0 %v1326
    %v1328 = vand.u32 %v1089, 4294901760
    %v1329 = vsub.f32 %v1089, %v1328
    %v1330 = vand.u32 %v1329, 4294901760
    %v1331 = vsub.f32 %v1329, %v1330
    %v1332 = vand.u32 %v1331, 4294901760
    %1333 = vmatpush1.msra.mxu0 %v1332
    %v1334 = vand.u32 %v1092, 4294901760
    %v1335 = vsub.f32 %v1092, %v1334
    %v1336 = vand.u32 %v1335, 4294901760
    %v1337 = vsub.f32 %v1335, %v1336
    %v1338 = vand.u32 %v1337, 4294901760
    %1339 = vmatprep.subr.mxu0 %v1338
    %v1340 = vand.u32 %v1091, 4294901760
    %v1341 = vsub.f32 %v1091, %v1340
    %v1342 = vand.u32 %v1341, 4294901760
    %v1343 = vsub.f32 %v1341, %v1342
    %v1344 = vand.u32 %v1343, 4294901760
    %1345 = vmatpush1.msra.mxu0 %v1344
    %v1346 = vand.u32 %v1094, 4294901760
    %v1347 = vsub.f32 %v1094, %v1346
    %v1348 = vand.u32 %v1347, 4294901760
    %v1349 = vsub.f32 %v1347, %v1348
    %v1350 = vand.u32 %v1349, 4294901760
    %1351 = vmatprep.subr.mxu0 %v1350
    %v1352 = vand.u32 %v1093, 4294901760
    %v1353 = vsub.f32 %v1093, %v1352
    %v1354 = vand.u32 %v1353, 4294901760
    %v1355 = vsub.f32 %v1353, %v1354
    %v1356 = vand.u32 %v1355, 4294901760
    %1357 = vmatpush1.msra.mxu0 %v1356
    %v1358 = vand.u32 %v1096, 4294901760
    %v1359 = vsub.f32 %v1096, %v1358
    %v1360 = vand.u32 %v1359, 4294901760
    %v1361 = vsub.f32 %v1359, %v1360
    %v1362 = vand.u32 %v1361, 4294901760
    %1363 = vmatprep.subr.mxu0 %v1362
    %v1364 = vand.u32 %v1095, 4294901760
    %v1365 = vsub.f32 %v1095, %v1364
    %v1366 = vand.u32 %v1365, 4294901760
    %v1367 = vsub.f32 %v1365, %v1366
    %v1368 = vand.u32 %v1367, 4294901760
    %1369 = vmatpush1.msra.mxu0 %v1368
    %v1370 = vand.u32 %v1098, 4294901760
    %v1371 = vsub.f32 %v1098, %v1370
    %v1372 = vand.u32 %v1371, 4294901760
    %v1373 = vsub.f32 %v1371, %v1372
    %v1374 = vand.u32 %v1373, 4294901760
    %1375 = vmatprep.subr.mxu0 %v1374
    %v1376 = vand.u32 %v1097, 4294901760
    %v1377 = vsub.f32 %v1097, %v1376
    %v1378 = vand.u32 %v1377, 4294901760
    %v1379 = vsub.f32 %v1377, %v1378
    %v1380 = vand.u32 %v1379, 4294901760
    %1381 = vmatpush1.msra.mxu0 %v1380
    %v1382 = vand.u32 %v1100, 4294901760
    %v1383 = vsub.f32 %v1100, %v1382
    %v1384 = vand.u32 %v1383, 4294901760
    %v1385 = vsub.f32 %v1383, %v1384
    %v1386 = vand.u32 %v1385, 4294901760
    %1387 = vmatprep.subr.mxu0 %v1386
    %v1388 = vand.u32 %v1099, 4294901760
    %v1389 = vsub.f32 %v1099, %v1388
    %v1390 = vand.u32 %v1389, 4294901760
    %v1391 = vsub.f32 %v1389, %v1390
    %v1392 = vand.u32 %v1391, 4294901760
    %1393 = vmatpush1.msra.mxu0 %v1392
    %v1394 = vand.u32 %v1102, 4294901760
    %v1395 = vsub.f32 %v1102, %v1394
    %v1396 = vand.u32 %v1395, 4294901760
    %v1397 = vsub.f32 %v1395, %v1396
    %v1398 = vand.u32 %v1397, 4294901760
    %1399 = vmatprep.subr.mxu0 %v1398
    %v1400 = vand.u32 %v1101, 4294901760
    %v1401 = vsub.f32 %v1101, %v1400
    %v1402 = vand.u32 %v1401, 4294901760
    %v1403 = vsub.f32 %v1401, %v1402
    %v1404 = vand.u32 %v1403, 4294901760
    %1405 = vmatpush1.msra.mxu0 %v1404
    %v1406 = vand.u32 %v1104, 4294901760
    %v1407 = vsub.f32 %v1104, %v1406
    %v1408 = vand.u32 %v1407, 4294901760
    %v1409 = vsub.f32 %v1407, %v1408
    %v1410 = vand.u32 %v1409, 4294901760
    %1411 = vmatprep.subr.mxu0 %v1410
    %v1412 = vand.u32 %v1103, 4294901760
    %v1413 = vsub.f32 %v1103, %v1412
    %v1414 = vand.u32 %v1413, 4294901760
    %v1415 = vsub.f32 %v1413, %v1414
    %v1416 = vand.u32 %v1415, 4294901760
    %1417 = vmatpush1.msra.mxu0 %v1416
    %1418 = vmatprep.subr.mxu0 0.0
    %1419 = vmatpush1.msra.mxu0 0.0
    %1420 = vmatprep.subr.mxu0 0.0
    %1421 = vmatpush1.msra.mxu0 0.0
    %1422 = vmatprep.subr.mxu0 0.0
    %1423 = vmatpush1.msra.mxu0 0.0
    %1424 = vmatprep.subr.mxu0 0.0
    %1425 = vmatpush1.msra.mxu0 0.0
    %1426 = vmatprep.subr.mxu0 0.0
    %1427 = vmatpush1.msra.mxu0 0.0
    %1428 = vmatprep.subr.mxu0 0.0
    %1429 = vmatpush1.msra.mxu0 0.0
    %1430 = vmatprep.subr.mxu0 0.0
    %1431 = vmatpush1.msra.mxu0 0.0
    %1432 = vmatprep.subr.mxu0 0.0
    %1433 = vmatpush1.msra.mxu0 0.0
    %1434 = vmatprep.subr.mxu0 0.0
    %1435 = vmatpush1.msra.mxu0 0.0
    %1436 = vmatprep.subr.mxu0 0.0
    %1437 = vmatpush1.msra.mxu0 0.0
    %1438 = vmatprep.subr.mxu0 0.0
    %1439 = vmatpush1.msra.mxu0 0.0
    %1440 = vmatprep.subr.mxu0 0.0
    %1441 = vmatpush1.msra.mxu0 0.0
    %1442 = vmatprep.subr.mxu0 0.0
    %1443 = vmatpush1.msra.mxu0 0.0
    %1444 = vmatprep.subr.mxu0 0.0
    %1445 = vmatpush1.msra.mxu0 0.0
    %1446 = vmatprep.subr.mxu0 0.0
    %1447 = vmatpush1.msra.mxu0 0.0
    %1448 = vmatprep.subr.mxu0 0.0
    %1449 = vmatpush1.msra.mxu0 0.0
    %1450 = vmatprep.subr.mxu0 0.0
    %1451 = vmatpush1.msra.mxu0 0.0
    %1452 = vmatprep.subr.mxu0 0.0
    %1453 = vmatpush1.msra.mxu0 0.0
    %1454 = vmatprep.subr.mxu0 0.0
    %1455 = vmatpush1.msra.mxu0 0.0
    %1456 = vmatprep.subr.mxu0 0.0
    %1457 = vmatpush1.msra.mxu0 0.0
    %1458 = vmatprep.subr.mxu0 0.0
    %1459 = vmatpush1.msra.mxu0 0.0
    %1460 = vmatprep.subr.mxu0 0.0
    %1461 = vmatpush1.msra.mxu0 0.0
    %1462 = vmatprep.subr.mxu0 0.0
    %1463 = vmatpush1.msra.mxu0 0.0
    %1464 = vmatprep.subr.mxu0 0.0
    %1465 = vmatpush1.msra.mxu0 0.0
    %1466 = vmatprep.mubr.f32.mxu0 0.0
    %v1467 = vand.u32 %v1130, 4294901760
    %1468 = vmatmul.mubr.f32.gmra.mrb[0].mxu0 %v1467
    %v1469 = vpop.f32.mrb[0].mxu0
    %v1470 = vadd.f32 %v1241, %v1469
    %v1471 = vpop.f32.mrb[0].mxu0
    %v1472 = vadd.f32 %v1243, %v1471
    %1473 = vmatprep.mubr.f32.mxu0 0.0
    %v1474 = vand.u32 %v1133, 4294901760
    %1475 = vmatmul.mubr.f32.gmra.mrb[0].mxu0 %v1474
    %v1476 = vpop.f32.mrb[0].mxu0
    %v1477 = vadd.f32 %v1252, %v1476
    %v1478 = vpop.f32.mrb[0].mxu0
    %v1479 = vadd.f32 %v1254, %v1478
    %1480 = vmatprep.mubr.f32.mxu0 0.0
    %v1481 = vand.u32 %v1136, 4294901760
    %1482 = vmatmul.mubr.f32.gmra.mrb[0].mxu0 %v1481
    %v1483 = vpop.f32.mrb[0].mxu0
    %v1484 = vadd.f32 %v1263, %v1483
    %v1485 = vpop.f32.mrb[0].mxu0
    %v1486 = vadd.f32 %v1265, %v1485
    %1487 = vmatprep.mubr.f32.mxu0 0.0
    %v1488 = vand.u32 %v1139, 4294901760
    %1489 = vmatmul.mubr.f32.gmra.mrb[0].mxu0 %v1488
    %v1490 = vpop.f32.mrb[0].mxu0
    %v1491 = vadd.f32 %v1274, %v1490
    %v1492 = vpop.f32.mrb[0].mxu0
    %v1493 = vadd.f32 %v1276, %v1492
    %1494 = vmatprep.mubr.f32.mxu0 0.0
    %v1495 = vand.u32 %v1142, 4294901760
    %1496 = vmatmul.mubr.f32.gmra.mrb[0].mxu0 %v1495
    %v1497 = vpop.f32.mrb[0].mxu0
    %v1498 = vadd.f32 %v1285, %v1497
    %v1499 = vpop.f32.mrb[0].mxu0
    %v1500 = vadd.f32 %v1287, %v1499
    %1501 = vmatprep.mubr.f32.mxu0 0.0
    %v1502 = vand.u32 %v1145, 4294901760
    %1503 = vmatmul.mubr.f32.gmra.mrb[0].mxu0 %v1502
    %v1504 = vpop.f32.mrb[0].mxu0
    %v1505 = vadd.f32 %v1296, %v1504
    %v1506 = vpop.f32.mrb[0].mxu0
    %v1507 = vadd.f32 %v1298, %v1506
    %1508 = vmatprep.mubr.f32.mxu0 0.0
    %v1509 = vand.u32 %v1148, 4294901760
    %1510 = vmatmul.mubr.f32.gmra.mrb[0].mxu0 %v1509
    %v1511 = vpop.f32.mrb[0].mxu0
    %v1512 = vadd.f32 %v1307, %v1511
    %v1513 = vpop.f32.mrb[0].mxu0
    %v1514 = vadd.f32 %v1309, %v1513
    %1515 = vmatprep.mubr.f32.mxu0 0.0
    %v1516 = vand.u32 %v1151, 4294901760
    %1517 = vmatmul.mubr.f32.gmra.mrb[0].mxu0 %v1516
    %v1518 = vpop.f32.mrb[0].mxu0
    %v1519 = vadd.f32 %v1318, %v1518
    %v1520 = vpop.f32.mrb[0].mxu0
    %v1521 = vadd.f32 %v1320, %v1520
    %1522 = vdwg.mxu0
    %v1523 = vand.u32 %v1090, 4294901760
    %v1524 = vsub.f32 %v1090, %v1523
    %1525 = vmatprep.subr.mxu0 %v1524
    %v1526 = vand.u32 %v1089, 4294901760
    %v1527 = vsub.f32 %v1089, %v1526
    %1528 = vmatpush1.msra.mxu0 %v1527
    %v1529 = vand.u32 %v1092, 4294901760
    %v1530 = vsub.f32 %v1092, %v1529
    %1531 = vmatprep.subr.mxu0 %v1530
    %v1532 = vand.u32 %v1091, 4294901760
    %v1533 = vsub.f32 %v1091, %v1532
    %1534 = vmatpush1.msra.mxu0 %v1533
    %v1535 = vand.u32 %v1094, 4294901760
    %v1536 = vsub.f32 %v1094, %v1535
    %1537 = vmatprep.subr.mxu0 %v1536
    %v1538 = vand.u32 %v1093, 4294901760
    %v1539 = vsub.f32 %v1093, %v1538
    %1540 = vmatpush1.msra.mxu0 %v1539
    %v1541 = vand.u32 %v1096, 4294901760
    %v1542 = vsub.f32 %v1096, %v1541
    %1543 = vmatprep.subr.mxu0 %v1542
    %v1544 = vand.u32 %v1095, 4294901760
    %v1545 = vsub.f32 %v1095, %v1544
    %1546 = vmatpush1.msra.mxu0 %v1545
    %v1547 = vand.u32 %v1098, 4294901760
    %v1548 = vsub.f32 %v1098, %v1547
    %1549 = vmatprep.subr.mxu0 %v1548
    %v1550 = vand.u32 %v1097, 4294901760
    %v1551 = vsub.f32 %v1097, %v1550
    %1552 = vmatpush1.msra.mxu0 %v1551
    %v1553 = vand.u32 %v1100, 4294901760
    %v1554 = vsub.f32 %v1100, %v1553
    %1555 = vmatprep.subr.mxu0 %v1554
    %v1556 = vand.u32 %v1099, 4294901760
    %v1557 = vsub.f32 %v1099, %v1556
    %1558 = vmatpush1.msra.mxu0 %v1557
    %v1559 = vand.u32 %v1102, 4294901760
    %v1560 = vsub.f32 %v1102, %v1559
    %1561 = vmatprep.subr.mxu0 %v1560
    %v1562 = vand.u32 %v1101, 4294901760
    %v1563 = vsub.f32 %v1101, %v1562
    %1564 = vmatpush1.msra.mxu0 %v1563
    %v1565 = vand.u32 %v1104, 4294901760
    %v1566 = vsub.f32 %v1104, %v1565
    %1567 = vmatprep.subr.mxu0 %v1566
    %v1568 = vand.u32 %v1103, 4294901760
    %v1569 = vsub.f32 %v1103, %v1568
    %1570 = vmatpush1.msra.mxu0 %v1569
    %1571 = vmatprep.subr.mxu0 0.0
    %1572 = vmatpush1.msra.mxu0 0.0
    %1573 = vmatprep.subr.mxu0 0.0
    %1574 = vmatpush1.msra.mxu0 0.0
    %1575 = vmatprep.subr.mxu0 0.0
    %1576 = vmatpush1.msra.mxu0 0.0
    %1577 = vmatprep.subr.mxu0 0.0
    %1578 = vmatpush1.msra.mxu0 0.0
    %1579 = vmatprep.subr.mxu0 0.0
    %1580 = vmatpush1.msra.mxu0 0.0
    %1581 = vmatprep.subr.mxu0 0.0
    %1582 = vmatpush1.msra.mxu0 0.0
    %1583 = vmatprep.subr.mxu0 0.0
    %1584 = vmatpush1.msra.mxu0 0.0
    %1585 = vmatprep.subr.mxu0 0.0
    %1586 = vmatpush1.msra.mxu0 0.0
    %1587 = vmatprep.subr.mxu0 0.0
    %1588 = vmatpush1.msra.mxu0 0.0
    %1589 = vmatprep.subr.mxu0 0.0
    %1590 = vmatpush1.msra.mxu0 0.0
    %1591 = vmatprep.subr.mxu0 0.0
    %1592 = vmatpush1.msra.mxu0 0.0
    %1593 = vmatprep.subr.mxu0 0.0
    %1594 = vmatpush1.msra.mxu0 0.0
    %1595 = vmatprep.subr.mxu0 0.0
    %1596 = vmatpush1.msra.mxu0 0.0
    %1597 = vmatprep.subr.mxu0 0.0
    %1598 = vmatpush1.msra.mxu0 0.0
    %1599 = vmatprep.subr.mxu0 0.0
    %1600 = vmatpush1.msra.mxu0 0.0
    %1601 = vmatprep.subr.mxu0 0.0
    %1602 = vmatpush1.msra.mxu0 0.0
    %1603 = vmatprep.subr.mxu0 0.0
    %1604 = vmatpush1.msra.mxu0 0.0
    %1605 = vmatprep.subr.mxu0 0.0
    %1606 = vmatpush1.msra.mxu0 0.0
    %1607 = vmatprep.subr.mxu0 0.0
    %1608 = vmatpush1.msra.mxu0 0.0
    %1609 = vmatprep.subr.mxu0 0.0
    %1610 = vmatpush1.msra.mxu0 0.0
    %1611 = vmatprep.subr.mxu0 0.0
    %1612 = vmatpush1.msra.mxu0 0.0
    %1613 = vmatprep.subr.mxu0 0.0
    %1614 = vmatpush1.msra.mxu0 0.0
    %1615 = vmatprep.subr.mxu0 0.0
    %1616 = vmatpush1.msra.mxu0 0.0
    %1617 = vmatprep.subr.mxu0 0.0
    %1618 = vmatpush1.msra.mxu0 0.0
    %1619 = vmatprep.mubr.f32.mxu0 0.0
    %v1620 = vand.u32 %v1130, 4294901760
    %v1621 = vsub.f32 %v1130, %v1620
    %1622 = vmatmul.mubr.f32.gmra.mrb[0].mxu0 %v1621
    %v1623 = vpop.f32.mrb[0].mxu0
    %v1624 = vadd.f32 %v1470, %v1623
    %v1625 = vpop.f32.mrb[0].mxu0
    %v1626 = vadd.f32 %v1472, %v1625
    %1627 = vmatprep.mubr.f32.mxu0 0.0
    %v1628 = vand.u32 %v1133, 4294901760
    %v1629 = vsub.f32 %v1133, %v1628
    %1630 = vmatmul.mubr.f32.gmra.mrb[0].mxu0 %v1629
    %v1631 = vpop.f32.mrb[0].mxu0
    %v1632 = vadd.f32 %v1477, %v1631
    %v1633 = vpop.f32.mrb[0].mxu0
    %v1634 = vadd.f32 %v1479, %v1633
    %1635 = vmatprep.mubr.f32.mxu0 0.0
    %v1636 = vand.u32 %v1136, 4294901760
    %v1637 = vsub.f32 %v1136, %v1636
    %1638 = vmatmul.mubr.f32.gmra.mrb[0].mxu0 %v1637
    %v1639 = vpop.f32.mrb[0].mxu0
    %v1640 = vadd.f32 %v1484, %v1639
    %v1641 = vpop.f32.mrb[0].mxu0
    %v1642 = vadd.f32 %v1486, %v1641
    %1643 = vmatprep.mubr.f32.mxu0 0.0
    %v1644 = vand.u32 %v1139, 4294901760
    %v1645 = vsub.f32 %v1139, %v1644
    %1646 = vmatmul.mubr.f32.gmra.mrb[0].mxu0 %v1645
    %v1647 = vpop.f32.mrb[0].mxu0
    %v1648 = vadd.f32 %v1491, %v1647
    %v1649 = vpop.f32.mrb[0].mxu0
    %v1650 = vadd.f32 %v1493, %v1649
    %1651 = vmatprep.mubr.f32.mxu0 0.0
    %v1652 = vand.u32 %v1142, 4294901760
    %v1653 = vsub.f32 %v1142, %v1652
    %1654 = vmatmul.mubr.f32.gmra.mrb[0].mxu0 %v1653
    %v1655 = vpop.f32.mrb[0].mxu0
    %v1656 = vadd.f32 %v1498, %v1655
    %v1657 = vpop.f32.mrb[0].mxu0
    %v1658 = vadd.f32 %v1500, %v1657
    %1659 = vmatprep.mubr.f32.mxu0 0.0
    %v1660 = vand.u32 %v1145, 4294901760
    %v1661 = vsub.f32 %v1145, %v1660
    %1662 = vmatmul.mubr.f32.gmra.mrb[0].mxu0 %v1661
    %v1663 = vpop.f32.mrb[0].mxu0
    %v1664 = vadd.f32 %v1505, %v1663
    %v1665 = vpop.f32.mrb[0].mxu0
    %v1666 = vadd.f32 %v1507, %v1665
    %1667 = vmatprep.mubr.f32.mxu0 0.0
    %v1668 = vand.u32 %v1148, 4294901760
    %v1669 = vsub.f32 %v1148, %v1668
    %1670 = vmatmul.mubr.f32.gmra.mrb[0].mxu0 %v1669
    %v1671 = vpop.f32.mrb[0].mxu0
    %v1672 = vadd.f32 %v1512, %v1671
    %v1673 = vpop.f32.mrb[0].mxu0
    %v1674 = vadd.f32 %v1514, %v1673
    %1675 = vmatprep.mubr.f32.mxu0 0.0
    %v1676 = vand.u32 %v1151, 4294901760
    %v1677 = vsub.f32 %v1151, %v1676
    %1678 = vmatmul.mubr.f32.gmra.mrb[0].mxu0 %v1677
    %v1679 = vpop.f32.mrb[0].mxu0
    %v1680 = vadd.f32 %v1519, %v1679
    %v1681 = vpop.f32.mrb[0].mxu0
    %v1682 = vadd.f32 %v1521, %v1681
    %1683 = vdwg.mxu0
    %v1684 = vand.u32 %v1090, 4294901760
    %1685 = vmatprep.subr.mxu0 %v1684
    %v1686 = vand.u32 %v1089, 4294901760
    %1687 = vmatpush1.msra.mxu0 %v1686
    %v1688 = vand.u32 %v1092, 4294901760
    %1689 = vmatprep.subr.mxu0 %v1688
    %v1690 = vand.u32 %v1091, 4294901760
    %1691 = vmatpush1.msra.mxu0 %v1690
    %v1692 = vand.u32 %v1094, 4294901760
    %1693 = vmatprep.subr.mxu0 %v1692
    %v1694 = vand.u32 %v1093, 4294901760
    %1695 = vmatpush1.msra.mxu0 %v1694
    %v1696 = vand.u32 %v1096, 4294901760
    %1697 = vmatprep.subr.mxu0 %v1696
    %v1698 = vand.u32 %v1095, 4294901760
    %1699 = vmatpush1.msra.mxu0 %v1698
    %v1700 = vand.u32 %v1098, 4294901760
    %1701 = vmatprep.subr.mxu0 %v1700
    %v1702 = vand.u32 %v1097, 4294901760
    %1703 = vmatpush1.msra.mxu0 %v1702
    %v1704 = vand.u32 %v1100, 4294901760
    %1705 = vmatprep.subr.mxu0 %v1704
    %v1706 = vand.u32 %v1099, 4294901760
    %1707 = vmatpush1.msra.mxu0 %v1706
    %v1708 = vand.u32 %v1102, 4294901760
    %1709 = vmatprep.subr.mxu0 %v1708
    %v1710 = vand.u32 %v1101, 4294901760
    %1711 = vmatpush1.msra.mxu0 %v1710
    %v1712 = vand.u32 %v1104, 4294901760
    %1713 = vmatprep.subr.mxu0 %v1712
    %v1714 = vand.u32 %v1103, 4294901760
    %1715 = vmatpush1.msra.mxu0 %v1714
    %1716 = vmatprep.subr.mxu0 0.0
    %1717 = vmatpush1.msra.mxu0 0.0
    %1718 = vmatprep.subr.mxu0 0.0
    %1719 = vmatpush1.msra.mxu0 0.0
    %1720 = vmatprep.subr.mxu0 0.0
    %1721 = vmatpush1.msra.mxu0 0.0
    %1722 = vmatprep.subr.mxu0 0.0
    %1723 = vmatpush1.msra.mxu0 0.0
    %1724 = vmatprep.subr.mxu0 0.0
    %1725 = vmatpush1.msra.mxu0 0.0
    %1726 = vmatprep.subr.mxu0 0.0
    %1727 = vmatpush1.msra.mxu0 0.0
    %1728 = vmatprep.subr.mxu0 0.0
    %1729 = vmatpush1.msra.mxu0 0.0
    %1730 = vmatprep.subr.mxu0 0.0
    %1731 = vmatpush1.msra.mxu0 0.0
    %1732 = vmatprep.subr.mxu0 0.0
    %1733 = vmatpush1.msra.mxu0 0.0
    %1734 = vmatprep.subr.mxu0 0.0
    %1735 = vmatpush1.msra.mxu0 0.0
    %1736 = vmatprep.subr.mxu0 0.0
    %1737 = vmatpush1.msra.mxu0 0.0
    %1738 = vmatprep.subr.mxu0 0.0
    %1739 = vmatpush1.msra.mxu0 0.0
    %1740 = vmatprep.subr.mxu0 0.0
    %1741 = vmatpush1.msra.mxu0 0.0
    %1742 = vmatprep.subr.mxu0 0.0
    %1743 = vmatpush1.msra.mxu0 0.0
    %1744 = vmatprep.subr.mxu0 0.0
    %1745 = vmatpush1.msra.mxu0 0.0
    %1746 = vmatprep.subr.mxu0 0.0
    %1747 = vmatpush1.msra.mxu0 0.0
    %1748 = vmatprep.subr.mxu0 0.0
    %1749 = vmatpush1.msra.mxu0 0.0
    %1750 = vmatprep.subr.mxu0 0.0
    %1751 = vmatpush1.msra.mxu0 0.0
    %1752 = vmatprep.subr.mxu0 0.0
    %1753 = vmatpush1.msra.mxu0 0.0
    %1754 = vmatprep.subr.mxu0 0.0
    %1755 = vmatpush1.msra.mxu0 0.0
    %1756 = vmatprep.subr.mxu0 0.0
    %1757 = vmatpush1.msra.mxu0 0.0
    %1758 = vmatprep.subr.mxu0 0.0
    %1759 = vmatpush1.msra.mxu0 0.0
    %1760 = vmatprep.subr.mxu0 0.0
    %1761 = vmatpush1.msra.mxu0 0.0
    %1762 = vmatprep.subr.mxu0 0.0
    %1763 = vmatpush1.msra.mxu0 0.0
    %1764 = vmatprep.mubr.f32.mxu0 0.0
    %v1765 = vand.u32 %v1130, 4294901760
    %v1766 = vsub.f32 %v1130, %v1765
    %v1767 = vand.u32 %v1766, 4294901760
    %1768 = vmatmul.mubr.f32.gmra.mrb[0].mxu0 %v1767
    %v1769 = vpop.f32.mrb[0].mxu0
    %v1770 = vadd.f32 %v1624, %v1769
    %v1771 = vpop.f32.mrb[0].mxu0
    %v1772 = vadd.f32 %v1626, %v1771
    %1773 = vmatprep.mubr.f32.mxu0 0.0
    %v1774 = vand.u32 %v1133, 4294901760
    %v1775 = vsub.f32 %v1133, %v1774
    %v1776 = vand.u32 %v1775, 4294901760
    %1777 = vmatmul.mubr.f32.gmra.mrb[0].mxu0 %v1776
    %v1778 = vpop.f32.mrb[0].mxu0
    %v1779 = vadd.f32 %v1632, %v1778
    %v1780 = vpop.f32.mrb[0].mxu0
    %v1781 = vadd.f32 %v1634, %v1780
    %1782 = vmatprep.mubr.f32.mxu0 0.0
    %v1783 = vand.u32 %v1136, 4294901760
    %v1784 = vsub.f32 %v1136, %v1783
    %v1785 = vand.u32 %v1784, 4294901760
    %1786 = vmatmul.mubr.f32.gmra.mrb[0].mxu0 %v1785
    %v1787 = vpop.f32.mrb[0].mxu0
    %v1788 = vadd.f32 %v1640, %v1787
    %v1789 = vpop.f32.mrb[0].mxu0
    %v1790 = vadd.f32 %v1642, %v1789
    %1791 = vmatprep.mubr.f32.mxu0 0.0
    %v1792 = vand.u32 %v1139, 4294901760
    %v1793 = vsub.f32 %v1139, %v1792
    %v1794 = vand.u32 %v1793, 4294901760
    %1795 = vmatmul.mubr.f32.gmra.mrb[0].mxu0 %v1794
    %v1796 = vpop.f32.mrb[0].mxu0
    %v1797 = vadd.f32 %v1648, %v1796
    %v1798 = vpop.f32.mrb[0].mxu0
    %v1799 = vadd.f32 %v1650, %v1798
    %1800 = vmatprep.mubr.f32.mxu0 0.0
    %v1801 = vand.u32 %v1142, 4294901760
    %v1802 = vsub.f32 %v1142, %v1801
    %v1803 = vand.u32 %v1802, 4294901760
    %1804 = vmatmul.mubr.f32.gmra.mrb[0].mxu0 %v1803
    %v1805 = vpop.f32.mrb[0].mxu0
    %v1806 = vadd.f32 %v1656, %v1805
    %v1807 = vpop.f32.mrb[0].mxu0
    %v1808 = vadd.f32 %v1658, %v1807
    %1809 = vmatprep.mubr.f32.mxu0 0.0
    %v1810 = vand.u32 %v1145, 4294901760
    %v1811 = vsub.f32 %v1145, %v1810
    %v1812 = vand.u32 %v1811, 4294901760
    %1813 = vmatmul.mubr.f32.gmra.mrb[0].mxu0 %v1812
    %v1814 = vpop.f32.mrb[0].mxu0
    %v1815 = vadd.f32 %v1664, %v1814
    %v1816 = vpop.f32.mrb[0].mxu0
    %v1817 = vadd.f32 %v1666, %v1816
    %1818 = vmatprep.mubr.f32.mxu0 0.0
    %v1819 = vand.u32 %v1148, 4294901760
    %v1820 = vsub.f32 %v1148, %v1819
    %v1821 = vand.u32 %v1820, 4294901760
    %1822 = vmatmul.mubr.f32.gmra.mrb[0].mxu0 %v1821
    %v1823 = vpop.f32.mrb[0].mxu0
    %v1824 = vadd.f32 %v1672, %v1823
    %v1825 = vpop.f32.mrb[0].mxu0
    %v1826 = vadd.f32 %v1674, %v1825
    %1827 = vmatprep.mubr.f32.mxu0 0.0
    %v1828 = vand.u32 %v1151, 4294901760
    %v1829 = vsub.f32 %v1151, %v1828
    %v1830 = vand.u32 %v1829, 4294901760
    %1831 = vmatmul.mubr.f32.gmra.mrb[0].mxu0 %v1830
    %v1832 = vpop.f32.mrb[0].mxu0
    %v1833 = vadd.f32 %v1680, %v1832
    %v1834 = vpop.f32.mrb[0].mxu0
    %v1835 = vadd.f32 %v1682, %v1834
    %1836 = vdwg.mxu0
    %v1837 = vand.u32 %v1090, 4294901760
    %v1838 = vsub.f32 %v1090, %v1837
    %v1839 = vand.u32 %v1838, 4294901760
    %1840 = vmatprep.subr.mxu0 %v1839
    %v1841 = vand.u32 %v1089, 4294901760
    %v1842 = vsub.f32 %v1089, %v1841
    %v1843 = vand.u32 %v1842, 4294901760
    %1844 = vmatpush1.msra.mxu0 %v1843
    %v1845 = vand.u32 %v1092, 4294901760
    %v1846 = vsub.f32 %v1092, %v1845
    %v1847 = vand.u32 %v1846, 4294901760
    %1848 = vmatprep.subr.mxu0 %v1847
    %v1849 = vand.u32 %v1091, 4294901760
    %v1850 = vsub.f32 %v1091, %v1849
    %v1851 = vand.u32 %v1850, 4294901760
    %1852 = vmatpush1.msra.mxu0 %v1851
    %v1853 = vand.u32 %v1094, 4294901760
    %v1854 = vsub.f32 %v1094, %v1853
    %v1855 = vand.u32 %v1854, 4294901760
    %1856 = vmatprep.subr.mxu0 %v1855
    %v1857 = vand.u32 %v1093, 4294901760
    %v1858 = vsub.f32 %v1093, %v1857
    %v1859 = vand.u32 %v1858, 4294901760
    %1860 = vmatpush1.msra.mxu0 %v1859
    %v1861 = vand.u32 %v1096, 4294901760
    %v1862 = vsub.f32 %v1096, %v1861
    %v1863 = vand.u32 %v1862, 4294901760
    %1864 = vmatprep.subr.mxu0 %v1863
    %v1865 = vand.u32 %v1095, 4294901760
    %v1866 = vsub.f32 %v1095, %v1865
    %v1867 = vand.u32 %v1866, 4294901760
    %1868 = vmatpush1.msra.mxu0 %v1867
    %v1869 = vand.u32 %v1098, 4294901760
    %v1870 = vsub.f32 %v1098, %v1869
    %v1871 = vand.u32 %v1870, 4294901760
    %1872 = vmatprep.subr.mxu0 %v1871
    %v1873 = vand.u32 %v1097, 4294901760
    %v1874 = vsub.f32 %v1097, %v1873
    %v1875 = vand.u32 %v1874, 4294901760
    %1876 = vmatpush1.msra.mxu0 %v1875
    %v1877 = vand.u32 %v1100, 4294901760
    %v1878 = vsub.f32 %v1100, %v1877
    %v1879 = vand.u32 %v1878, 4294901760
    %1880 = vmatprep.subr.mxu0 %v1879
    %v1881 = vand.u32 %v1099, 4294901760
    %v1882 = vsub.f32 %v1099, %v1881
    %v1883 = vand.u32 %v1882, 4294901760
    %1884 = vmatpush1.msra.mxu0 %v1883
    %v1885 = vand.u32 %v1102, 4294901760
    %v1886 = vsub.f32 %v1102, %v1885
    %v1887 = vand.u32 %v1886, 4294901760
    %1888 = vmatprep.subr.mxu0 %v1887
    %v1889 = vand.u32 %v1101, 4294901760
    %v1890 = vsub.f32 %v1101, %v1889
    %v1891 = vand.u32 %v1890, 4294901760
    %1892 = vmatpush1.msra.mxu0 %v1891
    %v1893 = vand.u32 %v1104, 4294901760
    %v1894 = vsub.f32 %v1104, %v1893
    %v1895 = vand.u32 %v1894, 4294901760
    %1896 = vmatprep.subr.mxu0 %v1895
    %v1897 = vand.u32 %v1103, 4294901760
    %v1898 = vsub.f32 %v1103, %v1897
    %v1899 = vand.u32 %v1898, 4294901760
    %1900 = vmatpush1.msra.mxu0 %v1899
    %1901 = vmatprep.subr.mxu0 0.0
    %1902 = vmatpush1.msra.mxu0 0.0
    %1903 = vmatprep.subr.mxu0 0.0
    %1904 = vmatpush1.msra.mxu0 0.0
    %1905 = vmatprep.subr.mxu0 0.0
    %1906 = vmatpush1.msra.mxu0 0.0
    %1907 = vmatprep.subr.mxu0 0.0
    %1908 = vmatpush1.msra.mxu0 0.0
    %1909 = vmatprep.subr.mxu0 0.0
    %1910 = vmatpush1.msra.mxu0 0.0
    %1911 = vmatprep.subr.mxu0 0.0
    %1912 = vmatpush1.msra.mxu0 0.0
    %1913 = vmatprep.subr.mxu0 0.0
    %1914 = vmatpush1.msra.mxu0 0.0
    %1915 = vmatprep.subr.mxu0 0.0
    %1916 = vmatpush1.msra.mxu0 0.0
    %1917 = vmatprep.subr.mxu0 0.0
    %1918 = vmatpush1.msra.mxu0 0.0
    %1919 = vmatprep.subr.mxu0 0.0
    %1920 = vmatpush1.msra.mxu0 0.0
    %1921 = vmatprep.subr.mxu0 0.0
    %1922 = vmatpush1.msra.mxu0 0.0
    %1923 = vmatprep.subr.mxu0 0.0
    %1924 = vmatpush1.msra.mxu0 0.0
    %1925 = vmatprep.subr.mxu0 0.0
    %1926 = vmatpush1.msra.mxu0 0.0
    %1927 = vmatprep.subr.mxu0 0.0
    %1928 = vmatpush1.msra.mxu0 0.0
    %1929 = vmatprep.subr.mxu0 0.0
    %1930 = vmatpush1.msra.mxu0 0.0
    %1931 = vmatprep.subr.mxu0 0.0
    %1932 = vmatpush1.msra.mxu0 0.0
    %1933 = vmatprep.subr.mxu0 0.0
    %1934 = vmatpush1.msra.mxu0 0.0
    %1935 = vmatprep.subr.mxu0 0.0
    %1936 = vmatpush1.msra.mxu0 0.0
    %1937 = vmatprep.subr.mxu0 0.0
    %1938 = vmatpush1.msra.mxu0 0.0
    %1939 = vmatprep.subr.mxu0 0.0
    %1940 = vmatpush1.msra.mxu0 0.0
    %1941 = vmatprep.subr.mxu0 0.0
    %1942 = vmatpush1.msra.mxu0 0.0
    %1943 = vmatprep.subr.mxu0 0.0
    %1944 = vmatpush1.msra.mxu0 0.0
    %1945 = vmatprep.subr.mxu0 0.0
    %1946 = vmatpush1.msra.mxu0 0.0
    %1947 = vmatprep.subr.mxu0 0.0
    %1948 = vmatpush1.msra.mxu0 0.0
    %1949 = vmatprep.mubr.f32.mxu0 0.0
    %v1950 = vand.u32 %v1130, 4294901760
    %1951 = vmatmul.mubr.f32.gmra.mrb[0].mxu0 %v1950
    %v1952 = vpop.f32.mrb[0].mxu0
    %v1953 = vadd.f32 %v1770, %v1952
    %v1954 = vpop.f32.mrb[0].mxu0
    %v1955 = vadd.f32 %v1772, %v1954
    %1956 = vmatprep.mubr.f32.mxu0 0.0
    %v1957 = vand.u32 %v1133, 4294901760
    %1958 = vmatmul.mubr.f32.gmra.mrb[0].mxu0 %v1957
    %v1959 = vpop.f32.mrb[0].mxu0
    %v1960 = vadd.f32 %v1779, %v1959
    %v1961 = vpop.f32.mrb[0].mxu0
    %v1962 = vadd.f32 %v1781, %v1961
    %1963 = vmatprep.mubr.f32.mxu0 0.0
    %v1964 = vand.u32 %v1136, 4294901760
    %1965 = vmatmul.mubr.f32.gmra.mrb[0].mxu0 %v1964
    %v1966 = vpop.f32.mrb[0].mxu0
    %v1967 = vadd.f32 %v1788, %v1966
    %v1968 = vpop.f32.mrb[0].mxu0
    %v1969 = vadd.f32 %v1790, %v1968
    %1970 = vmatprep.mubr.f32.mxu0 0.0
    %v1971 = vand.u32 %v1139, 4294901760
    %1972 = vmatmul.mubr.f32.gmra.mrb[0].mxu0 %v1971
    %v1973 = vpop.f32.mrb[0].mxu0
    %v1974 = vadd.f32 %v1797, %v1973
    %v1975 = vpop.f32.mrb[0].mxu0
    %v1976 = vadd.f32 %v1799, %v1975
    %1977 = vmatprep.mubr.f32.mxu0 0.0
    %v1978 = vand.u32 %v1142, 4294901760
    %1979 = vmatmul.mubr.f32.gmra.mrb[0].mxu0 %v1978
    %v1980 = vpop.f32.mrb[0].mxu0
    %v1981 = vadd.f32 %v1806, %v1980
    %v1982 = vpop.f32.mrb[0].mxu0
    %v1983 = vadd.f32 %v1808, %v1982
    %1984 = vmatprep.mubr.f32.mxu0 0.0
    %v1985 = vand.u32 %v1145, 4294901760
    %1986 = vmatmul.mubr.f32.gmra.mrb[0].mxu0 %v1985
    %v1987 = vpop.f32.mrb[0].mxu0
    %v1988 = vadd.f32 %v1815, %v1987
    %v1989 = vpop.f32.mrb[0].mxu0
    %v1990 = vadd.f32 %v1817, %v1989
    %1991 = vmatprep.mubr.f32.mxu0 0.0
    %v1992 = vand.u32 %v1148, 4294901760
    %1993 = vmatmul.mubr.f32.gmra.mrb[0].mxu0 %v1992
    %v1994 = vpop.f32.mrb[0].mxu0
    %v1995 = vadd.f32 %v1824, %v1994
    %v1996 = vpop.f32.mrb[0].mxu0
    %v1997 = vadd.f32 %v1826, %v1996
    %1998 = vmatprep.mubr.f32.mxu0 0.0
    %v1999 = vand.u32 %v1151, 4294901760
    %2000 = vmatmul.mubr.f32.gmra.mrb[0].mxu0 %v1999
    %v2001 = vpop.f32.mrb[0].mxu0
    %v2002 = vadd.f32 %v1833, %v2001
    %v2003 = vpop.f32.mrb[0].mxu0
    %v2004 = vadd.f32 %v1835, %v2003
    %2005 = vdwg.mxu0
    %v2006 = vand.u32 %v1090, 4294901760
    %2007 = vmatprep.subr.mxu0 %v2006
    %v2008 = vand.u32 %v1089, 4294901760
    %2009 = vmatpush1.msra.mxu0 %v2008
    %v2010 = vand.u32 %v1092, 4294901760
    %2011 = vmatprep.subr.mxu0 %v2010
    %v2012 = vand.u32 %v1091, 4294901760
    %2013 = vmatpush1.msra.mxu0 %v2012
    %v2014 = vand.u32 %v1094, 4294901760
    %2015 = vmatprep.subr.mxu0 %v2014
    %v2016 = vand.u32 %v1093, 4294901760
    %2017 = vmatpush1.msra.mxu0 %v2016
    %v2018 = vand.u32 %v1096, 4294901760
    %2019 = vmatprep.subr.mxu0 %v2018
    %v2020 = vand.u32 %v1095, 4294901760
    %2021 = vmatpush1.msra.mxu0 %v2020
    %v2022 = vand.u32 %v1098, 4294901760
    %2023 = vmatprep.subr.mxu0 %v2022
    %v2024 = vand.u32 %v1097, 4294901760
    %2025 = vmatpush1.msra.mxu0 %v2024
    %v2026 = vand.u32 %v1100, 4294901760
    %2027 = vmatprep.subr.mxu0 %v2026
    %v2028 = vand.u32 %v1099, 4294901760
    %2029 = vmatpush1.msra.mxu0 %v2028
    %v2030 = vand.u32 %v1102, 4294901760
    %2031 = vmatprep.subr.mxu0 %v2030
    %v2032 = vand.u32 %v1101, 4294901760
    %2033 = vmatpush1.msra.mxu0 %v2032
    %v2034 = vand.u32 %v1104, 4294901760
    %2035 = vmatprep.subr.mxu0 %v2034
    %v2036 = vand.u32 %v1103, 4294901760
    %2037 = vmatpush1.msra.mxu0 %v2036
    %2038 = vmatprep.subr.mxu0 0.0
    %2039 = vmatpush1.msra.mxu0 0.0
    %2040 = vmatprep.subr.mxu0 0.0
    %2041 = vmatpush1.msra.mxu0 0.0
    %2042 = vmatprep.subr.mxu0 0.0
    %2043 = vmatpush1.msra.mxu0 0.0
    %2044 = vmatprep.subr.mxu0 0.0
    %2045 = vmatpush1.msra.mxu0 0.0
    %2046 = vmatprep.subr.mxu0 0.0
    %2047 = vmatpush1.msra.mxu0 0.0
    %2048 = vmatprep.subr.mxu0 0.0
    %2049 = vmatpush1.msra.mxu0 0.0
    %2050 = vmatprep.subr.mxu0 0.0
    %2051 = vmatpush1.msra.mxu0 0.0
    %2052 = vmatprep.subr.mxu0 0.0
    %2053 = vmatpush1.msra.mxu0 0.0
    %2054 = vmatprep.subr.mxu0 0.0
    %2055 = vmatpush1.msra.mxu0 0.0
    %2056 = vmatprep.subr.mxu0 0.0
    %2057 = vmatpush1.msra.mxu0 0.0
    %2058 = vmatprep.subr.mxu0 0.0
    %2059 = vmatpush1.msra.mxu0 0.0
    %2060 = vmatprep.subr.mxu0 0.0
    %2061 = vmatpush1.msra.mxu0 0.0
    %2062 = vmatprep.subr.mxu0 0.0
    %2063 = vmatpush1.msra.mxu0 0.0
    %2064 = vmatprep.subr.mxu0 0.0
    %2065 = vmatpush1.msra.mxu0 0.0
    %2066 = vmatprep.subr.mxu0 0.0
    %2067 = vmatpush1.msra.mxu0 0.0
    %2068 = vmatprep.subr.mxu0 0.0
    %2069 = vmatpush1.msra.mxu0 0.0
    %2070 = vmatprep.subr.mxu0 0.0
    %2071 = vmatpush1.msra.mxu0 0.0
    %2072 = vmatprep.subr.mxu0 0.0
    %2073 = vmatpush1.msra.mxu0 0.0
    %2074 = vmatprep.subr.mxu0 0.0
    %2075 = vmatpush1.msra.mxu0 0.0
    %2076 = vmatprep.subr.mxu0 0.0
    %2077 = vmatpush1.msra.mxu0 0.0
    %2078 = vmatprep.subr.mxu0 0.0
    %2079 = vmatpush1.msra.mxu0 0.0
    %2080 = vmatprep.subr.mxu0 0.0
    %2081 = vmatpush1.msra.mxu0 0.0
    %2082 = vmatprep.subr.mxu0 0.0
    %2083 = vmatpush1.msra.mxu0 0.0
    %2084 = vmatprep.subr.mxu0 0.0
    %2085 = vmatpush1.msra.mxu0 0.0
    %2086 = vmatprep.mubr.f32.mxu0 0.0
    %v2087 = vand.u32 %v1130, 4294901760
    %2088 = vmatmul.mubr.f32.gmra.mrb[0].mxu0 %v2087
    %v2089 = vpop.f32.mrb[0].mxu0
    %v2090 = vadd.f32 %v1953, %v2089
    %v2091 = vpop.f32.mrb[0].mxu0
    %v2092 = vadd.f32 %v1955, %v2091
    %2093 = vmatprep.mubr.f32.mxu0 0.0
    %v2094 = vand.u32 %v1133, 4294901760
    %2095 = vmatmul.mubr.f32.gmra.mrb[0].mxu0 %v2094
    %v2096 = vpop.f32.mrb[0].mxu0
    %v2097 = vadd.f32 %v1960, %v2096
    %v2098 = vpop.f32.mrb[0].mxu0
    %v2099 = vadd.f32 %v1962, %v2098
    %2100 = vmatprep.mubr.f32.mxu0 0.0
    %v2101 = vand.u32 %v1136, 4294901760
    %2102 = vmatmul.mubr.f32.gmra.mrb[0].mxu0 %v2101
    %v2103 = vpop.f32.mrb[0].mxu0
    %v2104 = vadd.f32 %v1967, %v2103
    %v2105 = vpop.f32.mrb[0].mxu0
    %v2106 = vadd.f32 %v1969, %v2105
    %2107 = vmatprep.mubr.f32.mxu0 0.0
    %v2108 = vand.u32 %v1139, 4294901760
    %2109 = vmatmul.mubr.f32.gmra.mrb[0].mxu0 %v2108
    %v2110 = vpop.f32.mrb[0].mxu0
    %v2111 = vadd.f32 %v1974, %v2110
    %v2112 = vpop.f32.mrb[0].mxu0
    %v2113 = vadd.f32 %v1976, %v2112
    %2114 = vmatprep.mubr.f32.mxu0 0.0
    %v2115 = vand.u32 %v1142, 4294901760
    %2116 = vmatmul.mubr.f32.gmra.mrb[0].mxu0 %v2115
    %v2117 = vpop.f32.mrb[0].mxu0
    %v2118 = vadd.f32 %v1981, %v2117
    %v2119 = vpop.f32.mrb[0].mxu0
    %v2120 = vadd.f32 %v1983, %v2119
    %2121 = vmatprep.mubr.f32.mxu0 0.0
    %v2122 = vand.u32 %v1145, 4294901760
    %2123 = vmatmul.mubr.f32.gmra.mrb[0].mxu0 %v2122
    %v2124 = vpop.f32.mrb[0].mxu0
    %v2125 = vadd.f32 %v1988, %v2124
    %v2126 = vpop.f32.mrb[0].mxu0
    %v2127 = vadd.f32 %v1990, %v2126
    %2128 = vmatprep.mubr.f32.mxu0 0.0
    %v2129 = vand.u32 %v1148, 4294901760
    %2130 = vmatmul.mubr.f32.gmra.mrb[0].mxu0 %v2129
    %v2131 = vpop.f32.mrb[0].mxu0
    %v2132 = vadd.f32 %v1995, %v2131
    %v2133 = vpop.f32.mrb[0].mxu0
    %v2134 = vadd.f32 %v1997, %v2133
    %2135 = vmatprep.mubr.f32.mxu0 0.0
    %v2136 = vand.u32 %v1151, 4294901760
    %2137 = vmatmul.mubr.f32.gmra.mrb[0].mxu0 %v2136
    %v2138 = vpop.f32.mrb[0].mxu0
    %v2139 = vadd.f32 %v2002, %v2138
    %v2140 = vpop.f32.mrb[0].mxu0
    %v2141 = vadd.f32 %v2004, %v2140
    %2142 = vdwg.mxu0
    %v2143 = vadd.f32 %v50, %v2090
    %v2144 = vadd.f32 %v51, %v2092
    %v2145 = vadd.f32 %v52, %v2097
    %v2146 = vadd.f32 %v53, %v2099
    %v2147 = vadd.f32 %v54, %v2104
    %v2148 = vadd.f32 %v55, %v2106
    %v2149 = vadd.f32 %v56, %v2111
    %v2150 = vadd.f32 %v57, %v2113
    %v2151 = vadd.f32 %v58, %v2118
    %v2152 = vadd.f32 %v59, %v2120
    %v2153 = vadd.f32 %v60, %v2125
    %v2154 = vadd.f32 %v61, %v2127
    %v2155 = vadd.f32 %v62, %v2132
    %v2156 = vadd.f32 %v63, %v2134
    %v2157 = vadd.f32 %v64, %v2139
    %v2158 = vadd.f32 %v65, %v2141
    %2159 = vst [vmem:[#allocation2 + $0x100] sm:$0xff] %v2143
    %2160 = vst [vmem:[#allocation2 + $0x108] sm:$0xff] %v2144
    %2161 = vst [vmem:[#allocation2 + $0x110] sm:$0xff] %v2145
    %2162 = vst [vmem:[#allocation2 + $0x118] sm:$0xff] %v2146
    %2163 = vst [vmem:[#allocation2 + $0x120] sm:$0xff] %v2147
    %2164 = vst [vmem:[#allocation2 + $0x128] sm:$0xff] %v2148
    %2165 = vst [vmem:[#allocation2 + $0x130] sm:$0xff] %v2149
    %2166 = vst [vmem:[#allocation2 + $0x138] sm:$0xff] %v2150
    %2167 = vst [vmem:[#allocation2 + $0x140] sm:$0xff] %v2151
    %2168 = vst [vmem:[#allocation2 + $0x148] sm:$0xff] %v2152
    %2169 = vst [vmem:[#allocation2 + $0x150] sm:$0xff] %v2153
    %2170 = vst [vmem:[#allocation2 + $0x158] sm:$0xff] %v2154
    %2171 = vst [vmem:[#allocation2 + $0x160] sm:$0xff] %v2155
    %2172 = vst [vmem:[#allocation2 + $0x168] sm:$0xff] %v2156
    %2173 = vst [vmem:[#allocation2 + $0x170] sm:$0xff] %v2157
    %2174 = vst [vmem:[#allocation2 + $0x178] sm:$0xff] %v2158
    %v2175 = vld [vmem:[%s1] sm:$0xff]
    %v2176 = vld [vmem:[%s1 + $0x8] sm:$0xff]
    %v2177 = vld [vmem:[%s1 + $0x10] sm:$0xff]
    %v2178 = vld [vmem:[%s1 + $0x18] sm:$0xff]
    %v2179 = vld [vmem:[%s1 + $0x20] sm:$0xff]
    %v2180 = vld [vmem:[%s1 + $0x28] sm:$0xff]
    %v2181 = vld [vmem:[%s1 + $0x30] sm:$0xff]
    %v2182 = vld [vmem:[%s1 + $0x38] sm:$0xff]
    %v2183 = vld [vmem:[%s1 + $0x40] sm:$0xff]
    %v2184 = vld [vmem:[%s1 + $0x48] sm:$0xff]
    %v2185 = vld [vmem:[%s1 + $0x50] sm:$0xff]
    %v2186 = vld [vmem:[%s1 + $0x58] sm:$0xff]
    %v2187 = vld [vmem:[%s1 + $0x60] sm:$0xff]
    %v2188 = vld [vmem:[%s1 + $0x68] sm:$0xff]
    %v2189 = vld [vmem:[%s1 + $0x70] sm:$0xff]
    %v2190 = vld [vmem:[%s1 + $0x78] sm:$0xff]
    %v2191 = vld [vmem:[%s1 + $0x80] sm:$0xff]
    %v2192 = vld [vmem:[%s1 + $0x88] sm:$0xff]
    %v2193 = vld [vmem:[%s1 + $0x90] sm:$0xff]
    %v2194 = vld [vmem:[%s1 + $0x98] sm:$0xff]
    %v2195 = vld [vmem:[%s1 + $0xa0] sm:$0xff]
    %v2196 = vld [vmem:[%s1 + $0xa8] sm:$0xff]
    %v2197 = vld [vmem:[%s1 + $0xb0] sm:$0xff]
    %v2198 = vld [vmem:[%s1 + $0xb8] sm:$0xff]
    %v2199 = vld [vmem:[%s1 + $0xc0] sm:$0xff]
    %v2200 = vld [vmem:[%s1 + $0xc8] sm:$0xff]
    %v2201 = vld [vmem:[%s1 + $0xd0] sm:$0xff]
    %v2202 = vld [vmem:[%s1 + $0xd8] sm:$0xff]
    %v2203 = vld [vmem:[%s1 + $0xe0] sm:$0xff]
    %v2204 = vld [vmem:[%s1 + $0xe8] sm:$0xff]
    %v2205 = vld [vmem:[%s1 + $0xf0] sm:$0xff]
    %v2206 = vld [vmem:[%s1 + $0xf8] sm:$0xff]
    %v2207 = vld [vmem:[#allocation2] sm:$0xff]
    %v2208 = vld [vmem:[#allocation2 + $0x8] sm:$0xff]
    %v2209 = vld [vmem:[#allocation2 + $0x10] sm:$0xff]
    %v2210 = vld [vmem:[#allocation2 + $0x18] sm:$0xff]
    %v2211 = vld [vmem:[#allocation2 + $0x20] sm:$0xff]
    %v2212 = vld [vmem:[#allocation2 + $0x28] sm:$0xff]
    %v2213 = vld [vmem:[#allocation2 + $0x30] sm:$0xff]
    %v2214 = vld [vmem:[#allocation2 + $0x38] sm:$0xff]
    %v2215 = vld [vmem:[#allocation2 + $0x40] sm:$0xff]
    %v2216 = vld [vmem:[#allocation2 + $0x48] sm:$0xff]
    %v2217 = vld [vmem:[#allocation2 + $0x50] sm:$0xff]
    %v2218 = vld [vmem:[#allocation2 + $0x58] sm:$0xff]
    %v2219 = vld [vmem:[#allocation2 + $0x60] sm:$0xff]
    %v2220 = vld [vmem:[#allocation2 + $0x68] sm:$0xff]
    %v2221 = vld [vmem:[#allocation2 + $0x70] sm:$0xff]
    %v2222 = vld [vmem:[#allocation2 + $0x78] sm:$0xff]
    %v2223 = vld [vmem:[#allocation2 + $0x80] sm:$0xff]
    %v2224 = vld [vmem:[#allocation2 + $0x88] sm:$0xff]
    %v2225 = vld [vmem:[#allocation2 + $0x90] sm:$0xff]
    %v2226 = vld [vmem:[#allocation2 + $0x98] sm:$0xff]
    %v2227 = vld [vmem:[#allocation2 + $0xa0] sm:$0xff]
    %v2228 = vld [vmem:[#allocation2 + $0xa8] sm:$0xff]
    %v2229 = vld [vmem:[#allocation2 + $0xb0] sm:$0xff]
    %v2230 = vld [vmem:[#allocation2 + $0xb8] sm:$0xff]
    %v2231 = vld [vmem:[#allocation2 + $0xc0] sm:$0xff]
    %v2232 = vld [vmem:[#allocation2 + $0xc8] sm:$0xff]
    %v2233 = vld [vmem:[#allocation2 + $0xd0] sm:$0xff]
    %v2234 = vld [vmem:[#allocation2 + $0xd8] sm:$0xff]
    %v2235 = vld [vmem:[#allocation2 + $0xe0] sm:$0xff]
    %v2236 = vld [vmem:[#allocation2 + $0xe8] sm:$0xff]
    %v2237 = vld [vmem:[#allocation2 + $0xf0] sm:$0xff]
    %v2238 = vld [vmem:[#allocation2 + $0xf8] sm:$0xff]
    %v2239 = vld [vmem:[#allocation2 + $0x100] sm:$0xff]
    %v2240 = vld [vmem:[#allocation2 + $0x108] sm:$0xff]
    %v2241 = vld [vmem:[#allocation2 + $0x110] sm:$0xff]
    %v2242 = vld [vmem:[#allocation2 + $0x118] sm:$0xff]
    %v2243 = vld [vmem:[#allocation2 + $0x120] sm:$0xff]
    %v2244 = vld [vmem:[#allocation2 + $0x128] sm:$0xff]
    %v2245 = vld [vmem:[#allocation2 + $0x130] sm:$0xff]
    %v2246 = vld [vmem:[#allocation2 + $0x138] sm:$0xff]
    %v2247 = vld [vmem:[#allocation2 + $0x140] sm:$0xff]
    %v2248 = vld [vmem:[#allocation2 + $0x148] sm:$0xff]
    %v2249 = vld [vmem:[#allocation2 + $0x150] sm:$0xff]
    %v2250 = vld [vmem:[#allocation2 + $0x158] sm:$0xff]
    %v2251 = vld [vmem:[#allocation2 + $0x160] sm:$0xff]
    %v2252 = vld [vmem:[#allocation2 + $0x168] sm:$0xff]
    %v2253 = vld [vmem:[#allocation2 + $0x170] sm:$0xff]
    %v2254 = vld [vmem:[#allocation2 + $0x178] sm:$0xff]
    %v2255 = vld [vmem:[%s2] sm:$0xff]
    %v2256 = vld [vmem:[%s2 + $0x8] sm:$0xff]
    %v2257 = vld [vmem:[%s2 + $0x10] sm:$0xff]
    %v2258 = vld [vmem:[%s2 + $0x18] sm:$0xff]
    %v2259 = vld [vmem:[%s2 + $0x20] sm:$0xff]
    %v2260 = vld [vmem:[%s2 + $0x28] sm:$0xff]
    %v2261 = vld [vmem:[%s2 + $0x30] sm:$0xff]
    %v2262 = vld [vmem:[%s2 + $0x38] sm:$0xff]
    %v2263 = vld [vmem:[%s2 + $0x40] sm:$0xff]
    %v2264 = vld [vmem:[%s2 + $0x48] sm:$0xff]
    %v2265 = vld [vmem:[%s2 + $0x50] sm:$0xff]
    %v2266 = vld [vmem:[%s2 + $0x58] sm:$0xff]
    %v2267 = vld [vmem:[%s2 + $0x60] sm:$0xff]
    %v2268 = vld [vmem:[%s2 + $0x68] sm:$0xff]
    %v2269 = vld [vmem:[%s2 + $0x70] sm:$0xff]
    %v2270 = vld [vmem:[%s2 + $0x78] sm:$0xff]
    %v2271 = vld [vmem:[%s2 + $0x80] sm:$0xff]
    %v2272 = vld [vmem:[%s2 + $0x88] sm:$0xff]
    %v2273 = vld [vmem:[%s2 + $0x90] sm:$0xff]
    %v2274 = vld [vmem:[%s2 + $0x98] sm:$0xff]
    %v2275 = vld [vmem:[%s2 + $0xa0] sm:$0xff]
    %v2276 = vld [vmem:[%s2 + $0xa8] sm:$0xff]
    %v2277 = vld [vmem:[%s2 + $0xb0] sm:$0xff]
    %v2278 = vld [vmem:[%s2 + $0xb8] sm:$0xff]
    %v2279 = vld [vmem:[%s2 + $0xc0] sm:$0xff]
    %v2280 = vld [vmem:[%s2 + $0xc8] sm:$0xff]
    %v2281 = vld [vmem:[%s2 + $0xd0] sm:$0xff]
    %v2282 = vld [vmem:[%s2 + $0xd8] sm:$0xff]
    %v2283 = vld [vmem:[%s2 + $0xe0] sm:$0xff]
    %v2284 = vld [vmem:[%s2 + $0xe8] sm:$0xff]
    %v2285 = vld [vmem:[%s2 + $0xf0] sm:$0xff]
    %v2286 = vld [vmem:[%s2 + $0xf8] sm:$0xff]
    %v2288 = vsel %vm74, %v2176, 0
    %v2291 = vsel %vm74, %v2178, 0
    %v2294 = vsel %vm74, %v2180, 0
    %v2297 = vsel %vm74, %v2182, 0
    %v2300 = vsel %vm74, %v2184, 0
    %v2303 = vsel %vm74, %v2186, 0
    %v2306 = vsel %vm74, %v2188, 0
    %v2309 = vsel %vm74, %v2190, 0
    %v2312 = vsel %vm74, %v2192, 0
    %v2315 = vsel %vm74, %v2194, 0
    %v2318 = vsel %vm74, %v2196, 0
    %v2321 = vsel %vm74, %v2198, 0
    %v2324 = vsel %vm74, %v2200, 0
    %v2327 = vsel %vm74, %v2202, 0
    %v2330 = vsel %vm74, %v2204, 0
    %v2333 = vsel %vm74, %v2206, 0
    %v2335 = vand.u32 %v2208, 4294901760
    %2336 = vmatprep.subr.mxu0 %v2335
    %v2337 = vand.u32 %v2207, 4294901760
    %2338 = vmatpush1.msra.mxu0 %v2337
    %v2339 = vand.u32 %v2210, 4294901760
    %2340 = vmatprep.subr.mxu0 %v2339
    %v2341 = vand.u32 %v2209, 4294901760
    %2342 = vmatpush1.msra.mxu0 %v2341
    %v2343 = vand.u32 %v2212, 4294901760
    %2344 = vmatprep.subr.mxu0 %v2343
    %v2345 = vand.u32 %v2211, 4294901760
    %2346 = vmatpush1.msra.mxu0 %v2345
    %v2347 = vand.u32 %v2214, 4294901760
    %2348 = vmatprep.subr.mxu0 %v2347
    %v2349 = vand.u32 %v2213, 4294901760
    %2350 = vmatpush1.msra.mxu0 %v2349
    %v2351 = vand.u32 %v2216, 4294901760
    %2352 = vmatprep.subr.mxu0 %v2351
    %v2353 = vand.u32 %v2215, 4294901760
    %2354 = vmatpush1.msra.mxu0 %v2353
    %v2355 = vand.u32 %v2218, 4294901760
    %2356 = vmatprep.subr.mxu0 %v2355
    %v2357 = vand.u32 %v2217, 4294901760
    %2358 = vmatpush1.msra.mxu0 %v2357
    %v2359 = vand.u32 %v2220, 4294901760
    %2360 = vmatprep.subr.mxu0 %v2359
    %v2361 = vand.u32 %v2219, 4294901760
    %2362 = vmatpush1.msra.mxu0 %v2361
    %v2363 = vand.u32 %v2222, 4294901760
    %2364 = vmatprep.subr.mxu0 %v2363
    %v2365 = vand.u32 %v2221, 4294901760
    %2366 = vmatpush1.msra.mxu0 %v2365
    %v2367 = vand.u32 %v2224, 4294901760
    %2368 = vmatprep.subr.mxu0 %v2367
    %v2369 = vand.u32 %v2223, 4294901760
    %2370 = vmatpush1.msra.mxu0 %v2369
    %v2371 = vand.u32 %v2226, 4294901760
    %2372 = vmatprep.subr.mxu0 %v2371
    %v2373 = vand.u32 %v2225, 4294901760
    %2374 = vmatpush1.msra.mxu0 %v2373
    %v2375 = vand.u32 %v2228, 4294901760
    %2376 = vmatprep.subr.mxu0 %v2375
    %v2377 = vand.u32 %v2227, 4294901760
    %2378 = vmatpush1.msra.mxu0 %v2377
    %v2379 = vand.u32 %v2230, 4294901760
    %2380 = vmatprep.subr.mxu0 %v2379
    %v2381 = vand.u32 %v2229, 4294901760
    %2382 = vmatpush1.msra.mxu0 %v2381
    %v2383 = vand.u32 %v2232, 4294901760
    %2384 = vmatprep.subr.mxu0 %v2383
    %v2385 = vand.u32 %v2231, 4294901760
    %2386 = vmatpush1.msra.mxu0 %v2385
    %v2387 = vand.u32 %v2234, 4294901760
    %2388 = vmatprep.subr.mxu0 %v2387
    %v2389 = vand.u32 %v2233, 4294901760
    %2390 = vmatpush1.msra.mxu0 %v2389
    %v2391 = vand.u32 %v2236, 4294901760
    %2392 = vmatprep.subr.mxu0 %v2391
    %v2393 = vand.u32 %v2235, 4294901760
    %2394 = vmatpush1.msra.mxu0 %v2393
    %v2395 = vand.u32 %v2238, 4294901760
    %2396 = vmatprep.subr.mxu0 %v2395
    %v2397 = vand.u32 %v2237, 4294901760
    %2398 = vmatpush1.msra.mxu0 %v2397
    %v2399 = vand.u32 %v2240, 4294901760
    %2400 = vmatprep.subr.mxu0 %v2399
    %v2401 = vand.u32 %v2239, 4294901760
    %2402 = vmatpush1.msra.mxu0 %v2401
    %v2403 = vand.u32 %v2242, 4294901760
    %2404 = vmatprep.subr.mxu0 %v2403
    %v2405 = vand.u32 %v2241, 4294901760
    %2406 = vmatpush1.msra.mxu0 %v2405
    %v2407 = vand.u32 %v2244, 4294901760
    %2408 = vmatprep.subr.mxu0 %v2407
    %v2409 = vand.u32 %v2243, 4294901760
    %2410 = vmatpush1.msra.mxu0 %v2409
    %v2411 = vand.u32 %v2246, 4294901760
    %2412 = vmatprep.subr.mxu0 %v2411
    %v2413 = vand.u32 %v2245, 4294901760
    %2414 = vmatpush1.msra.mxu0 %v2413
    %v2415 = vand.u32 %v2248, 4294901760
    %2416 = vmatprep.subr.mxu0 %v2415
    %v2417 = vand.u32 %v2247, 4294901760
    %2418 = vmatpush1.msra.mxu0 %v2417
    %v2419 = vand.u32 %v2250, 4294901760
    %2420 = vmatprep.subr.mxu0 %v2419
    %v2421 = vand.u32 %v2249, 4294901760
    %2422 = vmatpush1.msra.mxu0 %v2421
    %v2423 = vand.u32 %v2252, 4294901760
    %2424 = vmatprep.subr.mxu0 %v2423
    %v2425 = vand.u32 %v2251, 4294901760
    %2426 = vmatpush1.msra.mxu0 %v2425
    %v2427 = vand.u32 %v2254, 4294901760
    %2428 = vmatprep.subr.mxu0 %v2427
    %v2429 = vand.u32 %v2253, 4294901760
    %2430 = vmatpush1.msra.mxu0 %v2429
    %2431 = vmatprep.subr.mxu0 0.0
    %2432 = vmatpush1.msra.mxu0 0.0
    %2433 = vmatprep.subr.mxu0 0.0
    %2434 = vmatpush1.msra.mxu0 0.0
    %2435 = vmatprep.subr.mxu0 0.0
    %2436 = vmatpush1.msra.mxu0 0.0
    %2437 = vmatprep.subr.mxu0 0.0
    %2438 = vmatpush1.msra.mxu0 0.0
    %2439 = vmatprep.subr.mxu0 0.0
    %2440 = vmatpush1.msra.mxu0 0.0
    %2441 = vmatprep.subr.mxu0 0.0
    %2442 = vmatpush1.msra.mxu0 0.0
    %2443 = vmatprep.subr.mxu0 0.0
    %2444 = vmatpush1.msra.mxu0 0.0
    %2445 = vmatprep.subr.mxu0 0.0
    %2446 = vmatpush1.msra.mxu0 0.0
    %v2447 = vand.u32 %v2288, 4294901760
    %v2448 = vsub.f32 %v2288, %v2447
    %v2449 = vand.u32 %v2448, 4294901760
    %v2450 = vsub.f32 %v2448, %v2449
    %v2451 = vand.u32 %v2450, 4294901760
    %2452 = vmatprep.mubr.f32.mxu0 %v2451
    %v2453 = vand.u32 %v2175, 4294901760
    %v2454 = vsub.f32 %v2175, %v2453
    %v2455 = vand.u32 %v2454, 4294901760
    %v2456 = vsub.f32 %v2454, %v2455
    %v2457 = vand.u32 %v2456, 4294901760
    %2458 = vmatmul.mubr.f32.gmra.mrb[0].mxu0 %v2457
    %v2459 = vpop.f32.mrb[0].mxu0
    %v2460 = vadd.f32 %v2255, %v2459
    %v2461 = vpop.f32.mrb[0].mxu0
    %v2462 = vadd.f32 %v2256, %v2461
    %v2463 = vand.u32 %v2291, 4294901760
    %v2464 = vsub.f32 %v2291, %v2463
    %v2465 = vand.u32 %v2464, 4294901760
    %v2466 = vsub.f32 %v2464, %v2465
    %v2467 = vand.u32 %v2466, 4294901760
    %2468 = vmatprep.mubr.f32.mxu0 %v2467
    %v2469 = vand.u32 %v2177, 4294901760
    %v2470 = vsub.f32 %v2177, %v2469
    %v2471 = vand.u32 %v2470, 4294901760
    %v2472 = vsub.f32 %v2470, %v2471
    %v2473 = vand.u32 %v2472, 4294901760
    %2474 = vmatmul.mubr.f32.gmra.mrb[0].mxu0 %v2473
    %v2475 = vpop.f32.mrb[0].mxu0
    %v2476 = vadd.f32 %v2257, %v2475
    %v2477 = vpop.f32.mrb[0].mxu0
    %v2478 = vadd.f32 %v2258, %v2477
    %v2479 = vand.u32 %v2294, 4294901760
    %v2480 = vsub.f32 %v2294, %v2479
    %v2481 = vand.u32 %v2480, 4294901760
    %v2482 = vsub.f32 %v2480, %v2481
    %v2483 = vand.u32 %v2482, 4294901760
    %2484 = vmatprep.mubr.f32.mxu0 %v2483
    %v2485 = vand.u32 %v2179, 4294901760
    %v2486 = vsub.f32 %v2179, %v2485
    %v2487 = vand.u32 %v2486, 4294901760
    %v2488 = vsub.f32 %v2486, %v2487
    %v2489 = vand.u32 %v2488, 4294901760
    %2490 = vmatmul.mubr.f32.gmra.mrb[0].mxu0 %v2489
    %v2491 = vpop.f32.mrb[0].mxu0
    %v2492 = vadd.f32 %v2259, %v2491
    %v2493 = vpop.f32.mrb[0].mxu0
    %v2494 = vadd.f32 %v2260, %v2493
    %v2495 = vand.u32 %v2297, 4294901760
    %v2496 = vsub.f32 %v2297, %v2495
    %v2497 = vand.u32 %v2496, 4294901760
    %v2498 = vsub.f32 %v2496, %v2497
    %v2499 = vand.u32 %v2498, 4294901760
    %2500 = vmatprep.mubr.f32.mxu0 %v2499
    %v2501 = vand.u32 %v2181, 4294901760
    %v2502 = vsub.f32 %v2181, %v2501
    %v2503 = vand.u32 %v2502, 4294901760
    %v2504 = vsub.f32 %v2502, %v2503
    %v2505 = vand.u32 %v2504, 4294901760
    %2506 = vmatmul.mubr.f32.gmra.mrb[0].mxu0 %v2505
    %v2507 = vpop.f32.mrb[0].mxu0
    %v2508 = vadd.f32 %v2261, %v2507
    %v2509 = vpop.f32.mrb[0].mxu0
    %v2510 = vadd.f32 %v2262, %v2509
    %v2511 = vand.u32 %v2300, 4294901760
    %v2512 = vsub.f32 %v2300, %v2511
    %v2513 = vand.u32 %v2512, 4294901760
    %v2514 = vsub.f32 %v2512, %v2513
    %v2515 = vand.u32 %v2514, 4294901760
    %2516 = vmatprep.mubr.f32.mxu0 %v2515
    %v2517 = vand.u32 %v2183, 4294901760
    %v2518 = vsub.f32 %v2183, %v2517
    %v2519 = vand.u32 %v2518, 4294901760
    %v2520 = vsub.f32 %v2518, %v2519
    %v2521 = vand.u32 %v2520, 4294901760
    %2522 = vmatmul.mubr.f32.gmra.mrb[0].mxu0 %v2521
    %v2523 = vpop.f32.mrb[0].mxu0
    %v2524 = vadd.f32 %v2263, %v2523
    %v2525 = vpop.f32.mrb[0].mxu0
    %v2526 = vadd.f32 %v2264, %v2525
    %v2527 = vand.u32 %v2303, 4294901760
    %v2528 = vsub.f32 %v2303, %v2527
    %v2529 = vand.u32 %v2528, 4294901760
    %v2530 = vsub.f32 %v2528, %v2529
    %v2531 = vand.u32 %v2530, 4294901760
    %2532 = vmatprep.mubr.f32.mxu0 %v2531
    %v2533 = vand.u32 %v2185, 4294901760
    %v2534 = vsub.f32 %v2185, %v2533
    %v2535 = vand.u32 %v2534, 4294901760
    %v2536 = vsub.f32 %v2534, %v2535
    %v2537 = vand.u32 %v2536, 4294901760
    %2538 = vmatmul.mubr.f32.gmra.mrb[0].mxu0 %v2537
    %v2539 = vpop.f32.mrb[0].mxu0
    %v2540 = vadd.f32 %v2265, %v2539
    %v2541 = vpop.f32.mrb[0].mxu0
    %v2542 = vadd.f32 %v2266, %v2541
    %v2543 = vand.u32 %v2306, 4294901760
    %v2544 = vsub.f32 %v2306, %v2543
    %v2545 = vand.u32 %v2544, 4294901760
    %v2546 = vsub.f32 %v2544, %v2545
    %v2547 = vand.u32 %v2546, 4294901760
    %2548 = vmatprep.mubr.f32.mxu0 %v2547
    %v2549 = vand.u32 %v2187, 4294901760
    %v2550 = vsub.f32 %v2187, %v2549
    %v2551 = vand.u32 %v2550, 4294901760
    %v2552 = vsub.f32 %v2550, %v2551
    %v2553 = vand.u32 %v2552, 4294901760
    %2554 = vmatmul.mubr.f32.gmra.mrb[0].mxu0 %v2553
    %v2555 = vpop.f32.mrb[0].mxu0
    %v2556 = vadd.f32 %v2267, %v2555
    %v2557 = vpop.f32.mrb[0].mxu0
    %v2558 = vadd.f32 %v2268, %v2557
    %v2559 = vand.u32 %v2309, 4294901760
    %v2560 = vsub.f32 %v2309, %v2559
    %v2561 = vand.u32 %v2560, 4294901760
    %v2562 = vsub.f32 %v2560, %v2561
    %v2563 = vand.u32 %v2562, 4294901760
    %2564 = vmatprep.mubr.f32.mxu0 %v2563
    %v2565 = vand.u32 %v2189, 4294901760
    %v2566 = vsub.f32 %v2189, %v2565
    %v2567 = vand.u32 %v2566, 4294901760
    %v2568 = vsub.f32 %v2566, %v2567
    %v2569 = vand.u32 %v2568, 4294901760
    %2570 = vmatmul.mubr.f32.gmra.mrb[0].mxu0 %v2569
    %v2571 = vpop.f32.mrb[0].mxu0
    %v2572 = vadd.f32 %v2269, %v2571
    %v2573 = vpop.f32.mrb[0].mxu0
    %v2574 = vadd.f32 %v2270, %v2573
    %v2575 = vand.u32 %v2312, 4294901760
    %v2576 = vsub.f32 %v2312, %v2575
    %v2577 = vand.u32 %v2576, 4294901760
    %v2578 = vsub.f32 %v2576, %v2577
    %v2579 = vand.u32 %v2578, 4294901760
    %2580 = vmatprep.mubr.f32.mxu0 %v2579
    %v2581 = vand.u32 %v2191, 4294901760
    %v2582 = vsub.f32 %v2191, %v2581
    %v2583 = vand.u32 %v2582, 4294901760
    %v2584 = vsub.f32 %v2582, %v2583
    %v2585 = vand.u32 %v2584, 4294901760
    %2586 = vmatmul.mubr.f32.gmra.mrb[0].mxu0 %v2585
    %v2587 = vpop.f32.mrb[0].mxu0
    %v2588 = vadd.f32 %v2271, %v2587
    %v2589 = vpop.f32.mrb[0].mxu0
    %v2590 = vadd.f32 %v2272, %v2589
    %v2591 = vand.u32 %v2315, 4294901760
    %v2592 = vsub.f32 %v2315, %v2591
    %v2593 = vand.u32 %v2592, 4294901760
    %v2594 = vsub.f32 %v2592, %v2593
    %v2595 = vand.u32 %v2594, 4294901760
    %2596 = vmatprep.mubr.f32.mxu0 %v2595
    %v2597 = vand.u32 %v2193, 4294901760
    %v2598 = vsub.f32 %v2193, %v2597
    %v2599 = vand.u32 %v2598, 4294901760
    %v2600 = vsub.f32 %v2598, %v2599
    %v2601 = vand.u32 %v2600, 4294901760
    %2602 = vmatmul.mubr.f32.gmra.mrb[0].mxu0 %v2601
    %v2603 = vpop.f32.mrb[0].mxu0
    %v2604 = vadd.f32 %v2273, %v2603
    %v2605 = vpop.f32.mrb[0].mxu0
    %v2606 = vadd.f32 %v2274, %v2605
    %v2607 = vand.u32 %v2318, 4294901760
    %v2608 = vsub.f32 %v2318, %v2607
    %v2609 = vand.u32 %v2608, 4294901760
    %v2610 = vsub.f32 %v2608, %v2609
    %v2611 = vand.u32 %v2610, 4294901760
    %2612 = vmatprep.mubr.f32.mxu0 %v2611
    %v2613 = vand.u32 %v2195, 4294901760
    %v2614 = vsub.f32 %v2195, %v2613
    %v2615 = vand.u32 %v2614, 4294901760
    %v2616 = vsub.f32 %v2614, %v2615
    %v2617 = vand.u32 %v2616, 4294901760
    %2618 = vmatmul.mubr.f32.gmra.mrb[0].mxu0 %v2617
    %v2619 = vpop.f32.mrb[0].mxu0
    %v2620 = vadd.f32 %v2275, %v2619
    %v2621 = vpop.f32.mrb[0].mxu0
    %v2622 = vadd.f32 %v2276, %v2621
    %v2623 = vand.u32 %v2321, 4294901760
    %v2624 = vsub.f32 %v2321, %v2623
    %v2625 = vand.u32 %v2624, 4294901760
    %v2626 = vsub.f32 %v2624, %v2625
    %v2627 = vand.u32 %v2626, 4294901760
    %2628 = vmatprep.mubr.f32.mxu0 %v2627
    %v2629 = vand.u32 %v2197, 4294901760
    %v2630 = vsub.f32 %v2197, %v2629
    %v2631 = vand.u32 %v2630, 4294901760
    %v2632 = vsub.f32 %v2630, %v2631
    %v2633 = vand.u32 %v2632, 4294901760
    %2634 = vmatmul.mubr.f32.gmra.mrb[0].mxu0 %v2633
    %v2635 = vpop.f32.mrb[0].mxu0
    %v2636 = vadd.f32 %v2277, %v2635
    %v2637 = vpop.f32.mrb[0].mxu0
    %v2638 = vadd.f32 %v2278, %v2637
    %v2639 = vand.u32 %v2324, 4294901760
    %v2640 = vsub.f32 %v2324, %v2639
    %v2641 = vand.u32 %v2640, 4294901760
    %v2642 = vsub.f32 %v2640, %v2641
    %v2643 = vand.u32 %v2642, 4294901760
    %2644 = vmatprep.mubr.f32.mxu0 %v2643
    %v2645 = vand.u32 %v2199, 4294901760
    %v2646 = vsub.f32 %v2199, %v2645
    %v2647 = vand.u32 %v2646, 4294901760
    %v2648 = vsub.f32 %v2646, %v2647
    %v2649 = vand.u32 %v2648, 4294901760
    %2650 = vmatmul.mubr.f32.gmra.mrb[0].mxu0 %v2649
    %v2651 = vpop.f32.mrb[0].mxu0
    %v2652 = vadd.f32 %v2279, %v2651
    %v2653 = vpop.f32.mrb[0].mxu0
    %v2654 = vadd.f32 %v2280, %v2653
    %v2655 = vand.u32 %v2327, 4294901760
    %v2656 = vsub.f32 %v2327, %v2655
    %v2657 = vand.u32 %v2656, 4294901760
    %v2658 = vsub.f32 %v2656, %v2657
    %v2659 = vand.u32 %v2658, 4294901760
    %2660 = vmatprep.mubr.f32.mxu0 %v2659
    %v2661 = vand.u32 %v2201, 4294901760
    %v2662 = vsub.f32 %v2201, %v2661
    %v2663 = vand.u32 %v2662, 4294901760
    %v2664 = vsub.f32 %v2662, %v2663
    %v2665 = vand.u32 %v2664, 4294901760
    %2666 = vmatmul.mubr.f32.gmra.mrb[0].mxu0 %v2665
    %v2667 = vpop.f32.mrb[0].mxu0
    %v2668 = vadd.f32 %v2281, %v2667
    %v2669 = vpop.f32.mrb[0].mxu0
    %v2670 = vadd.f32 %v2282, %v2669
    %v2671 = vand.u32 %v2330, 4294901760
    %v2672 = vsub.f32 %v2330, %v2671
    %v2673 = vand.u32 %v2672, 4294901760
    %v2674 = vsub.f32 %v2672, %v2673
    %v2675 = vand.u32 %v2674, 4294901760
    %2676 = vmatprep.mubr.f32.mxu0 %v2675
    %v2677 = vand.u32 %v2203, 4294901760
    %v2678 = vsub.f32 %v2203, %v2677
    %v2679 = vand.u32 %v2678, 4294901760
    %v2680 = vsub.f32 %v2678, %v2679
    %v2681 = vand.u32 %v2680, 4294901760
    %2682 = vmatmul.mubr.f32.gmra.mrb[0].mxu0 %v2681
    %v2683 = vpop.f32.mrb[0].mxu0
    %v2684 = vadd.f32 %v2283, %v2683
    %v2685 = vpop.f32.mrb[0].mxu0
    %v2686 = vadd.f32 %v2284, %v2685
    %v2687 = vand.u32 %v2333, 4294901760
    %v2688 = vsub.f32 %v2333, %v2687
    %v2689 = vand.u32 %v2688, 4294901760
    %v2690 = vsub.f32 %v2688, %v2689
    %v2691 = vand.u32 %v2690, 4294901760
    %2692 = vmatprep.mubr.f32.mxu0 %v2691
    %v2693 = vand.u32 %v2205, 4294901760
    %v2694 = vsub.f32 %v2205, %v2693
    %v2695 = vand.u32 %v2694, 4294901760
    %v2696 = vsub.f32 %v2694, %v2695
    %v2697 = vand.u32 %v2696, 4294901760
    %2698 = vmatmul.mubr.f32.gmra.mrb[0].mxu0 %v2697
    %v2699 = vpop.f32.mrb[0].mxu0
    %v2700 = vadd.f32 %v2285, %v2699
    %v2701 = vpop.f32.mrb[0].mxu0
    %v2702 = vadd.f32 %v2286, %v2701
    %2703 = vdwg.mxu0
    %v2704 = vand.u32 %v2208, 4294901760
    %v2705 = vsub.f32 %v2208, %v2704
    %v2706 = vand.u32 %v2705, 4294901760
    %v2707 = vsub.f32 %v2705, %v2706
    %v2708 = vand.u32 %v2707, 4294901760
    %2709 = vmatprep.subr.mxu0 %v2708
    %v2710 = vand.u32 %v2207, 4294901760
    %v2711 = vsub.f32 %v2207, %v2710
    %v2712 = vand.u32 %v2711, 4294901760
    %v2713 = vsub.f32 %v2711, %v2712
    %v2714 = vand.u32 %v2713, 4294901760
    %2715 = vmatpush1.msra.mxu0 %v2714
    %v2716 = vand.u32 %v2210, 4294901760
    %v2717 = vsub.f32 %v2210, %v2716
    %v2718 = vand.u32 %v2717, 4294901760
    %v2719 = vsub.f32 %v2717, %v2718
    %v2720 = vand.u32 %v2719, 4294901760
    %2721 = vmatprep.subr.mxu0 %v2720
    %v2722 = vand.u32 %v2209, 4294901760
    %v2723 = vsub.f32 %v2209, %v2722
    %v2724 = vand.u32 %v2723, 4294901760
    %v2725 = vsub.f32 %v2723, %v2724
    %v2726 = vand.u32 %v2725, 4294901760
    %2727 = vmatpush1.msra.mxu0 %v2726
    %v2728 = vand.u32 %v2212, 4294901760
    %v2729 = vsub.f32 %v2212, %v2728
    %v2730 = vand.u32 %v2729, 4294901760
    %v2731 = vsub.f32 %v2729, %v2730
    %v2732 = vand.u32 %v2731, 4294901760
    %2733 = vmatprep.subr.mxu0 %v2732
    %v2734 = vand.u32 %v2211, 4294901760
    %v2735 = vsub.f32 %v2211, %v2734
    %v2736 = vand.u32 %v2735, 4294901760
    %v2737 = vsub.f32 %v2735, %v2736
    %v2738 = vand.u32 %v2737, 4294901760
    %2739 = vmatpush1.msra.mxu0 %v2738
    %v2740 = vand.u32 %v2214, 4294901760
    %v2741 = vsub.f32 %v2214, %v2740
    %v2742 = vand.u32 %v2741, 4294901760
    %v2743 = vsub.f32 %v2741, %v2742
    %v2744 = vand.u32 %v2743, 4294901760
    %2745 = vmatprep.subr.mxu0 %v2744
    %v2746 = vand.u32 %v2213, 4294901760
    %v2747 = vsub.f32 %v2213, %v2746
    %v2748 = vand.u32 %v2747, 4294901760
    %v2749 = vsub.f32 %v2747, %v2748
    %v2750 = vand.u32 %v2749, 4294901760
    %2751 = vmatpush1.msra.mxu0 %v2750
    %v2752 = vand.u32 %v2216, 4294901760
    %v2753 = vsub.f32 %v2216, %v2752
    %v2754 = vand.u32 %v2753, 4294901760
    %v2755 = vsub.f32 %v2753, %v2754
    %v2756 = vand.u32 %v2755, 4294901760
    %2757 = vmatprep.subr.mxu0 %v2756
    %v2758 = vand.u32 %v2215, 4294901760
    %v2759 = vsub.f32 %v2215, %v2758
    %v2760 = vand.u32 %v2759, 4294901760
    %v2761 = vsub.f32 %v2759, %v2760
    %v2762 = vand.u32 %v2761, 4294901760
    %2763 = vmatpush1.msra.mxu0 %v2762
    %v2764 = vand.u32 %v2218, 4294901760
    %v2765 = vsub.f32 %v2218, %v2764
    %v2766 = vand.u32 %v2765, 4294901760
    %v2767 = vsub.f32 %v2765, %v2766
    %v2768 = vand.u32 %v2767, 4294901760
    %2769 = vmatprep.subr.mxu0 %v2768
    %v2770 = vand.u32 %v2217, 4294901760
    %v2771 = vsub.f32 %v2217, %v2770
    %v2772 = vand.u32 %v2771, 4294901760
    %v2773 = vsub.f32 %v2771, %v2772
    %v2774 = vand.u32 %v2773, 4294901760
    %2775 = vmatpush1.msra.mxu0 %v2774
    %v2776 = vand.u32 %v2220, 4294901760
    %v2777 = vsub.f32 %v2220, %v2776
    %v2778 = vand.u32 %v2777, 4294901760
    %v2779 = vsub.f32 %v2777, %v2778
    %v2780 = vand.u32 %v2779, 4294901760
    %2781 = vmatprep.subr.mxu0 %v2780
    %v2782 = vand.u32 %v2219, 4294901760
    %v2783 = vsub.f32 %v2219, %v2782
    %v2784 = vand.u32 %v2783, 4294901760
    %v2785 = vsub.f32 %v2783, %v2784
    %v2786 = vand.u32 %v2785, 4294901760
    %2787 = vmatpush1.msra.mxu0 %v2786
    %v2788 = vand.u32 %v2222, 4294901760
    %v2789 = vsub.f32 %v2222, %v2788
    %v2790 = vand.u32 %v2789, 4294901760
    %v2791 = vsub.f32 %v2789, %v2790
    %v2792 = vand.u32 %v2791, 4294901760
    %2793 = vmatprep.subr.mxu0 %v2792
    %v2794 = vand.u32 %v2221, 4294901760
    %v2795 = vsub.f32 %v2221, %v2794
    %v2796 = vand.u32 %v2795, 4294901760
    %v2797 = vsub.f32 %v2795, %v2796
    %v2798 = vand.u32 %v2797, 4294901760
    %2799 = vmatpush1.msra.mxu0 %v2798
    %v2800 = vand.u32 %v2224, 4294901760
    %v2801 = vsub.f32 %v2224, %v2800
    %v2802 = vand.u32 %v2801, 4294901760
    %v2803 = vsub.f32 %v2801, %v2802
    %v2804 = vand.u32 %v2803, 4294901760
    %2805 = vmatprep.subr.mxu0 %v2804
    %v2806 = vand.u32 %v2223, 4294901760
    %v2807 = vsub.f32 %v2223, %v2806
    %v2808 = vand.u32 %v2807, 4294901760
    %v2809 = vsub.f32 %v2807, %v2808
    %v2810 = vand.u32 %v2809, 4294901760
    %2811 = vmatpush1.msra.mxu0 %v2810
    %v2812 = vand.u32 %v2226, 4294901760
    %v2813 = vsub.f32 %v2226, %v2812
    %v2814 = vand.u32 %v2813, 4294901760
    %v2815 = vsub.f32 %v2813, %v2814
    %v2816 = vand.u32 %v2815, 4294901760
    %2817 = vmatprep.subr.mxu0 %v2816
    %v2818 = vand.u32 %v2225, 4294901760
    %v2819 = vsub.f32 %v2225, %v2818
    %v2820 = vand.u32 %v2819, 4294901760
    %v2821 = vsub.f32 %v2819, %v2820
    %v2822 = vand.u32 %v2821, 4294901760
    %2823 = vmatpush1.msra.mxu0 %v2822
    %v2824 = vand.u32 %v2228, 4294901760
    %v2825 = vsub.f32 %v2228, %v2824
    %v2826 = vand.u32 %v2825, 4294901760
    %v2827 = vsub.f32 %v2825, %v2826
    %v2828 = vand.u32 %v2827, 4294901760
    %2829 = vmatprep.subr.mxu0 %v2828
    %v2830 = vand.u32 %v2227, 4294901760
    %v2831 = vsub.f32 %v2227, %v2830
    %v2832 = vand.u32 %v2831, 4294901760
    %v2833 = vsub.f32 %v2831, %v2832
    %v2834 = vand.u32 %v2833, 4294901760
    %2835 = vmatpush1.msra.mxu0 %v2834
    %v2836 = vand.u32 %v2230, 4294901760
    %v2837 = vsub.f32 %v2230, %v2836
    %v2838 = vand.u32 %v2837, 4294901760
    %v2839 = vsub.f32 %v2837, %v2838
    %v2840 = vand.u32 %v2839, 4294901760
    %2841 = vmatprep.subr.mxu0 %v2840
    %v2842 = vand.u32 %v2229, 4294901760
    %v2843 = vsub.f32 %v2229, %v2842
    %v2844 = vand.u32 %v2843, 4294901760
    %v2845 = vsub.f32 %v2843, %v2844
    %v2846 = vand.u32 %v2845, 4294901760
    %2847 = vmatpush1.msra.mxu0 %v2846
    %v2848 = vand.u32 %v2232, 4294901760
    %v2849 = vsub.f32 %v2232, %v2848
    %v2850 = vand.u32 %v2849, 4294901760
    %v2851 = vsub.f32 %v2849, %v2850
    %v2852 = vand.u32 %v2851, 4294901760
    %2853 = vmatprep.subr.mxu0 %v2852
    %v2854 = vand.u32 %v2231, 4294901760
    %v2855 = vsub.f32 %v2231, %v2854
    %v2856 = vand.u32 %v2855, 4294901760
    %v2857 = vsub.f32 %v2855, %v2856
    %v2858 = vand.u32 %v2857, 4294901760
    %2859 = vmatpush1.msra.mxu0 %v2858
    %v2860 = vand.u32 %v2234, 4294901760
    %v2861 = vsub.f32 %v2234, %v2860
    %v2862 = vand.u32 %v2861, 4294901760
    %v2863 = vsub.f32 %v2861, %v2862
    %v2864 = vand.u32 %v2863, 4294901760
    %2865 = vmatprep.subr.mxu0 %v2864
    %v2866 = vand.u32 %v2233, 4294901760
    %v2867 = vsub.f32 %v2233, %v2866
    %v2868 = vand.u32 %v2867, 4294901760
    %v2869 = vsub.f32 %v2867, %v2868
    %v2870 = vand.u32 %v2869, 4294901760
    %2871 = vmatpush1.msra.mxu0 %v2870
    %v2872 = vand.u32 %v2236, 4294901760
    %v2873 = vsub.f32 %v2236, %v2872
    %v2874 = vand.u32 %v2873, 4294901760
    %v2875 = vsub.f32 %v2873, %v2874
    %v2876 = vand.u32 %v2875, 4294901760
    %2877 = vmatprep.subr.mxu0 %v2876
    %v2878 = vand.u32 %v2235, 4294901760
    %v2879 = vsub.f32 %v2235, %v2878
    %v2880 = vand.u32 %v2879, 4294901760
    %v2881 = vsub.f32 %v2879, %v2880
    %v2882 = vand.u32 %v2881, 4294901760
    %2883 = vmatpush1.msra.mxu0 %v2882
    %v2884 = vand.u32 %v2238, 4294901760
    %v2885 = vsub.f32 %v2238, %v2884
    %v2886 = vand.u32 %v2885, 4294901760
    %v2887 = vsub.f32 %v2885, %v2886
    %v2888 = vand.u32 %v2887, 4294901760
    %2889 = vmatprep.subr.mxu0 %v2888
    %v2890 = vand.u32 %v2237, 4294901760
    %v2891 = vsub.f32 %v2237, %v2890
    %v2892 = vand.u32 %v2891, 4294901760
    %v2893 = vsub.f32 %v2891, %v2892
    %v2894 = vand.u32 %v2893, 4294901760
    %2895 = vmatpush1.msra.mxu0 %v2894
    %v2896 = vand.u32 %v2240, 4294901760
    %v2897 = vsub.f32 %v2240, %v2896
    %v2898 = vand.u32 %v2897, 4294901760
    %v2899 = vsub.f32 %v2897, %v2898
    %v2900 = vand.u32 %v2899, 4294901760
    %2901 = vmatprep.subr.mxu0 %v2900
    %v2902 = vand.u32 %v2239, 4294901760
    %v2903 = vsub.f32 %v2239, %v2902
    %v2904 = vand.u32 %v2903, 4294901760
    %v2905 = vsub.f32 %v2903, %v2904
    %v2906 = vand.u32 %v2905, 4294901760
    %2907 = vmatpush1.msra.mxu0 %v2906
    %v2908 = vand.u32 %v2242, 4294901760
    %v2909 = vsub.f32 %v2242, %v2908
    %v2910 = vand.u32 %v2909, 4294901760
    %v2911 = vsub.f32 %v2909, %v2910
    %v2912 = vand.u32 %v2911, 4294901760
    %2913 = vmatprep.subr.mxu0 %v2912
    %v2914 = vand.u32 %v2241, 4294901760
    %v2915 = vsub.f32 %v2241, %v2914
    %v2916 = vand.u32 %v2915, 4294901760
    %v2917 = vsub.f32 %v2915, %v2916
    %v2918 = vand.u32 %v2917, 4294901760
    %2919 = vmatpush1.msra.mxu0 %v2918
    %v2920 = vand.u32 %v2244, 4294901760
    %v2921 = vsub.f32 %v2244, %v2920
    %v2922 = vand.u32 %v2921, 4294901760
    %v2923 = vsub.f32 %v2921, %v2922
    %v2924 = vand.u32 %v2923, 4294901760
    %2925 = vmatprep.subr.mxu0 %v2924
    %v2926 = vand.u32 %v2243, 4294901760
    %v2927 = vsub.f32 %v2243, %v2926
    %v2928 = vand.u32 %v2927, 4294901760
    %v2929 = vsub.f32 %v2927, %v2928
    %v2930 = vand.u32 %v2929, 4294901760
    %2931 = vmatpush1.msra.mxu0 %v2930
    %v2932 = vand.u32 %v2246, 4294901760
    %v2933 = vsub.f32 %v2246, %v2932
    %v2934 = vand.u32 %v2933, 4294901760
    %v2935 = vsub.f32 %v2933, %v2934
    %v2936 = vand.u32 %v2935, 4294901760
    %2937 = vmatprep.subr.mxu0 %v2936
    %v2938 = vand.u32 %v2245, 4294901760
    %v2939 = vsub.f32 %v2245, %v2938
    %v2940 = vand.u32 %v2939, 4294901760
    %v2941 = vsub.f32 %v2939, %v2940
    %v2942 = vand.u32 %v2941, 4294901760
    %2943 = vmatpush1.msra.mxu0 %v2942
    %v2944 = vand.u32 %v2248, 4294901760
    %v2945 = vsub.f32 %v2248, %v2944
    %v2946 = vand.u32 %v2945, 4294901760
    %v2947 = vsub.f32 %v2945, %v2946
    %v2948 = vand.u32 %v2947, 4294901760
    %2949 = vmatprep.subr.mxu0 %v2948
    %v2950 = vand.u32 %v2247, 4294901760
    %v2951 = vsub.f32 %v2247, %v2950
    %v2952 = vand.u32 %v2951, 4294901760
    %v2953 = vsub.f32 %v2951, %v2952
    %v2954 = vand.u32 %v2953, 4294901760
    %2955 = vmatpush1.msra.mxu0 %v2954
    %v2956 = vand.u32 %v2250, 4294901760
    %v2957 = vsub.f32 %v2250, %v2956
    %v2958 = vand.u32 %v2957, 4294901760
    %v2959 = vsub.f32 %v2957, %v2958
    %v2960 = vand.u32 %v2959, 4294901760
    %2961 = vmatprep.subr.mxu0 %v2960
    %v2962 = vand.u32 %v2249, 4294901760
    %v2963 = vsub.f32 %v2249, %v2962
    %v2964 = vand.u32 %v2963, 4294901760
    %v2965 = vsub.f32 %v2963, %v2964
    %v2966 = vand.u32 %v2965, 4294901760
    %2967 = vmatpush1.msra.mxu0 %v2966
    %v2968 = vand.u32 %v2252, 4294901760
    %v2969 = vsub.f32 %v2252, %v2968
    %v2970 = vand.u32 %v2969, 4294901760
    %v2971 = vsub.f32 %v2969, %v2970
    %v2972 = vand.u32 %v2971, 4294901760
    %2973 = vmatprep.subr.mxu0 %v2972
    %v2974 = vand.u32 %v2251, 4294901760
    %v2975 = vsub.f32 %v2251, %v2974
    %v2976 = vand.u32 %v2975, 4294901760
    %v2977 = vsub.f32 %v2975, %v2976
    %v2978 = vand.u32 %v2977, 4294901760
    %2979 = vmatpush1.msra.mxu0 %v2978
    %v2980 = vand.u32 %v2254, 4294901760
    %v2981 = vsub.f32 %v2254, %v2980
    %v2982 = vand.u32 %v2981, 4294901760
    %v2983 = vsub.f32 %v2981, %v2982
    %v2984 = vand.u32 %v2983, 4294901760
    %2985 = vmatprep.subr.mxu0 %v2984
    %v2986 = vand.u32 %v2253, 4294901760
    %v2987 = vsub.f32 %v2253, %v2986
    %v2988 = vand.u32 %v2987, 4294901760
    %v2989 = vsub.f32 %v2987, %v2988
    %v2990 = vand.u32 %v2989, 4294901760
    %2991 = vmatpush1.msra.mxu0 %v2990
    %2992 = vmatprep.subr.mxu0 0.0
    %2993 = vmatpush1.msra.mxu0 0.0
    %2994 = vmatprep.subr.mxu0 0.0
    %2995 = vmatpush1.msra.mxu0 0.0
    %2996 = vmatprep.subr.mxu0 0.0
    %2997 = vmatpush1.msra.mxu0 0.0
    %2998 = vmatprep.subr.mxu0 0.0
    %2999 = vmatpush1.msra.mxu0 0.0
    %3000 = vmatprep.subr.mxu0 0.0
    %3001 = vmatpush1.msra.mxu0 0.0
    %3002 = vmatprep.subr.mxu0 0.0
    %3003 = vmatpush1.msra.mxu0 0.0
    %3004 = vmatprep.subr.mxu0 0.0
    %3005 = vmatpush1.msra.mxu0 0.0
    %3006 = vmatprep.subr.mxu0 0.0
    %3007 = vmatpush1.msra.mxu0 0.0
    %v3008 = vand.u32 %v2288, 4294901760
    %3009 = vmatprep.mubr.f32.mxu0 %v3008
    %v3010 = vand.u32 %v2175, 4294901760
    %3011 = vmatmul.mubr.f32.gmra.mrb[0].mxu0 %v3010
    %v3012 = vpop.f32.mrb[0].mxu0
    %v3013 = vadd.f32 %v2460, %v3012
    %v3014 = vpop.f32.mrb[0].mxu0
    %v3015 = vadd.f32 %v2462, %v3014
    %v3016 = vand.u32 %v2291, 4294901760
    %3017 = vmatprep.mubr.f32.mxu0 %v3016
    %v3018 = vand.u32 %v2177, 4294901760
    %3019 = vmatmul.mubr.f32.gmra.mrb[0].mxu0 %v3018
    %v3020 = vpop.f32.mrb[0].mxu0
    %v3021 = vadd.f32 %v2476, %v3020
    %v3022 = vpop.f32.mrb[0].mxu0
    %v3023 = vadd.f32 %v2478, %v3022
    %v3024 = vand.u32 %v2294, 4294901760
    %3025 = vmatprep.mubr.f32.mxu0 %v3024
    %v3026 = vand.u32 %v2179, 4294901760
    %3027 = vmatmul.mubr.f32.gmra.mrb[0].mxu0 %v3026
    %v3028 = vpop.f32.mrb[0].mxu0
    %v3029 = vadd.f32 %v2492, %v3028
    %v3030 = vpop.f32.mrb[0].mxu0
    %v3031 = vadd.f32 %v2494, %v3030
    %v3032 = vand.u32 %v2297, 4294901760
    %3033 = vmatprep.mubr.f32.mxu0 %v3032
    %v3034 = vand.u32 %v2181, 4294901760
    %3035 = vmatmul.mubr.f32.gmra.mrb[0].mxu0 %v3034
    %v3036 = vpop.f32.mrb[0].mxu0
    %v3037 = vadd.f32 %v2508, %v3036
    %v3038 = vpop.f32.mrb[0].mxu0
    %v3039 = vadd.f32 %v2510, %v3038
    %v3040 = vand.u32 %v2300, 4294901760
    %3041 = vmatprep.mubr.f32.mxu0 %v3040
    %v3042 = vand.u32 %v2183, 4294901760
    %3043 = vmatmul.mubr.f32.gmra.mrb[0].mxu0 %v3042
    %v3044 = vpop.f32.mrb[0].mxu0
    %v3045 = vadd.f32 %v2524, %v3044
    %v3046 = vpop.f32.mrb[0].mxu0
    %v3047 = vadd.f32 %v2526, %v3046
    %v3048 = vand.u32 %v2303, 4294901760
    %3049 = vmatprep.mubr.f32.mxu0 %v3048
    %v3050 = vand.u32 %v2185, 4294901760
    %3051 = vmatmul.mubr.f32.gmra.mrb[0].mxu0 %v3050
    %v3052 = vpop.f32.mrb[0].mxu0
    %v3053 = vadd.f32 %v2540, %v3052
    %v3054 = vpop.f32.mrb[0].mxu0
    %v3055 = vadd.f32 %v2542, %v3054
    %v3056 = vand.u32 %v2306, 4294901760
    %3057 = vmatprep.mubr.f32.mxu0 %v3056
    %v3058 = vand.u32 %v2187, 4294901760
    %3059 = vmatmul.mubr.f32.gmra.mrb[0].mxu0 %v3058
    %v3060 = vpop.f32.mrb[0].mxu0
    %v3061 = vadd.f32 %v2556, %v3060
    %v3062 = vpop.f32.mrb[0].mxu0
    %v3063 = vadd.f32 %v2558, %v3062
    %v3064 = vand.u32 %v2309, 4294901760
    %3065 = vmatprep.mubr.f32.mxu0 %v3064
    %v3066 = vand.u32 %v2189, 4294901760
    %3067 = vmatmul.mubr.f32.gmra.mrb[0].mxu0 %v3066
    %v3068 = vpop.f32.mrb[0].mxu0
    %v3069 = vadd.f32 %v2572, %v3068
    %v3070 = vpop.f32.mrb[0].mxu0
    %v3071 = vadd.f32 %v2574, %v3070
    %v3072 = vand.u32 %v2312, 4294901760
    %3073 = vmatprep.mubr.f32.mxu0 %v3072
    %v3074 = vand.u32 %v2191, 4294901760
    %3075 = vmatmul.mubr.f32.gmra.mrb[0].mxu0 %v3074
    %v3076 = vpop.f32.mrb[0].mxu0
    %v3077 = vadd.f32 %v2588, %v3076
    %v3078 = vpop.f32.mrb[0].mxu0
    %v3079 = vadd.f32 %v2590, %v3078
    %v3080 = vand.u32 %v2315, 4294901760
    %3081 = vmatprep.mubr.f32.mxu0 %v3080
    %v3082 = vand.u32 %v2193, 4294901760
    %3083 = vmatmul.mubr.f32.gmra.mrb[0].mxu0 %v3082
    %v3084 = vpop.f32.mrb[0].mxu0
    %v3085 = vadd.f32 %v2604, %v3084
    %v3086 = vpop.f32.mrb[0].mxu0
    %v3087 = vadd.f32 %v2606, %v3086
    %v3088 = vand.u32 %v2318, 4294901760
    %3089 = vmatprep.mubr.f32.mxu0 %v3088
    %v3090 = vand.u32 %v2195, 4294901760
    %3091 = vmatmul.mubr.f32.gmra.mrb[0].mxu0 %v3090
    %v3092 = vpop.f32.mrb[0].mxu0
    %v3093 = vadd.f32 %v2620, %v3092
    %v3094 = vpop.f32.mrb[0].mxu0
    %v3095 = vadd.f32 %v2622, %v3094
    %v3096 = vand.u32 %v2321, 4294901760
    %3097 = vmatprep.mubr.f32.mxu0 %v3096
    %v3098 = vand.u32 %v2197, 4294901760
    %3099 = vmatmul.mubr.f32.gmra.mrb[0].mxu0 %v3098
    %v3100 = vpop.f32.mrb[0].mxu0
    %v3101 = vadd.f32 %v2636, %v3100
    %v3102 = vpop.f32.mrb[0].mxu0
    %v3103 = vadd.f32 %v2638, %v3102
    %v3104 = vand.u32 %v2324, 4294901760
    %3105 = vmatprep.mubr.f32.mxu0 %v3104
    %v3106 = vand.u32 %v2199, 4294901760
    %3107 = vmatmul.mubr.f32.gmra.mrb[0].mxu0 %v3106
    %v3108 = vpop.f32.mrb[0].mxu0
    %v3109 = vadd.f32 %v2652, %v3108
    %v3110 = vpop.f32.mrb[0].mxu0
    %v3111 = vadd.f32 %v2654, %v3110
    %v3112 = vand.u32 %v2327, 4294901760
    %3113 = vmatprep.mubr.f32.mxu0 %v3112
    %v3114 = vand.u32 %v2201, 4294901760
    %3115 = vmatmul.mubr.f32.gmra.mrb[0].mxu0 %v3114
    %v3116 = vpop.f32.mrb[0].mxu0
    %v3117 = vadd.f32 %v2668, %v3116
    %v3118 = vpop.f32.mrb[0].mxu0
    %v3119 = vadd.f32 %v2670, %v3118
    %v3120 = vand.u32 %v2330, 4294901760
    %3121 = vmatprep.mubr.f32.mxu0 %v3120
    %v3122 = vand.u32 %v2203, 4294901760
    %3123 = vmatmul.mubr.f32.gmra.mrb[0].mxu0 %v3122
    %v3124 = vpop.f32.mrb[0].mxu0
    %v3125 = vadd.f32 %v2684, %v3124
    %v3126 = vpop.f32.mrb[0].mxu0
    %v3127 = vadd.f32 %v2686, %v3126
    %v3128 = vand.u32 %v2333, 4294901760
    %3129 = vmatprep.mubr.f32.mxu0 %v3128
    %v3130 = vand.u32 %v2205, 4294901760
    %3131 = vmatmul.mubr.f32.gmra.mrb[0].mxu0 %v3130
    %v3132 = vpop.f32.mrb[0].mxu0
    %v3133 = vadd.f32 %v2700, %v3132
    %v3134 = vpop.f32.mrb[0].mxu0
    %v3135 = vadd.f32 %v2702, %v3134
    %3136 = vdwg.mxu0
    %v3137 = vand.u32 %v2208, 4294901760
    %v3138 = vsub.f32 %v2208, %v3137
    %3139 = vmatprep.subr.mxu0 %v3138
    %v3140 = vand.u32 %v2207, 4294901760
    %v3141 = vsub.f32 %v2207, %v3140
    %3142 = vmatpush1.msra.mxu0 %v3141
    %v3143 = vand.u32 %v2210, 4294901760
    %v3144 = vsub.f32 %v2210, %v3143
    %3145 = vmatprep.subr.mxu0 %v3144
    %v3146 = vand.u32 %v2209, 4294901760
    %v3147 = vsub.f32 %v2209, %v3146
    %3148 = vmatpush1.msra.mxu0 %v3147
    %v3149 = vand.u32 %v2212, 4294901760
    %v3150 = vsub.f32 %v2212, %v3149
    %3151 = vmatprep.subr.mxu0 %v3150
    %v3152 = vand.u32 %v2211, 4294901760
    %v3153 = vsub.f32 %v2211, %v3152
    %3154 = vmatpush1.msra.mxu0 %v3153
    %v3155 = vand.u32 %v2214, 4294901760
    %v3156 = vsub.f32 %v2214, %v3155
    %3157 = vmatprep.subr.mxu0 %v3156
    %v3158 = vand.u32 %v2213, 4294901760
    %v3159 = vsub.f32 %v2213, %v3158
    %3160 = vmatpush1.msra.mxu0 %v3159
    %v3161 = vand.u32 %v2216, 4294901760
    %v3162 = vsub.f32 %v2216, %v3161
    %3163 = vmatprep.subr.mxu0 %v3162
    %v3164 = vand.u32 %v2215, 4294901760
    %v3165 = vsub.f32 %v2215, %v3164
    %3166 = vmatpush1.msra.mxu0 %v3165
    %v3167 = vand.u32 %v2218, 4294901760
    %v3168 = vsub.f32 %v2218, %v3167
    %3169 = vmatprep.subr.mxu0 %v3168
    %v3170 = vand.u32 %v2217, 4294901760
    %v3171 = vsub.f32 %v2217, %v3170
    %3172 = vmatpush1.msra.mxu0 %v3171
    %v3173 = vand.u32 %v2220, 4294901760
    %v3174 = vsub.f32 %v2220, %v3173
    %3175 = vmatprep.subr.mxu0 %v3174
    %v3176 = vand.u32 %v2219, 4294901760
    %v3177 = vsub.f32 %v2219, %v3176
    %3178 = vmatpush1.msra.mxu0 %v3177
    %v3179 = vand.u32 %v2222, 4294901760
    %v3180 = vsub.f32 %v2222, %v3179
    %3181 = vmatprep.subr.mxu0 %v3180
    %v3182 = vand.u32 %v2221, 4294901760
    %v3183 = vsub.f32 %v2221, %v3182
    %3184 = vmatpush1.msra.mxu0 %v3183
    %v3185 = vand.u32 %v2224, 4294901760
    %v3186 = vsub.f32 %v2224, %v3185
    %3187 = vmatprep.subr.mxu0 %v3186
    %v3188 = vand.u32 %v2223, 4294901760
    %v3189 = vsub.f32 %v2223, %v3188
    %3190 = vmatpush1.msra.mxu0 %v3189
    %v3191 = vand.u32 %v2226, 4294901760
    %v3192 = vsub.f32 %v2226, %v3191
    %3193 = vmatprep.subr.mxu0 %v3192
    %v3194 = vand.u32 %v2225, 4294901760
    %v3195 = vsub.f32 %v2225, %v3194
    %3196 = vmatpush1.msra.mxu0 %v3195
    %v3197 = vand.u32 %v2228, 4294901760
    %v3198 = vsub.f32 %v2228, %v3197
    %3199 = vmatprep.subr.mxu0 %v3198
    %v3200 = vand.u32 %v2227, 4294901760
    %v3201 = vsub.f32 %v2227, %v3200
    %3202 = vmatpush1.msra.mxu0 %v3201
    %v3203 = vand.u32 %v2230, 4294901760
    %v3204 = vsub.f32 %v2230, %v3203
    %3205 = vmatprep.subr.mxu0 %v3204
    %v3206 = vand.u32 %v2229, 4294901760
    %v3207 = vsub.f32 %v2229, %v3206
    %3208 = vmatpush1.msra.mxu0 %v3207
    %v3209 = vand.u32 %v2232, 4294901760
    %v3210 = vsub.f32 %v2232, %v3209
    %3211 = vmatprep.subr.mxu0 %v3210
    %v3212 = vand.u32 %v2231, 4294901760
    %v3213 = vsub.f32 %v2231, %v3212
    %3214 = vmatpush1.msra.mxu0 %v3213
    %v3215 = vand.u32 %v2234, 4294901760
    %v3216 = vsub.f32 %v2234, %v3215
    %3217 = vmatprep.subr.mxu0 %v3216
    %v3218 = vand.u32 %v2233, 4294901760
    %v3219 = vsub.f32 %v2233, %v3218
    %3220 = vmatpush1.msra.mxu0 %v3219
    %v3221 = vand.u32 %v2236, 4294901760
    %v3222 = vsub.f32 %v2236, %v3221
    %3223 = vmatprep.subr.mxu0 %v3222
    %v3224 = vand.u32 %v2235, 4294901760
    %v3225 = vsub.f32 %v2235, %v3224
    %3226 = vmatpush1.msra.mxu0 %v3225
    %v3227 = vand.u32 %v2238, 4294901760
    %v3228 = vsub.f32 %v2238, %v3227
    %3229 = vmatprep.subr.mxu0 %v3228
    %v3230 = vand.u32 %v2237, 4294901760
    %v3231 = vsub.f32 %v2237, %v3230
    %3232 = vmatpush1.msra.mxu0 %v3231
    %v3233 = vand.u32 %v2240, 4294901760
    %v3234 = vsub.f32 %v2240, %v3233
    %3235 = vmatprep.subr.mxu0 %v3234
    %v3236 = vand.u32 %v2239, 4294901760
    %v3237 = vsub.f32 %v2239, %v3236
    %3238 = vmatpush1.msra.mxu0 %v3237
    %v3239 = vand.u32 %v2242, 4294901760
    %v3240 = vsub.f32 %v2242, %v3239
    %3241 = vmatprep.subr.mxu0 %v3240
    %v3242 = vand.u32 %v2241, 4294901760
    %v3243 = vsub.f32 %v2241, %v3242
    %3244 = vmatpush1.msra.mxu0 %v3243
    %v3245 = vand.u32 %v2244, 4294901760
    %v3246 = vsub.f32 %v2244, %v3245
    %3247 = vmatprep.subr.mxu0 %v3246
    %v3248 = vand.u32 %v2243, 4294901760
    %v3249 = vsub.f32 %v2243, %v3248
    %3250 = vmatpush1.msra.mxu0 %v3249
    %v3251 = vand.u32 %v2246, 4294901760
    %v3252 = vsub.f32 %v2246, %v3251
    %3253 = vmatprep.subr.mxu0 %v3252
    %v3254 = vand.u32 %v2245, 4294901760
    %v3255 = vsub.f32 %v2245, %v3254
    %3256 = vmatpush1.msra.mxu0 %v3255
    %v3257 = vand.u32 %v2248, 4294901760
    %v3258 = vsub.f32 %v2248, %v3257
    %3259 = vmatprep.subr.mxu0 %v3258
    %v3260 = vand.u32 %v2247, 4294901760
    %v3261 = vsub.f32 %v2247, %v3260
    %3262 = vmatpush1.msra.mxu0 %v3261
    %v3263 = vand.u32 %v2250, 4294901760
    %v3264 = vsub.f32 %v2250, %v3263
    %3265 = vmatprep.subr.mxu0 %v3264
    %v3266 = vand.u32 %v2249, 4294901760
    %v3267 = vsub.f32 %v2249, %v3266
    %3268 = vmatpush1.msra.mxu0 %v3267
    %v3269 = vand.u32 %v2252, 4294901760
    %v3270 = vsub.f32 %v2252, %v3269
    %3271 = vmatprep.subr.mxu0 %v3270
    %v3272 = vand.u32 %v2251, 4294901760
    %v3273 = vsub.f32 %v2251, %v3272
    %3274 = vmatpush1.msra.mxu0 %v3273
    %v3275 = vand.u32 %v2254, 4294901760
    %v3276 = vsub.f32 %v2254, %v3275
    %3277 = vmatprep.subr.mxu0 %v3276
    %v3278 = vand.u32 %v2253, 4294901760
    %v3279 = vsub.f32 %v2253, %v3278
    %3280 = vmatpush1.msra.mxu0 %v3279
    %3281 = vmatprep.subr.mxu0 0.0
    %3282 = vmatpush1.msra.mxu0 0.0
    %3283 = vmatprep.subr.mxu0 0.0
    %3284 = vmatpush1.msra.mxu0 0.0
    %3285 = vmatprep.subr.mxu0 0.0
    %3286 = vmatpush1.msra.mxu0 0.0
    %3287 = vmatprep.subr.mxu0 0.0
    %3288 = vmatpush1.msra.mxu0 0.0
    %3289 = vmatprep.subr.mxu0 0.0
    %3290 = vmatpush1.msra.mxu0 0.0
    %3291 = vmatprep.subr.mxu0 0.0
    %3292 = vmatpush1.msra.mxu0 0.0
    %3293 = vmatprep.subr.mxu0 0.0
    %3294 = vmatpush1.msra.mxu0 0.0
    %3295 = vmatprep.subr.mxu0 0.0
    %3296 = vmatpush1.msra.mxu0 0.0
    %v3297 = vand.u32 %v2288, 4294901760
    %v3298 = vsub.f32 %v2288, %v3297
    %3299 = vmatprep.mubr.f32.mxu0 %v3298
    %v3300 = vand.u32 %v2175, 4294901760
    %v3301 = vsub.f32 %v2175, %v3300
    %3302 = vmatmul.mubr.f32.gmra.mrb[0].mxu0 %v3301
    %v3303 = vpop.f32.mrb[0].mxu0
    %v3304 = vadd.f32 %v3013, %v3303
    %v3305 = vpop.f32.mrb[0].mxu0
    %v3306 = vadd.f32 %v3015, %v3305
    %v3307 = vand.u32 %v2291, 4294901760
    %v3308 = vsub.f32 %v2291, %v3307
    %3309 = vmatprep.mubr.f32.mxu0 %v3308
    %v3310 = vand.u32 %v2177, 4294901760
    %v3311 = vsub.f32 %v2177, %v3310
    %3312 = vmatmul.mubr.f32.gmra.mrb[0].mxu0 %v3311
    %v3313 = vpop.f32.mrb[0].mxu0
    %v3314 = vadd.f32 %v3021, %v3313
    %v3315 = vpop.f32.mrb[0].mxu0
    %v3316 = vadd.f32 %v3023, %v3315
    %v3317 = vand.u32 %v2294, 4294901760
    %v3318 = vsub.f32 %v2294, %v3317
    %3319 = vmatprep.mubr.f32.mxu0 %v3318
    %v3320 = vand.u32 %v2179, 4294901760
    %v3321 = vsub.f32 %v2179, %v3320
    %3322 = vmatmul.mubr.f32.gmra.mrb[0].mxu0 %v3321
    %v3323 = vpop.f32.mrb[0].mxu0
    %v3324 = vadd.f32 %v3029, %v3323
    %v3325 = vpop.f32.mrb[0].mxu0
    %v3326 = vadd.f32 %v3031, %v3325
    %v3327 = vand.u32 %v2297, 4294901760
    %v3328 = vsub.f32 %v2297, %v3327
    %3329 = vmatprep.mubr.f32.mxu0 %v3328
    %v3330 = vand.u32 %v2181, 4294901760
    %v3331 = vsub.f32 %v2181, %v3330
    %3332 = vmatmul.mubr.f32.gmra.mrb[0].mxu0 %v3331
    %v3333 = vpop.f32.mrb[0].mxu0
    %v3334 = vadd.f32 %v3037, %v3333
    %v3335 = vpop.f32.mrb[0].mxu0
    %v3336 = vadd.f32 %v3039, %v3335
    %v3337 = vand.u32 %v2300, 4294901760
    %v3338 = vsub.f32 %v2300, %v3337
    %3339 = vmatprep.mubr.f32.mxu0 %v3338
    %v3340 = vand.u32 %v2183, 4294901760
    %v3341 = vsub.f32 %v2183, %v3340
    %3342 = vmatmul.mubr.f32.gmra.mrb[0].mxu0 %v3341
    %v3343 = vpop.f32.mrb[0].mxu0
    %v3344 = vadd.f32 %v3045, %v3343
    %v3345 = vpop.f32.mrb[0].mxu0
    %v3346 = vadd.f32 %v3047, %v3345
    %v3347 = vand.u32 %v2303, 4294901760
    %v3348 = vsub.f32 %v2303, %v3347
    %3349 = vmatprep.mubr.f32.mxu0 %v3348
    %v3350 = vand.u32 %v2185, 4294901760
    %v3351 = vsub.f32 %v2185, %v3350
    %3352 = vmatmul.mubr.f32.gmra.mrb[0].mxu0 %v3351
    %v3353 = vpop.f32.mrb[0].mxu0
    %v3354 = vadd.f32 %v3053, %v3353
    %v3355 = vpop.f32.mrb[0].mxu0
    %v3356 = vadd.f32 %v3055, %v3355
    %v3357 = vand.u32 %v2306, 4294901760
    %v3358 = vsub.f32 %v2306, %v3357
    %3359 = vmatprep.mubr.f32.mxu0 %v3358
    %v3360 = vand.u32 %v2187, 4294901760
    %v3361 = vsub.f32 %v2187, %v3360
    %3362 = vmatmul.mubr.f32.gmra.mrb[0].mxu0 %v3361
    %v3363 = vpop.f32.mrb[0].mxu0
    %v3364 = vadd.f32 %v3061, %v3363
    %v3365 = vpop.f32.mrb[0].mxu0
    %v3366 = vadd.f32 %v3063, %v3365
    %v3367 = vand.u32 %v2309, 4294901760
    %v3368 = vsub.f32 %v2309, %v3367
    %3369 = vmatprep.mubr.f32.mxu0 %v3368
    %v3370 = vand.u32 %v2189, 4294901760
    %v3371 = vsub.f32 %v2189, %v3370
    %3372 = vmatmul.mubr.f32.gmra.mrb[0].mxu0 %v3371
    %v3373 = vpop.f32.mrb[0].mxu0
    %v3374 = vadd.f32 %v3069, %v3373
    %v3375 = vpop.f32.mrb[0].mxu0
    %v3376 = vadd.f32 %v3071, %v3375
    %v3377 = vand.u32 %v2312, 4294901760
    %v3378 = vsub.f32 %v2312, %v3377
    %3379 = vmatprep.mubr.f32.mxu0 %v3378
    %v3380 = vand.u32 %v2191, 4294901760
    %v3381 = vsub.f32 %v2191, %v3380
    %3382 = vmatmul.mubr.f32.gmra.mrb[0].mxu0 %v3381
    %v3383 = vpop.f32.mrb[0].mxu0
    %v3384 = vadd.f32 %v3077, %v3383
    %v3385 = vpop.f32.mrb[0].mxu0
    %v3386 = vadd.f32 %v3079, %v3385
    %v3387 = vand.u32 %v2315, 4294901760
    %v3388 = vsub.f32 %v2315, %v3387
    %3389 = vmatprep.mubr.f32.mxu0 %v3388
    %v3390 = vand.u32 %v2193, 4294901760
    %v3391 = vsub.f32 %v2193, %v3390
    %3392 = vmatmul.mubr.f32.gmra.mrb[0].mxu0 %v3391
    %v3393 = vpop.f32.mrb[0].mxu0
    %v3394 = vadd.f32 %v3085, %v3393
    %v3395 = vpop.f32.mrb[0].mxu0
    %v3396 = vadd.f32 %v3087, %v3395
    %v3397 = vand.u32 %v2318, 4294901760
    %v3398 = vsub.f32 %v2318, %v3397
    %3399 = vmatprep.mubr.f32.mxu0 %v3398
    %v3400 = vand.u32 %v2195, 4294901760
    %v3401 = vsub.f32 %v2195, %v3400
    %3402 = vmatmul.mubr.f32.gmra.mrb[0].mxu0 %v3401
    %v3403 = vpop.f32.mrb[0].mxu0
    %v3404 = vadd.f32 %v3093, %v3403
    %v3405 = vpop.f32.mrb[0].mxu0
    %v3406 = vadd.f32 %v3095, %v3405
    %v3407 = vand.u32 %v2321, 4294901760
    %v3408 = vsub.f32 %v2321, %v3407
    %3409 = vmatprep.mubr.f32.mxu0 %v3408
    %v3410 = vand.u32 %v2197, 4294901760
    %v3411 = vsub.f32 %v2197, %v3410
    %3412 = vmatmul.mubr.f32.gmra.mrb[0].mxu0 %v3411
    %v3413 = vpop.f32.mrb[0].mxu0
    %v3414 = vadd.f32 %v3101, %v3413
    %v3415 = vpop.f32.mrb[0].mxu0
    %v3416 = vadd.f32 %v3103, %v3415
    %v3417 = vand.u32 %v2324, 4294901760
    %v3418 = vsub.f32 %v2324, %v3417
    %3419 = vmatprep.mubr.f32.mxu0 %v3418
    %v3420 = vand.u32 %v2199, 4294901760
    %v3421 = vsub.f32 %v2199, %v3420
    %3422 = vmatmul.mubr.f32.gmra.mrb[0].mxu0 %v3421
    %v3423 = vpop.f32.mrb[0].mxu0
    %v3424 = vadd.f32 %v3109, %v3423
    %v3425 = vpop.f32.mrb[0].mxu0
    %v3426 = vadd.f32 %v3111, %v3425
    %v3427 = vand.u32 %v2327, 4294901760
    %v3428 = vsub.f32 %v2327, %v3427
    %3429 = vmatprep.mubr.f32.mxu0 %v3428
    %v3430 = vand.u32 %v2201, 4294901760
    %v3431 = vsub.f32 %v2201, %v3430
    %3432 = vmatmul.mubr.f32.gmra.mrb[0].mxu0 %v3431
    %v3433 = vpop.f32.mrb[0].mxu0
    %v3434 = vadd.f32 %v3117, %v3433
    %v3435 = vpop.f32.mrb[0].mxu0
    %v3436 = vadd.f32 %v3119, %v3435
    %v3437 = vand.u32 %v2330, 4294901760
    %v3438 = vsub.f32 %v2330, %v3437
    %3439 = vmatprep.mubr.f32.mxu0 %v3438
    %v3440 = vand.u32 %v2203, 4294901760
    %v3441 = vsub.f32 %v2203, %v3440
    %3442 = vmatmul.mubr.f32.gmra.mrb[0].mxu0 %v3441
    %v3443 = vpop.f32.mrb[0].mxu0
    %v3444 = vadd.f32 %v3125, %v3443
    %v3445 = vpop.f32.mrb[0].mxu0
    %v3446 = vadd.f32 %v3127, %v3445
    %v3447 = vand.u32 %v2333, 4294901760
    %v3448 = vsub.f32 %v2333, %v3447
    %3449 = vmatprep.mubr.f32.mxu0 %v3448
    %v3450 = vand.u32 %v2205, 4294901760
    %v3451 = vsub.f32 %v2205, %v3450
    %3452 = vmatmul.mubr.f32.gmra.mrb[0].mxu0 %v3451
    %v3453 = vpop.f32.mrb[0].mxu0
    %v3454 = vadd.f32 %v3133, %v3453
    %v3455 = vpop.f32.mrb[0].mxu0
    %v3456 = vadd.f32 %v3135, %v3455
    %3457 = vdwg.mxu0
    %v3458 = vand.u32 %v2208, 4294901760
    %3459 = vmatprep.subr.mxu0 %v3458
    %v3460 = vand.u32 %v2207, 4294901760
    %3461 = vmatpush1.msra.mxu0 %v3460
    %v3462 = vand.u32 %v2210, 4294901760
    %3463 = vmatprep.subr.mxu0 %v3462
    %v3464 = vand.u32 %v2209, 4294901760
    %3465 = vmatpush1.msra.mxu0 %v3464
    %v3466 = vand.u32 %v2212, 4294901760
    %3467 = vmatprep.subr.mxu0 %v3466
    %v3468 = vand.u32 %v2211, 4294901760
    %3469 = vmatpush1.msra.mxu0 %v3468
    %v3470 = vand.u32 %v2214, 4294901760
    %3471 = vmatprep.subr.mxu0 %v3470
    %v3472 = vand.u32 %v2213, 4294901760
    %3473 = vmatpush1.msra.mxu0 %v3472
    %v3474 = vand.u32 %v2216, 4294901760
    %3475 = vmatprep.subr.mxu0 %v3474
    %v3476 = vand.u32 %v2215, 4294901760
    %3477 = vmatpush1.msra.mxu0 %v3476
    %v3478 = vand.u32 %v2218, 4294901760
    %3479 = vmatprep.subr.mxu0 %v3478
    %v3480 = vand.u32 %v2217, 4294901760
    %3481 = vmatpush1.msra.mxu0 %v3480
    %v3482 = vand.u32 %v2220, 4294901760
    %3483 = vmatprep.subr.mxu0 %v3482
    %v3484 = vand.u32 %v2219, 4294901760
    %3485 = vmatpush1.msra.mxu0 %v3484
    %v3486 = vand.u32 %v2222, 4294901760
    %3487 = vmatprep.subr.mxu0 %v3486
    %v3488 = vand.u32 %v2221, 4294901760
    %3489 = vmatpush1.msra.mxu0 %v3488
    %v3490 = vand.u32 %v2224, 4294901760
    %3491 = vmatprep.subr.mxu0 %v3490
    %v3492 = vand.u32 %v2223, 4294901760
    %3493 = vmatpush1.msra.mxu0 %v3492
    %v3494 = vand.u32 %v2226, 4294901760
    %3495 = vmatprep.subr.mxu0 %v3494
    %v3496 = vand.u32 %v2225, 4294901760
    %3497 = vmatpush1.msra.mxu0 %v3496
    %v3498 = vand.u32 %v2228, 4294901760
    %3499 = vmatprep.subr.mxu0 %v3498
    %v3500 = vand.u32 %v2227, 4294901760
    %3501 = vmatpush1.msra.mxu0 %v3500
    %v3502 = vand.u32 %v2230, 4294901760
    %3503 = vmatprep.subr.mxu0 %v3502
    %v3504 = vand.u32 %v2229, 4294901760
    %3505 = vmatpush1.msra.mxu0 %v3504
    %v3506 = vand.u32 %v2232, 4294901760
    %3507 = vmatprep.subr.mxu0 %v3506
    %v3508 = vand.u32 %v2231, 4294901760
    %3509 = vmatpush1.msra.mxu0 %v3508
    %v3510 = vand.u32 %v2234, 4294901760
    %3511 = vmatprep.subr.mxu0 %v3510
    %v3512 = vand.u32 %v2233, 4294901760
    %3513 = vmatpush1.msra.mxu0 %v3512
    %v3514 = vand.u32 %v2236, 4294901760
    %3515 = vmatprep.subr.mxu0 %v3514
    %v3516 = vand.u32 %v2235, 4294901760
    %3517 = vmatpush1.msra.mxu0 %v3516
    %v3518 = vand.u32 %v2238, 4294901760
    %3519 = vmatprep.subr.mxu0 %v3518
    %v3520 = vand.u32 %v2237, 4294901760
    %3521 = vmatpush1.msra.mxu0 %v3520
    %v3522 = vand.u32 %v2240, 4294901760
    %3523 = vmatprep.subr.mxu0 %v3522
    %v3524 = vand.u32 %v2239, 4294901760
    %3525 = vmatpush1.msra.mxu0 %v3524
    %v3526 = vand.u32 %v2242, 4294901760
    %3527 = vmatprep.subr.mxu0 %v3526
    %v3528 = vand.u32 %v2241, 4294901760
    %3529 = vmatpush1.msra.mxu0 %v3528
    %v3530 = vand.u32 %v2244, 4294901760
    %3531 = vmatprep.subr.mxu0 %v3530
    %v3532 = vand.u32 %v2243, 4294901760
    %3533 = vmatpush1.msra.mxu0 %v3532
    %v3534 = vand.u32 %v2246, 4294901760
    %3535 = vmatprep.subr.mxu0 %v3534
    %v3536 = vand.u32 %v2245, 4294901760
    %3537 = vmatpush1.msra.mxu0 %v3536
    %v3538 = vand.u32 %v2248, 4294901760
    %3539 = vmatprep.subr.mxu0 %v3538
    %v3540 = vand.u32 %v2247, 4294901760
    %3541 = vmatpush1.msra.mxu0 %v3540
    %v3542 = vand.u32 %v2250, 4294901760
    %3543 = vmatprep.subr.mxu0 %v3542
    %v3544 = vand.u32 %v2249, 4294901760
    %3545 = vmatpush1.msra.mxu0 %v3544
    %v3546 = vand.u32 %v2252, 4294901760
    %3547 = vmatprep.subr.mxu0 %v3546
    %v3548 = vand.u32 %v2251, 4294901760
    %3549 = vmatpush1.msra.mxu0 %v3548
    %v3550 = vand.u32 %v2254, 4294901760
    %3551 = vmatprep.subr.mxu0 %v3550
    %v3552 = vand.u32 %v2253, 4294901760
    %3553 = vmatpush1.msra.mxu0 %v3552
    %3554 = vmatprep.subr.mxu0 0.0
    %3555 = vmatpush1.msra.mxu0 0.0
    %3556 = vmatprep.subr.mxu0 0.0
    %3557 = vmatpush1.msra.mxu0 0.0
    %3558 = vmatprep.subr.mxu0 0.0
    %3559 = vmatpush1.msra.mxu0 0.0
    %3560 = vmatprep.subr.mxu0 0.0
    %3561 = vmatpush1.msra.mxu0 0.0
    %3562 = vmatprep.subr.mxu0 0.0
    %3563 = vmatpush1.msra.mxu0 0.0
    %3564 = vmatprep.subr.mxu0 0.0
    %3565 = vmatpush1.msra.mxu0 0.0
    %3566 = vmatprep.subr.mxu0 0.0
    %3567 = vmatpush1.msra.mxu0 0.0
    %3568 = vmatprep.subr.mxu0 0.0
    %3569 = vmatpush1.msra.mxu0 0.0
    %v3570 = vand.u32 %v2288, 4294901760
    %v3571 = vsub.f32 %v2288, %v3570
    %v3572 = vand.u32 %v3571, 4294901760
    %3573 = vmatprep.mubr.f32.mxu0 %v3572
    %v3574 = vand.u32 %v2175, 4294901760
    %v3575 = vsub.f32 %v2175, %v3574
    %v3576 = vand.u32 %v3575, 4294901760
    %3577 = vmatmul.mubr.f32.gmra.mrb[0].mxu0 %v3576
    %v3578 = vpop.f32.mrb[0].mxu0
    %v3579 = vadd.f32 %v3304, %v3578
    %v3580 = vpop.f32.mrb[0].mxu0
    %v3581 = vadd.f32 %v3306, %v3580
    %v3582 = vand.u32 %v2291, 4294901760
    %v3583 = vsub.f32 %v2291, %v3582
    %v3584 = vand.u32 %v3583, 4294901760
    %3585 = vmatprep.mubr.f32.mxu0 %v3584
    %v3586 = vand.u32 %v2177, 4294901760
    %v3587 = vsub.f32 %v2177, %v3586
    %v3588 = vand.u32 %v3587, 4294901760
    %3589 = vmatmul.mubr.f32.gmra.mrb[0].mxu0 %v3588
    %v3590 = vpop.f32.mrb[0].mxu0
    %v3591 = vadd.f32 %v3314, %v3590
    %v3592 = vpop.f32.mrb[0].mxu0
    %v3593 = vadd.f32 %v3316, %v3592
    %v3594 = vand.u32 %v2294, 4294901760
    %v3595 = vsub.f32 %v2294, %v3594
    %v3596 = vand.u32 %v3595, 4294901760
    %3597 = vmatprep.mubr.f32.mxu0 %v3596
    %v3598 = vand.u32 %v2179, 4294901760
    %v3599 = vsub.f32 %v2179, %v3598
    %v3600 = vand.u32 %v3599, 4294901760
    %3601 = vmatmul.mubr.f32.gmra.mrb[0].mxu0 %v3600
    %v3602 = vpop.f32.mrb[0].mxu0
    %v3603 = vadd.f32 %v3324, %v3602
    %v3604 = vpop.f32.mrb[0].mxu0
    %v3605 = vadd.f32 %v3326, %v3604
    %v3606 = vand.u32 %v2297, 4294901760
    %v3607 = vsub.f32 %v2297, %v3606
    %v3608 = vand.u32 %v3607, 4294901760
    %3609 = vmatprep.mubr.f32.mxu0 %v3608
    %v3610 = vand.u32 %v2181, 4294901760
    %v3611 = vsub.f32 %v2181, %v3610
    %v3612 = vand.u32 %v3611, 4294901760
    %3613 = vmatmul.mubr.f32.gmra.mrb[0].mxu0 %v3612
    %v3614 = vpop.f32.mrb[0].mxu0
    %v3615 = vadd.f32 %v3334, %v3614
    %v3616 = vpop.f32.mrb[0].mxu0
    %v3617 = vadd.f32 %v3336, %v3616
    %v3618 = vand.u32 %v2300, 4294901760
    %v3619 = vsub.f32 %v2300, %v3618
    %v3620 = vand.u32 %v3619, 4294901760
    %3621 = vmatprep.mubr.f32.mxu0 %v3620
    %v3622 = vand.u32 %v2183, 4294901760
    %v3623 = vsub.f32 %v2183, %v3622
    %v3624 = vand.u32 %v3623, 4294901760
    %3625 = vmatmul.mubr.f32.gmra.mrb[0].mxu0 %v3624
    %v3626 = vpop.f32.mrb[0].mxu0
    %v3627 = vadd.f32 %v3344, %v3626
    %v3628 = vpop.f32.mrb[0].mxu0
    %v3629 = vadd.f32 %v3346, %v3628
    %v3630 = vand.u32 %v2303, 4294901760
    %v3631 = vsub.f32 %v2303, %v3630
    %v3632 = vand.u32 %v3631, 4294901760
    %3633 = vmatprep.mubr.f32.mxu0 %v3632
    %v3634 = vand.u32 %v2185, 4294901760
    %v3635 = vsub.f32 %v2185, %v3634
    %v3636 = vand.u32 %v3635, 4294901760
    %3637 = vmatmul.mubr.f32.gmra.mrb[0].mxu0 %v3636
    %v3638 = vpop.f32.mrb[0].mxu0
    %v3639 = vadd.f32 %v3354, %v3638
    %v3640 = vpop.f32.mrb[0].mxu0
    %v3641 = vadd.f32 %v3356, %v3640
    %v3642 = vand.u32 %v2306, 4294901760
    %v3643 = vsub.f32 %v2306, %v3642
    %v3644 = vand.u32 %v3643, 4294901760
    %3645 = vmatprep.mubr.f32.mxu0 %v3644
    %v3646 = vand.u32 %v2187, 4294901760
    %v3647 = vsub.f32 %v2187, %v3646
    %v3648 = vand.u32 %v3647, 4294901760
    %3649 = vmatmul.mubr.f32.gmra.mrb[0].mxu0 %v3648
    %v3650 = vpop.f32.mrb[0].mxu0
    %v3651 = vadd.f32 %v3364, %v3650
    %v3652 = vpop.f32.mrb[0].mxu0
    %v3653 = vadd.f32 %v3366, %v3652
    %v3654 = vand.u32 %v2309, 4294901760
    %v3655 = vsub.f32 %v2309, %v3654
    %v3656 = vand.u32 %v3655, 4294901760
    %3657 = vmatprep.mubr.f32.mxu0 %v3656
    %v3658 = vand.u32 %v2189, 4294901760
    %v3659 = vsub.f32 %v2189, %v3658
    %v3660 = vand.u32 %v3659, 4294901760
    %3661 = vmatmul.mubr.f32.gmra.mrb[0].mxu0 %v3660
    %v3662 = vpop.f32.mrb[0].mxu0
    %v3663 = vadd.f32 %v3374, %v3662
    %v3664 = vpop.f32.mrb[0].mxu0
    %v3665 = vadd.f32 %v3376, %v3664
    %v3666 = vand.u32 %v2312, 4294901760
    %v3667 = vsub.f32 %v2312, %v3666
    %v3668 = vand.u32 %v3667, 4294901760
    %3669 = vmatprep.mubr.f32.mxu0 %v3668
    %v3670 = vand.u32 %v2191, 4294901760
    %v3671 = vsub.f32 %v2191, %v3670
    %v3672 = vand.u32 %v3671, 4294901760
    %3673 = vmatmul.mubr.f32.gmra.mrb[0].mxu0 %v3672
    %v3674 = vpop.f32.mrb[0].mxu0
    %v3675 = vadd.f32 %v3384, %v3674
    %v3676 = vpop.f32.mrb[0].mxu0
    %v3677 = vadd.f32 %v3386, %v3676
    %v3678 = vand.u32 %v2315, 4294901760
    %v3679 = vsub.f32 %v2315, %v3678
    %v3680 = vand.u32 %v3679, 4294901760
    %3681 = vmatprep.mubr.f32.mxu0 %v3680
    %v3682 = vand.u32 %v2193, 4294901760
    %v3683 = vsub.f32 %v2193, %v3682
    %v3684 = vand.u32 %v3683, 4294901760
    %3685 = vmatmul.mubr.f32.gmra.mrb[0].mxu0 %v3684
    %v3686 = vpop.f32.mrb[0].mxu0
    %v3687 = vadd.f32 %v3394, %v3686
    %v3688 = vpop.f32.mrb[0].mxu0
    %v3689 = vadd.f32 %v3396, %v3688
    %v3690 = vand.u32 %v2318, 4294901760
    %v3691 = vsub.f32 %v2318, %v3690
    %v3692 = vand.u32 %v3691, 4294901760
    %3693 = vmatprep.mubr.f32.mxu0 %v3692
    %v3694 = vand.u32 %v2195, 4294901760
    %v3695 = vsub.f32 %v2195, %v3694
    %v3696 = vand.u32 %v3695, 4294901760
    %3697 = vmatmul.mubr.f32.gmra.mrb[0].mxu0 %v3696
    %v3698 = vpop.f32.mrb[0].mxu0
    %v3699 = vadd.f32 %v3404, %v3698
    %v3700 = vpop.f32.mrb[0].mxu0
    %v3701 = vadd.f32 %v3406, %v3700
    %v3702 = vand.u32 %v2321, 4294901760
    %v3703 = vsub.f32 %v2321, %v3702
    %v3704 = vand.u32 %v3703, 4294901760
    %3705 = vmatprep.mubr.f32.mxu0 %v3704
    %v3706 = vand.u32 %v2197, 4294901760
    %v3707 = vsub.f32 %v2197, %v3706
    %v3708 = vand.u32 %v3707, 4294901760
    %3709 = vmatmul.mubr.f32.gmra.mrb[0].mxu0 %v3708
    %v3710 = vpop.f32.mrb[0].mxu0
    %v3711 = vadd.f32 %v3414, %v3710
    %v3712 = vpop.f32.mrb[0].mxu0
    %v3713 = vadd.f32 %v3416, %v3712
    %v3714 = vand.u32 %v2324, 4294901760
    %v3715 = vsub.f32 %v2324, %v3714
    %v3716 = vand.u32 %v3715, 4294901760
    %3717 = vmatprep.mubr.f32.mxu0 %v3716
    %v3718 = vand.u32 %v2199, 4294901760
    %v3719 = vsub.f32 %v2199, %v3718
    %v3720 = vand.u32 %v3719, 4294901760
    %3721 = vmatmul.mubr.f32.gmra.mrb[0].mxu0 %v3720
    %v3722 = vpop.f32.mrb[0].mxu0
    %v3723 = vadd.f32 %v3424, %v3722
    %v3724 = vpop.f32.mrb[0].mxu0
    %v3725 = vadd.f32 %v3426, %v3724
    %v3726 = vand.u32 %v2327, 4294901760
    %v3727 = vsub.f32 %v2327, %v3726
    %v3728 = vand.u32 %v3727, 4294901760
    %3729 = vmatprep.mubr.f32.mxu0 %v3728
    %v3730 = vand.u32 %v2201, 4294901760
    %v3731 = vsub.f32 %v2201, %v3730
    %v3732 = vand.u32 %v3731, 4294901760
    %3733 = vmatmul.mubr.f32.gmra.mrb[0].mxu0 %v3732
    %v3734 = vpop.f32.mrb[0].mxu0
    %v3735 = vadd.f32 %v3434, %v3734
    %v3736 = vpop.f32.mrb[0].mxu0
    %v3737 = vadd.f32 %v3436, %v3736
    %v3738 = vand.u32 %v2330, 4294901760
    %v3739 = vsub.f32 %v2330, %v3738
    %v3740 = vand.u32 %v3739, 4294901760
    %3741 = vmatprep.mubr.f32.mxu0 %v3740
    %v3742 = vand.u32 %v2203, 4294901760
    %v3743 = vsub.f32 %v2203, %v3742
    %v3744 = vand.u32 %v3743, 4294901760
    %3745 = vmatmul.mubr.f32.gmra.mrb[0].mxu0 %v3744
    %v3746 = vpop.f32.mrb[0].mxu0
    %v3747 = vadd.f32 %v3444, %v3746
    %v3748 = vpop.f32.mrb[0].mxu0
    %v3749 = vadd.f32 %v3446, %v3748
    %v3750 = vand.u32 %v2333, 4294901760
    %v3751 = vsub.f32 %v2333, %v3750
    %v3752 = vand.u32 %v3751, 4294901760
    %3753 = vmatprep.mubr.f32.mxu0 %v3752
    %v3754 = vand.u32 %v2205, 4294901760
    %v3755 = vsub.f32 %v2205, %v3754
    %v3756 = vand.u32 %v3755, 4294901760
    %3757 = vmatmul.mubr.f32.gmra.mrb[0].mxu0 %v3756
    %v3758 = vpop.f32.mrb[0].mxu0
    %v3759 = vadd.f32 %v3454, %v3758
    %v3760 = vpop.f32.mrb[0].mxu0
    %v3761 = vadd.f32 %v3456, %v3760
    %3762 = vdwg.mxu0
    %v3763 = vand.u32 %v2208, 4294901760
    %v3764 = vsub.f32 %v2208, %v3763
    %v3765 = vand.u32 %v3764, 4294901760
    %3766 = vmatprep.subr.mxu0 %v3765
    %v3767 = vand.u32 %v2207, 4294901760
    %v3768 = vsub.f32 %v2207, %v3767
    %v3769 = vand.u32 %v3768, 4294901760
    %3770 = vmatpush1.msra.mxu0 %v3769
    %v3771 = vand.u32 %v2210, 4294901760
    %v3772 = vsub.f32 %v2210, %v3771
    %v3773 = vand.u32 %v3772, 4294901760
    %3774 = vmatprep.subr.mxu0 %v3773
    %v3775 = vand.u32 %v2209, 4294901760
    %v3776 = vsub.f32 %v2209, %v3775
    %v3777 = vand.u32 %v3776, 4294901760
    %3778 = vmatpush1.msra.mxu0 %v3777
    %v3779 = vand.u32 %v2212, 4294901760
    %v3780 = vsub.f32 %v2212, %v3779
    %v3781 = vand.u32 %v3780, 4294901760
    %3782 = vmatprep.subr.mxu0 %v3781
    %v3783 = vand.u32 %v2211, 4294901760
    %v3784 = vsub.f32 %v2211, %v3783
    %v3785 = vand.u32 %v3784, 4294901760
    %3786 = vmatpush1.msra.mxu0 %v3785
    %v3787 = vand.u32 %v2214, 4294901760
    %v3788 = vsub.f32 %v2214, %v3787
    %v3789 = vand.u32 %v3788, 4294901760
    %3790 = vmatprep.subr.mxu0 %v3789
    %v3791 = vand.u32 %v2213, 4294901760
    %v3792 = vsub.f32 %v2213, %v3791
    %v3793 = vand.u32 %v3792, 4294901760
    %3794 = vmatpush1.msra.mxu0 %v3793
    %v3795 = vand.u32 %v2216, 4294901760
    %v3796 = vsub.f32 %v2216, %v3795
    %v3797 = vand.u32 %v3796, 4294901760
    %3798 = vmatprep.subr.mxu0 %v3797
    %v3799 = vand.u32 %v2215, 4294901760
    %v3800 = vsub.f32 %v2215, %v3799
    %v3801 = vand.u32 %v3800, 4294901760
    %3802 = vmatpush1.msra.mxu0 %v3801
    %v3803 = vand.u32 %v2218, 4294901760
    %v3804 = vsub.f32 %v2218, %v3803
    %v3805 = vand.u32 %v3804, 4294901760
    %3806 = vmatprep.subr.mxu0 %v3805
    %v3807 = vand.u32 %v2217, 4294901760
    %v3808 = vsub.f32 %v2217, %v3807
    %v3809 = vand.u32 %v3808, 4294901760
    %3810 = vmatpush1.msra.mxu0 %v3809
    %v3811 = vand.u32 %v2220, 4294901760
    %v3812 = vsub.f32 %v2220, %v3811
    %v3813 = vand.u32 %v3812, 4294901760
    %3814 = vmatprep.subr.mxu0 %v3813
    %v3815 = vand.u32 %v2219, 4294901760
    %v3816 = vsub.f32 %v2219, %v3815
    %v3817 = vand.u32 %v3816, 4294901760
    %3818 = vmatpush1.msra.mxu0 %v3817
    %v3819 = vand.u32 %v2222, 4294901760
    %v3820 = vsub.f32 %v2222, %v3819
    %v3821 = vand.u32 %v3820, 4294901760
    %3822 = vmatprep.subr.mxu0 %v3821
    %v3823 = vand.u32 %v2221, 4294901760
    %v3824 = vsub.f32 %v2221, %v3823
    %v3825 = vand.u32 %v3824, 4294901760
    %3826 = vmatpush1.msra.mxu0 %v3825
    %v3827 = vand.u32 %v2224, 4294901760
    %v3828 = vsub.f32 %v2224, %v3827
    %v3829 = vand.u32 %v3828, 4294901760
    %3830 = vmatprep.subr.mxu0 %v3829
    %v3831 = vand.u32 %v2223, 4294901760
    %v3832 = vsub.f32 %v2223, %v3831
    %v3833 = vand.u32 %v3832, 4294901760
    %3834 = vmatpush1.msra.mxu0 %v3833
    %v3835 = vand.u32 %v2226, 4294901760
    %v3836 = vsub.f32 %v2226, %v3835
    %v3837 = vand.u32 %v3836, 4294901760
    %3838 = vmatprep.subr.mxu0 %v3837
    %v3839 = vand.u32 %v2225, 4294901760
    %v3840 = vsub.f32 %v2225, %v3839
    %v3841 = vand.u32 %v3840, 4294901760
    %3842 = vmatpush1.msra.mxu0 %v3841
    %v3843 = vand.u32 %v2228, 4294901760
    %v3844 = vsub.f32 %v2228, %v3843
    %v3845 = vand.u32 %v3844, 4294901760
    %3846 = vmatprep.subr.mxu0 %v3845
    %v3847 = vand.u32 %v2227, 4294901760
    %v3848 = vsub.f32 %v2227, %v3847
    %v3849 = vand.u32 %v3848, 4294901760
    %3850 = vmatpush1.msra.mxu0 %v3849
    %v3851 = vand.u32 %v2230, 4294901760
    %v3852 = vsub.f32 %v2230, %v3851
    %v3853 = vand.u32 %v3852, 4294901760
    %3854 = vmatprep.subr.mxu0 %v3853
    %v3855 = vand.u32 %v2229, 4294901760
    %v3856 = vsub.f32 %v2229, %v3855
    %v3857 = vand.u32 %v3856, 4294901760
    %3858 = vmatpush1.msra.mxu0 %v3857
    %v3859 = vand.u32 %v2232, 4294901760
    %v3860 = vsub.f32 %v2232, %v3859
    %v3861 = vand.u32 %v3860, 4294901760
    %3862 = vmatprep.subr.mxu0 %v3861
    %v3863 = vand.u32 %v2231, 4294901760
    %v3864 = vsub.f32 %v2231, %v3863
    %v3865 = vand.u32 %v3864, 4294901760
    %3866 = vmatpush1.msra.mxu0 %v3865
    %v3867 = vand.u32 %v2234, 4294901760
    %v3868 = vsub.f32 %v2234, %v3867
    %v3869 = vand.u32 %v3868, 4294901760
    %3870 = vmatprep.subr.mxu0 %v3869
    %v3871 = vand.u32 %v2233, 4294901760
    %v3872 = vsub.f32 %v2233, %v3871
    %v3873 = vand.u32 %v3872, 4294901760
    %3874 = vmatpush1.msra.mxu0 %v3873
    %v3875 = vand.u32 %v2236, 4294901760
    %v3876 = vsub.f32 %v2236, %v3875
    %v3877 = vand.u32 %v3876, 4294901760
    %3878 = vmatprep.subr.mxu0 %v3877
    %v3879 = vand.u32 %v2235, 4294901760
    %v3880 = vsub.f32 %v2235, %v3879
    %v3881 = vand.u32 %v3880, 4294901760
    %3882 = vmatpush1.msra.mxu0 %v3881
    %v3883 = vand.u32 %v2238, 4294901760
    %v3884 = vsub.f32 %v2238, %v3883
    %v3885 = vand.u32 %v3884, 4294901760
    %3886 = vmatprep.subr.mxu0 %v3885
    %v3887 = vand.u32 %v2237, 4294901760
    %v3888 = vsub.f32 %v2237, %v3887
    %v3889 = vand.u32 %v3888, 4294901760
    %3890 = vmatpush1.msra.mxu0 %v3889
    %v3891 = vand.u32 %v2240, 4294901760
    %v3892 = vsub.f32 %v2240, %v3891
    %v3893 = vand.u32 %v3892, 4294901760
    %3894 = vmatprep.subr.mxu0 %v3893
    %v3895 = vand.u32 %v2239, 4294901760
    %v3896 = vsub.f32 %v2239, %v3895
    %v3897 = vand.u32 %v3896, 4294901760
    %3898 = vmatpush1.msra.mxu0 %v3897
    %v3899 = vand.u32 %v2242, 4294901760
    %v3900 = vsub.f32 %v2242, %v3899
    %v3901 = vand.u32 %v3900, 4294901760
    %3902 = vmatprep.subr.mxu0 %v3901
    %v3903 = vand.u32 %v2241, 4294901760
    %v3904 = vsub.f32 %v2241, %v3903
    %v3905 = vand.u32 %v3904, 4294901760
    %3906 = vmatpush1.msra.mxu0 %v3905
    %v3907 = vand.u32 %v2244, 4294901760
    %v3908 = vsub.f32 %v2244, %v3907
    %v3909 = vand.u32 %v3908, 4294901760
    %3910 = vmatprep.subr.mxu0 %v3909
    %v3911 = vand.u32 %v2243, 4294901760
    %v3912 = vsub.f32 %v2243, %v3911
    %v3913 = vand.u32 %v3912, 4294901760
    %3914 = vmatpush1.msra.mxu0 %v3913
    %v3915 = vand.u32 %v2246, 4294901760
    %v3916 = vsub.f32 %v2246, %v3915
    %v3917 = vand.u32 %v3916, 4294901760
    %3918 = vmatprep.subr.mxu0 %v3917
    %v3919 = vand.u32 %v2245, 4294901760
    %v3920 = vsub.f32 %v2245, %v3919
    %v3921 = vand.u32 %v3920, 4294901760
    %3922 = vmatpush1.msra.mxu0 %v3921
    %v3923 = vand.u32 %v2248, 4294901760
    %v3924 = vsub.f32 %v2248, %v3923
    %v3925 = vand.u32 %v3924, 4294901760
    %3926 = vmatprep.subr.mxu0 %v3925
    %v3927 = vand.u32 %v2247, 4294901760
    %v3928 = vsub.f32 %v2247, %v3927
    %v3929 = vand.u32 %v3928, 4294901760
    %3930 = vmatpush1.msra.mxu0 %v3929
    %v3931 = vand.u32 %v2250, 4294901760
    %v3932 = vsub.f32 %v2250, %v3931
    %v3933 = vand.u32 %v3932, 4294901760
    %3934 = vmatprep.subr.mxu0 %v3933
    %v3935 = vand.u32 %v2249, 4294901760
    %v3936 = vsub.f32 %v2249, %v3935
    %v3937 = vand.u32 %v3936, 4294901760
    %3938 = vmatpush1.msra.mxu0 %v3937
    %v3939 = vand.u32 %v2252, 4294901760
    %v3940 = vsub.f32 %v2252, %v3939
    %v3941 = vand.u32 %v3940, 4294901760
    %3942 = vmatprep.subr.mxu0 %v3941
    %v3943 = vand.u32 %v2251, 4294901760
    %v3944 = vsub.f32 %v2251, %v3943
    %v3945 = vand.u32 %v3944, 4294901760
    %3946 = vmatpush1.msra.mxu0 %v3945
    %v3947 = vand.u32 %v2254, 4294901760
    %v3948 = vsub.f32 %v2254, %v3947
    %v3949 = vand.u32 %v3948, 4294901760
    %3950 = vmatprep.subr.mxu0 %v3949
    %v3951 = vand.u32 %v2253, 4294901760
    %v3952 = vsub.f32 %v2253, %v3951
    %v3953 = vand.u32 %v3952, 4294901760
    %3954 = vmatpush1.msra.mxu0 %v3953
    %3955 = vmatprep.subr.mxu0 0.0
    %3956 = vmatpush1.msra.mxu0 0.0
    %3957 = vmatprep.subr.mxu0 0.0
    %3958 = vmatpush1.msra.mxu0 0.0
    %3959 = vmatprep.subr.mxu0 0.0
    %3960 = vmatpush1.msra.mxu0 0.0
    %3961 = vmatprep.subr.mxu0 0.0
    %3962 = vmatpush1.msra.mxu0 0.0
    %3963 = vmatprep.subr.mxu0 0.0
    %3964 = vmatpush1.msra.mxu0 0.0
    %3965 = vmatprep.subr.mxu0 0.0
    %3966 = vmatpush1.msra.mxu0 0.0
    %3967 = vmatprep.subr.mxu0 0.0
    %3968 = vmatpush1.msra.mxu0 0.0
    %3969 = vmatprep.subr.mxu0 0.0
    %3970 = vmatpush1.msra.mxu0 0.0
    %v3971 = vand.u32 %v2288, 4294901760
    %3972 = vmatprep.mubr.f32.mxu0 %v3971
    %v3973 = vand.u32 %v2175, 4294901760
    %3974 = vmatmul.mubr.f32.gmra.mrb[0].mxu0 %v3973
    %v3975 = vpop.f32.mrb[0].mxu0
    %v3976 = vadd.f32 %v3579, %v3975
    %v3977 = vpop.f32.mrb[0].mxu0
    %v3978 = vadd.f32 %v3581, %v3977
    %v3979 = vand.u32 %v2291, 4294901760
    %3980 = vmatprep.mubr.f32.mxu0 %v3979
    %v3981 = vand.u32 %v2177, 4294901760
    %3982 = vmatmul.mubr.f32.gmra.mrb[0].mxu0 %v3981
    %v3983 = vpop.f32.mrb[0].mxu0
    %v3984 = vadd.f32 %v3591, %v3983
    %v3985 = vpop.f32.mrb[0].mxu0
    %v3986 = vadd.f32 %v3593, %v3985
    %v3987 = vand.u32 %v2294, 4294901760
    %3988 = vmatprep.mubr.f32.mxu0 %v3987
    %v3989 = vand.u32 %v2179, 4294901760
    %3990 = vmatmul.mubr.f32.gmra.mrb[0].mxu0 %v3989
    %v3991 = vpop.f32.mrb[0].mxu0
    %v3992 = vadd.f32 %v3603, %v3991
    %v3993 = vpop.f32.mrb[0].mxu0
    %v3994 = vadd.f32 %v3605, %v3993
    %v3995 = vand.u32 %v2297, 4294901760
    %3996 = vmatprep.mubr.f32.mxu0 %v3995
    %v3997 = vand.u32 %v2181, 4294901760
    %3998 = vmatmul.mubr.f32.gmra.mrb[0].mxu0 %v3997
    %v3999 = vpop.f32.mrb[0].mxu0
    %v4000 = vadd.f32 %v3615, %v3999
    %v4001 = vpop.f32.mrb[0].mxu0
    %v4002 = vadd.f32 %v3617, %v4001
    %v4003 = vand.u32 %v2300, 4294901760
    %4004 = vmatprep.mubr.f32.mxu0 %v4003
    %v4005 = vand.u32 %v2183, 4294901760
    %4006 = vmatmul.mubr.f32.gmra.mrb[0].mxu0 %v4005
    %v4007 = vpop.f32.mrb[0].mxu0
    %v4008 = vadd.f32 %v3627, %v4007
    %v4009 = vpop.f32.mrb[0].mxu0
    %v4010 = vadd.f32 %v3629, %v4009
    %v4011 = vand.u32 %v2303, 4294901760
    %4012 = vmatprep.mubr.f32.mxu0 %v4011
    %v4013 = vand.u32 %v2185, 4294901760
    %4014 = vmatmul.mubr.f32.gmra.mrb[0].mxu0 %v4013
    %v4015 = vpop.f32.mrb[0].mxu0
    %v4016 = vadd.f32 %v3639, %v4015
    %v4017 = vpop.f32.mrb[0].mxu0
    %v4018 = vadd.f32 %v3641, %v4017
    %v4019 = vand.u32 %v2306, 4294901760
    %4020 = vmatprep.mubr.f32.mxu0 %v4019
    %v4021 = vand.u32 %v2187, 4294901760
    %4022 = vmatmul.mubr.f32.gmra.mrb[0].mxu0 %v4021
    %v4023 = vpop.f32.mrb[0].mxu0
    %v4024 = vadd.f32 %v3651, %v4023
    %v4025 = vpop.f32.mrb[0].mxu0
    %v4026 = vadd.f32 %v3653, %v4025
    %v4027 = vand.u32 %v2309, 4294901760
    %4028 = vmatprep.mubr.f32.mxu0 %v4027
    %v4029 = vand.u32 %v2189, 4294901760
    %4030 = vmatmul.mubr.f32.gmra.mrb[0].mxu0 %v4029
    %v4031 = vpop.f32.mrb[0].mxu0
    %v4032 = vadd.f32 %v3663, %v4031
    %v4033 = vpop.f32.mrb[0].mxu0
    %v4034 = vadd.f32 %v3665, %v4033
    %v4035 = vand.u32 %v2312, 4294901760
    %4036 = vmatprep.mubr.f32.mxu0 %v4035
    %v4037 = vand.u32 %v2191, 4294901760
    %4038 = vmatmul.mubr.f32.gmra.mrb[0].mxu0 %v4037
    %v4039 = vpop.f32.mrb[0].mxu0
    %v4040 = vadd.f32 %v3675, %v4039
    %v4041 = vpop.f32.mrb[0].mxu0
    %v4042 = vadd.f32 %v3677, %v4041
    %v4043 = vand.u32 %v2315, 4294901760
    %4044 = vmatprep.mubr.f32.mxu0 %v4043
    %v4045 = vand.u32 %v2193, 4294901760
    %4046 = vmatmul.mubr.f32.gmra.mrb[0].mxu0 %v4045
    %v4047 = vpop.f32.mrb[0].mxu0
    %v4048 = vadd.f32 %v3687, %v4047
    %v4049 = vpop.f32.mrb[0].mxu0
    %v4050 = vadd.f32 %v3689, %v4049
    %v4051 = vand.u32 %v2318, 4294901760
    %4052 = vmatprep.mubr.f32.mxu0 %v4051
    %v4053 = vand.u32 %v2195, 4294901760
    %4054 = vmatmul.mubr.f32.gmra.mrb[0].mxu0 %v4053
    %v4055 = vpop.f32.mrb[0].mxu0
    %v4056 = vadd.f32 %v3699, %v4055
    %v4057 = vpop.f32.mrb[0].mxu0
    %v4058 = vadd.f32 %v3701, %v4057
    %v4059 = vand.u32 %v2321, 4294901760
    %4060 = vmatprep.mubr.f32.mxu0 %v4059
    %v4061 = vand.u32 %v2197, 4294901760
    %4062 = vmatmul.mubr.f32.gmra.mrb[0].mxu0 %v4061
    %v4063 = vpop.f32.mrb[0].mxu0
    %v4064 = vadd.f32 %v3711, %v4063
    %v4065 = vpop.f32.mrb[0].mxu0
    %v4066 = vadd.f32 %v3713, %v4065
    %v4067 = vand.u32 %v2324, 4294901760
    %4068 = vmatprep.mubr.f32.mxu0 %v4067
    %v4069 = vand.u32 %v2199, 4294901760
    %4070 = vmatmul.mubr.f32.gmra.mrb[0].mxu0 %v4069
    %v4071 = vpop.f32.mrb[0].mxu0
    %v4072 = vadd.f32 %v3723, %v4071
    %v4073 = vpop.f32.mrb[0].mxu0
    %v4074 = vadd.f32 %v3725, %v4073
    %v4075 = vand.u32 %v2327, 4294901760
    %4076 = vmatprep.mubr.f32.mxu0 %v4075
    %v4077 = vand.u32 %v2201, 4294901760
    %4078 = vmatmul.mubr.f32.gmra.mrb[0].mxu0 %v4077
    %v4079 = vpop.f32.mrb[0].mxu0
    %v4080 = vadd.f32 %v3735, %v4079
    %v4081 = vpop.f32.mrb[0].mxu0
    %v4082 = vadd.f32 %v3737, %v4081
    %v4083 = vand.u32 %v2330, 4294901760
    %4084 = vmatprep.mubr.f32.mxu0 %v4083
    %v4085 = vand.u32 %v2203, 4294901760
    %4086 = vmatmul.mubr.f32.gmra.mrb[0].mxu0 %v4085
    %v4087 = vpop.f32.mrb[0].mxu0
    %v4088 = vadd.f32 %v3747, %v4087
    %v4089 = vpop.f32.mrb[0].mxu0
    %v4090 = vadd.f32 %v3749, %v4089
    %v4091 = vand.u32 %v2333, 4294901760
    %4092 = vmatprep.mubr.f32.mxu0 %v4091
    %v4093 = vand.u32 %v2205, 4294901760
    %4094 = vmatmul.mubr.f32.gmra.mrb[0].mxu0 %v4093
    %v4095 = vpop.f32.mrb[0].mxu0
    %v4096 = vadd.f32 %v3759, %v4095
    %v4097 = vpop.f32.mrb[0].mxu0
    %v4098 = vadd.f32 %v3761, %v4097
    %4099 = vdwg.mxu0
    %v4100 = vand.u32 %v2208, 4294901760
    %4101 = vmatprep.subr.mxu0 %v4100
    %v4102 = vand.u32 %v2207, 4294901760
    %4103 = vmatpush1.msra.mxu0 %v4102
    %v4104 = vand.u32 %v2210, 4294901760
    %4105 = vmatprep.subr.mxu0 %v4104
    %v4106 = vand.u32 %v2209, 4294901760
    %4107 = vmatpush1.msra.mxu0 %v4106
    %v4108 = vand.u32 %v2212, 4294901760
    %4109 = vmatprep.subr.mxu0 %v4108
    %v4110 = vand.u32 %v2211, 4294901760
    %4111 = vmatpush1.msra.mxu0 %v4110
    %v4112 = vand.u32 %v2214, 4294901760
    %4113 = vmatprep.subr.mxu0 %v4112
    %v4114 = vand.u32 %v2213, 4294901760
    %4115 = vmatpush1.msra.mxu0 %v4114
    %v4116 = vand.u32 %v2216, 4294901760
    %4117 = vmatprep.subr.mxu0 %v4116
    %v4118 = vand.u32 %v2215, 4294901760
    %4119 = vmatpush1.msra.mxu0 %v4118
    %v4120 = vand.u32 %v2218, 4294901760
    %4121 = vmatprep.subr.mxu0 %v4120
    %v4122 = vand.u32 %v2217, 4294901760
    %4123 = vmatpush1.msra.mxu0 %v4122
    %v4124 = vand.u32 %v2220, 4294901760
    %4125 = vmatprep.subr.mxu0 %v4124
    %v4126 = vand.u32 %v2219, 4294901760
    %4127 = vmatpush1.msra.mxu0 %v4126
    %v4128 = vand.u32 %v2222, 4294901760
    %4129 = vmatprep.subr.mxu0 %v4128
    %v4130 = vand.u32 %v2221, 4294901760
    %4131 = vmatpush1.msra.mxu0 %v4130
    %v4132 = vand.u32 %v2224, 4294901760
    %4133 = vmatprep.subr.mxu0 %v4132
    %v4134 = vand.u32 %v2223, 4294901760
    %4135 = vmatpush1.msra.mxu0 %v4134
    %v4136 = vand.u32 %v2226, 4294901760
    %4137 = vmatprep.subr.mxu0 %v4136
    %v4138 = vand.u32 %v2225, 4294901760
    %4139 = vmatpush1.msra.mxu0 %v4138
    %v4140 = vand.u32 %v2228, 4294901760
    %4141 = vmatprep.subr.mxu0 %v4140
    %v4142 = vand.u32 %v2227, 4294901760
    %4143 = vmatpush1.msra.mxu0 %v4142
    %v4144 = vand.u32 %v2230, 4294901760
    %4145 = vmatprep.subr.mxu0 %v4144
    %v4146 = vand.u32 %v2229, 4294901760
    %4147 = vmatpush1.msra.mxu0 %v4146
    %v4148 = vand.u32 %v2232, 4294901760
    %4149 = vmatprep.subr.mxu0 %v4148
    %v4150 = vand.u32 %v2231, 4294901760
    %4151 = vmatpush1.msra.mxu0 %v4150
    %v4152 = vand.u32 %v2234, 4294901760
    %4153 = vmatprep.subr.mxu0 %v4152
    %v4154 = vand.u32 %v2233, 4294901760
    %4155 = vmatpush1.msra.mxu0 %v4154
    %v4156 = vand.u32 %v2236, 4294901760
    %4157 = vmatprep.subr.mxu0 %v4156
    %v4158 = vand.u32 %v2235, 4294901760
    %4159 = vmatpush1.msra.mxu0 %v4158
    %v4160 = vand.u32 %v2238, 4294901760
    %4161 = vmatprep.subr.mxu0 %v4160
    %v4162 = vand.u32 %v2237, 4294901760
    %4163 = vmatpush1.msra.mxu0 %v4162
    %v4164 = vand.u32 %v2240, 4294901760
    %4165 = vmatprep.subr.mxu0 %v4164
    %v4166 = vand.u32 %v2239, 4294901760
    %4167 = vmatpush1.msra.mxu0 %v4166
    %v4168 = vand.u32 %v2242, 4294901760
    %4169 = vmatprep.subr.mxu0 %v4168
    %v4170 = vand.u32 %v2241, 4294901760
    %4171 = vmatpush1.msra.mxu0 %v4170
    %v4172 = vand.u32 %v2244, 4294901760
    %4173 = vmatprep.subr.mxu0 %v4172
    %v4174 = vand.u32 %v2243, 4294901760
    %4175 = vmatpush1.msra.mxu0 %v4174
    %v4176 = vand.u32 %v2246, 4294901760
    %4177 = vmatprep.subr.mxu0 %v4176
    %v4178 = vand.u32 %v2245, 4294901760
    %4179 = vmatpush1.msra.mxu0 %v4178
    %v4180 = vand.u32 %v2248, 4294901760
    %4181 = vmatprep.subr.mxu0 %v4180
    %v4182 = vand.u32 %v2247, 4294901760
    %4183 = vmatpush1.msra.mxu0 %v4182
    %v4184 = vand.u32 %v2250, 4294901760
    %4185 = vmatprep.subr.mxu0 %v4184
    %v4186 = vand.u32 %v2249, 4294901760
    %4187 = vmatpush1.msra.mxu0 %v4186
    %v4188 = vand.u32 %v2252, 4294901760
    %4189 = vmatprep.subr.mxu0 %v4188
    %v4190 = vand.u32 %v2251, 4294901760
    %4191 = vmatpush1.msra.mxu0 %v4190
    %v4192 = vand.u32 %v2254, 4294901760
    %4193 = vmatprep.subr.mxu0 %v4192
    %v4194 = vand.u32 %v2253, 4294901760
    %4195 = vmatpush1.msra.mxu0 %v4194
    %4196 = vmatprep.subr.mxu0 0.0
    %4197 = vmatpush1.msra.mxu0 0.0
    %4198 = vmatprep.subr.mxu0 0.0
    %4199 = vmatpush1.msra.mxu0 0.0
    %4200 = vmatprep.subr.mxu0 0.0
    %4201 = vmatpush1.msra.mxu0 0.0
    %4202 = vmatprep.subr.mxu0 0.0
    %4203 = vmatpush1.msra.mxu0 0.0
    %4204 = vmatprep.subr.mxu0 0.0
    %4205 = vmatpush1.msra.mxu0 0.0
    %4206 = vmatprep.subr.mxu0 0.0
    %4207 = vmatpush1.msra.mxu0 0.0
    %4208 = vmatprep.subr.mxu0 0.0
    %4209 = vmatpush1.msra.mxu0 0.0
    %4210 = vmatprep.subr.mxu0 0.0
    %4211 = vmatpush1.msra.mxu0 0.0
    %v4212 = vand.u32 %v2288, 4294901760
    %4213 = vmatprep.mubr.f32.mxu0 %v4212
    %v4214 = vand.u32 %v2175, 4294901760
    %4215 = vmatmul.mubr.f32.gmra.mrb[0].mxu0 %v4214
    %v4216 = vpop.f32.mrb[0].mxu0
    %v4217 = vadd.f32 %v3976, %v4216
    %v4218 = vpop.f32.mrb[0].mxu0
    %v4219 = vadd.f32 %v3978, %v4218
    %v4220 = vand.u32 %v2291, 4294901760
    %4221 = vmatprep.mubr.f32.mxu0 %v4220
    %v4222 = vand.u32 %v2177, 4294901760
    %4223 = vmatmul.mubr.f32.gmra.mrb[0].mxu0 %v4222
    %v4224 = vpop.f32.mrb[0].mxu0
    %v4225 = vadd.f32 %v3984, %v4224
    %v4226 = vpop.f32.mrb[0].mxu0
    %v4227 = vadd.f32 %v3986, %v4226
    %v4228 = vand.u32 %v2294, 4294901760
    %4229 = vmatprep.mubr.f32.mxu0 %v4228
    %v4230 = vand.u32 %v2179, 4294901760
    %4231 = vmatmul.mubr.f32.gmra.mrb[0].mxu0 %v4230
    %v4232 = vpop.f32.mrb[0].mxu0
    %v4233 = vadd.f32 %v3992, %v4232
    %v4234 = vpop.f32.mrb[0].mxu0
    %v4235 = vadd.f32 %v3994, %v4234
    %v4236 = vand.u32 %v2297, 4294901760
    %4237 = vmatprep.mubr.f32.mxu0 %v4236
    %v4238 = vand.u32 %v2181, 4294901760
    %4239 = vmatmul.mubr.f32.gmra.mrb[0].mxu0 %v4238
    %v4240 = vpop.f32.mrb[0].mxu0
    %v4241 = vadd.f32 %v4000, %v4240
    %v4242 = vpop.f32.mrb[0].mxu0
    %v4243 = vadd.f32 %v4002, %v4242
    %v4244 = vand.u32 %v2300, 4294901760
    %4245 = vmatprep.mubr.f32.mxu0 %v4244
    %v4246 = vand.u32 %v2183, 4294901760
    %4247 = vmatmul.mubr.f32.gmra.mrb[0].mxu0 %v4246
    %v4248 = vpop.f32.mrb[0].mxu0
    %v4249 = vadd.f32 %v4008, %v4248
    %v4250 = vpop.f32.mrb[0].mxu0
    %v4251 = vadd.f32 %v4010, %v4250
    %v4252 = vand.u32 %v2303, 4294901760
    %4253 = vmatprep.mubr.f32.mxu0 %v4252
    %v4254 = vand.u32 %v2185, 4294901760
    %4255 = vmatmul.mubr.f32.gmra.mrb[0].mxu0 %v4254
    %v4256 = vpop.f32.mrb[0].mxu0
    %v4257 = vadd.f32 %v4016, %v4256
    %v4258 = vpop.f32.mrb[0].mxu0
    %v4259 = vadd.f32 %v4018, %v4258
    %v4260 = vand.u32 %v2306, 4294901760
    %4261 = vmatprep.mubr.f32.mxu0 %v4260
    %v4262 = vand.u32 %v2187, 4294901760
    %4263 = vmatmul.mubr.f32.gmra.mrb[0].mxu0 %v4262
    %v4264 = vpop.f32.mrb[0].mxu0
    %v4265 = vadd.f32 %v4024, %v4264
    %v4266 = vpop.f32.mrb[0].mxu0
    %v4267 = vadd.f32 %v4026, %v4266
    %v4268 = vand.u32 %v2309, 4294901760
    %4269 = vmatprep.mubr.f32.mxu0 %v4268
    %v4270 = vand.u32 %v2189, 4294901760
    %4271 = vmatmul.mubr.f32.gmra.mrb[0].mxu0 %v4270
    %v4272 = vpop.f32.mrb[0].mxu0
    %v4273 = vadd.f32 %v4032, %v4272
    %v4274 = vpop.f32.mrb[0].mxu0
    %v4275 = vadd.f32 %v4034, %v4274
    %v4276 = vand.u32 %v2312, 4294901760
    %4277 = vmatprep.mubr.f32.mxu0 %v4276
    %v4278 = vand.u32 %v2191, 4294901760
    %4279 = vmatmul.mubr.f32.gmra.mrb[0].mxu0 %v4278
    %v4280 = vpop.f32.mrb[0].mxu0
    %v4281 = vadd.f32 %v4040, %v4280
    %v4282 = vpop.f32.mrb[0].mxu0
    %v4283 = vadd.f32 %v4042, %v4282
    %v4284 = vand.u32 %v2315, 4294901760
    %4285 = vmatprep.mubr.f32.mxu0 %v4284
    %v4286 = vand.u32 %v2193, 4294901760
    %4287 = vmatmul.mubr.f32.gmra.mrb[0].mxu0 %v4286
    %v4288 = vpop.f32.mrb[0].mxu0
    %v4289 = vadd.f32 %v4048, %v4288
    %v4290 = vpop.f32.mrb[0].mxu0
    %v4291 = vadd.f32 %v4050, %v4290
    %v4292 = vand.u32 %v2318, 4294901760
    %4293 = vmatprep.mubr.f32.mxu0 %v4292
    %v4294 = vand.u32 %v2195, 4294901760
    %4295 = vmatmul.mubr.f32.gmra.mrb[0].mxu0 %v4294
    %v4296 = vpop.f32.mrb[0].mxu0
    %v4297 = vadd.f32 %v4056, %v4296
    %v4298 = vpop.f32.mrb[0].mxu0
    %v4299 = vadd.f32 %v4058, %v4298
    %v4300 = vand.u32 %v2321, 4294901760
    %4301 = vmatprep.mubr.f32.mxu0 %v4300
    %v4302 = vand.u32 %v2197, 4294901760
    %4303 = vmatmul.mubr.f32.gmra.mrb[0].mxu0 %v4302
    %v4304 = vpop.f32.mrb[0].mxu0
    %v4305 = vadd.f32 %v4064, %v4304
    %v4306 = vpop.f32.mrb[0].mxu0
    %v4307 = vadd.f32 %v4066, %v4306
    %v4308 = vand.u32 %v2324, 4294901760
    %4309 = vmatprep.mubr.f32.mxu0 %v4308
    %v4310 = vand.u32 %v2199, 4294901760
    %4311 = vmatmul.mubr.f32.gmra.mrb[0].mxu0 %v4310
    %v4312 = vpop.f32.mrb[0].mxu0
    %v4313 = vadd.f32 %v4072, %v4312
    %v4314 = vpop.f32.mrb[0].mxu0
    %v4315 = vadd.f32 %v4074, %v4314
    %v4316 = vand.u32 %v2327, 4294901760
    %4317 = vmatprep.mubr.f32.mxu0 %v4316
    %v4318 = vand.u32 %v2201, 4294901760
    %4319 = vmatmul.mubr.f32.gmra.mrb[0].mxu0 %v4318
    %v4320 = vpop.f32.mrb[0].mxu0
    %v4321 = vadd.f32 %v4080, %v4320
    %v4322 = vpop.f32.mrb[0].mxu0
    %v4323 = vadd.f32 %v4082, %v4322
    %v4324 = vand.u32 %v2330, 4294901760
    %4325 = vmatprep.mubr.f32.mxu0 %v4324
    %v4326 = vand.u32 %v2203, 4294901760
    %4327 = vmatmul.mubr.f32.gmra.mrb[0].mxu0 %v4326
    %v4328 = vpop.f32.mrb[0].mxu0
    %v4329 = vadd.f32 %v4088, %v4328
    %v4330 = vpop.f32.mrb[0].mxu0
    %v4331 = vadd.f32 %v4090, %v4330
    %v4332 = vand.u32 %v2333, 4294901760
    %4333 = vmatprep.mubr.f32.mxu0 %v4332
    %v4334 = vand.u32 %v2205, 4294901760
    %4335 = vmatmul.mubr.f32.gmra.mrb[0].mxu0 %v4334
    %v4336 = vpop.f32.mrb[0].mxu0
    %v4337 = vadd.f32 %v4096, %v4336
    %v4338 = vpop.f32.mrb[0].mxu0
    %v4339 = vadd.f32 %v4098, %v4338
    %4340 = vdwg.mxu0
    %4341 = vst [vmem:[#allocation3] sm:$0xff] %v4217
    %4342 = vst [vmem:[#allocation3 + $0x8] sm:$0xff] %v4219
    %4343 = vst [vmem:[#allocation3 + $0x10] sm:$0xff] %v4225
    %4344 = vst [vmem:[#allocation3 + $0x18] sm:$0xff] %v4227
    %4345 = vst [vmem:[#allocation3 + $0x20] sm:$0xff] %v4233
    %4346 = vst [vmem:[#allocation3 + $0x28] sm:$0xff] %v4235
    %4347 = vst [vmem:[#allocation3 + $0x30] sm:$0xff] %v4241
    %4348 = vst [vmem:[#allocation3 + $0x38] sm:$0xff] %v4243
    %4349 = vst [vmem:[#allocation3 + $0x40] sm:$0xff] %v4249
    %4350 = vst [vmem:[#allocation3 + $0x48] sm:$0xff] %v4251
    %4351 = vst [vmem:[#allocation3 + $0x50] sm:$0xff] %v4257
    %4352 = vst [vmem:[#allocation3 + $0x58] sm:$0xff] %v4259
    %4353 = vst [vmem:[#allocation3 + $0x60] sm:$0xff] %v4265
    %4354 = vst [vmem:[#allocation3 + $0x68] sm:$0xff] %v4267
    %4355 = vst [vmem:[#allocation3 + $0x70] sm:$0xff] %v4273
    %4356 = vst [vmem:[#allocation3 + $0x78] sm:$0xff] %v4275
    %4357 = vst [vmem:[#allocation3 + $0x80] sm:$0xff] %v4281
    %4358 = vst [vmem:[#allocation3 + $0x88] sm:$0xff] %v4283
    %4359 = vst [vmem:[#allocation3 + $0x90] sm:$0xff] %v4289
    %4360 = vst [vmem:[#allocation3 + $0x98] sm:$0xff] %v4291
    %4361 = vst [vmem:[#allocation3 + $0xa0] sm:$0xff] %v4297
    %4362 = vst [vmem:[#allocation3 + $0xa8] sm:$0xff] %v4299
    %4363 = vst [vmem:[#allocation3 + $0xb0] sm:$0xff] %v4305
    %4364 = vst [vmem:[#allocation3 + $0xb8] sm:$0xff] %v4307
    %4365 = vst [vmem:[#allocation3 + $0xc0] sm:$0xff] %v4313
    %4366 = vst [vmem:[#allocation3 + $0xc8] sm:$0xff] %v4315
    %4367 = vst [vmem:[#allocation3 + $0xd0] sm:$0xff] %v4321
    %4368 = vst [vmem:[#allocation3 + $0xd8] sm:$0xff] %v4323
    %4369 = vst [vmem:[#allocation3 + $0xe0] sm:$0xff] %v4329
    %4370 = vst [vmem:[#allocation3 + $0xe8] sm:$0xff] %v4331
    %4371 = vst [vmem:[#allocation3 + $0xf0] sm:$0xff] %v4337
    %4372 = vst [vmem:[#allocation3 + $0xf8] sm:$0xff] %v4339
    // Predicated region
    $region18: #{tpu_custom_call.1} parent=1 // pred_check
      _
    $region19: #{tpu_custom_call.1} parent=1 // pred_check_branch
      %4374 = sbr.rel (0) target = $region21
    $region20: #{tpu_custom_call.1} parent=1 // pred_region
      %s4376 = ssub.s32 4096, 4096
      %4377 = vsyncadd [#allocation4], %s4376
      %s4378 = sshll.u32 [#allocation3], 4
      %s4379 = int_to_ptr.vmem [resolvable:$true] %s4378
      %4384 = dma.vmem_to_hbm [thread:$0]  %s4379, 4096, %s4, [#allocation4], 256, 256, 16
    $region21: #{tpu_custom_call.1} parent=1 // pred_fallthru
      _
    // Predicated region
    $region22: #{tpu_custom_call.1} parent=1 // pred_check
      _
    $region23: #{tpu_custom_call.1} parent=1 // pred_check_branch
      %4386 = sbr.rel (0) target = $region25
    $region24: #{tpu_custom_call.1} parent=1 // pred_region
      %4387 = dma.done [#allocation4], 4096
    $region25: #{tpu_custom_call.1} parent=1 // pred_fallthru
      _
    %4388 = vsyncpa [#allocation4], 1

</llo_original>
